<compile_context>
chip_gen: v5e
topology: v5e:2x2
jax: 0.10.0
libtpu: 0.0.40
codegen_flags: <defaults>
</compile_context>

<pallas_src>
import math

import jax
import jax.numpy as jnp
from jax.experimental import pallas as pl
from jax.experimental.pallas import tpu as pltpu


def relu_sae_kernel(xp_ref, we_ref, wd_ref, b_ref, z_ref, recon_ref):
    """One (batch-tile i, feature-tile j) grid step.

    xp_ref    : [bm, d]   x_pre = alpha*x - b   (compute dtype, bf16 default)
    we_ref    : [d, tn]   W_enc^T tile          (compute dtype)
    wd_ref    : [tn, d]   W_dec^T tile          (compute dtype)
    b_ref     : [1, d]    decoder bias (f32)
    z_ref     : [bm, tn]  z output tile
    recon_ref : [bm, d]   f32 recon output, resident across j (accumulator)
    """
    j = pl.program_id(1)

    @pl.when(j == 0)
    def _():
        # Resident-output accumulator init; the reference's final "+ b" is
        # folded into this initialization (saves a finalize pass).
        recon_ref[...] = jnp.broadcast_to(b_ref[...], recon_ref.shape)

    # pre = x_pre @ W_enc.T  -> natural [M,K] x [K,N] bf16 MXU contraction.
    pre = jnp.dot(xp_ref[...], we_ref[...], preferred_element_type=jnp.float32)
    z = jnp.maximum(pre, 0.0)                                  # ReLU
    z_ref[...] = z.astype(z_ref.dtype)

    # recon partial sum: z_tile @ W_dec.T tile, accumulated over feature tiles
    # directly in the resident f32 output block (no extra scratch).
    recon_ref[...] += jnp.dot(z.astype(wd_ref.dtype), wd_ref[...],
                              preferred_element_type=jnp.float32)


def _pad_axis(arr, axis, multiple):
    size = arr.shape[axis]
    pad = (-size) % multiple
    if pad == 0:
        return arr
    widths = [(0, 0)] * arr.ndim
    widths[axis] = (0, pad)
    return jnp.pad(arr, widths)


def _vmem_capacity_bytes():
    try:
        return int(pltpu.get_tpu_info().vmem_capacity_bytes)
    except Exception:
        return 64 << 20  # conservative (v7x-sized) fallback


def _candidate_tiles(total, quantum, max_tile):
    """Multiples of `quantum` that divide `total` (capped at max_tile),
    descending; falls back to the full dimension if none exist."""
    cands = [t for t in range(quantum, min(total, max_tile) + 1, quantum)
             if total % t == 0]
    if not cands:
        return [total]
    return sorted(cands, reverse=True)


def relu_sae_forward(x, W_enc, W_dec, b, alpha=None, *,
                     bm=None, tn=None,
                     compute_dtype=jnp.bfloat16, z_dtype=None):
    """Pallas ReLUSAE forward. Returns (x, z, recon) like the PyTorch module.

    compute_dtype: dtype fed to the MXU (bf16 default; jnp.float32 for a
                   full-precision path at lower throughput).
    z_dtype:       dtype of the z output (defaults to x.dtype; pass bf16 to
                   halve z writeback traffic for large dictionaries).
    """
    B, d = x.shape
    n, d2 = W_enc.shape
    assert d2 == d and W_dec.shape == (d, n) and b.shape == (d,)

    if alpha is not None:
        x = alpha * x
    out_dtype = x.dtype
    if z_dtype is None:
        z_dtype = out_dtype

    # Grid-invariant prework (scale, bias-subtract, transpose, dtype cast)
    # done once in XLA, not per grid step.
    x_pre = (x - b).astype(compute_dtype)          # [B, d]
    w_enc_t = W_enc.T.astype(compute_dtype)        # [d, n]  natural [K, N]
    w_dec_t = W_dec.T.astype(compute_dtype)        # [n, d]  natural [K, N]
    b_row = b.reshape(1, d).astype(jnp.float32)    # [1, d]

    # Lane-align d and n with zero padding: padded features give z == 0 and
    # contribute nothing to recon; padded model dims are sliced off below.
    x_pre = _pad_axis(x_pre, 1, 128)
    w_enc_t = _pad_axis(_pad_axis(w_enc_t, 0, 128), 1, 128)
    w_dec_t = _pad_axis(_pad_axis(w_dec_t, 0, 128), 1, 128)
    b_row = _pad_axis(b_row, 1, 128)
    d_pad = x_pre.shape[1]
    n_pad = w_enc_t.shape[1]

    cbytes = jnp.dtype(compute_dtype).itemsize
    zbytes = jnp.dtype(z_dtype).itemsize

    def footprint(bm_c, tn_c):
        # Double-buffered inputs + outputs; recon accumulates in the f32
        # output block itself (no scratch term).
        ins = (bm_c * d_pad * cbytes + d_pad * tn_c * cbytes
               + tn_c * d_pad * cbytes + d_pad * 4)
        outs = bm_c * tn_c * zbytes + bm_c * d_pad * 4
        return 2 * (ins + outs)

    cap = _vmem_capacity_bytes()
    headroom = (12 << 20) if cap <= (64 << 20) else (24 << 20)
    budget = cap - headroom            # ~52 MiB on v7x, ~104 MiB on v5e/v6e

    # Prefer the largest batch tile (amortizes weight re-streaming across the
    # grid), then the largest feature tile, that fits ~85% of the budget.
    bm_cands = [bm] if bm is not None else _candidate_tiles(B, 128, 1024)
    tn_cands = [tn] if tn is not None else _candidate_tiles(n_pad, 128, 4096)
    sel = None
    for bm_c in bm_cands:
        for tn_c in tn_cands:
            if footprint(bm_c, tn_c) <= 0.85 * budget:
                sel = (bm_c, tn_c)
                break
        if sel is not None:
            break
    if sel is None:
        # Smallest candidates; may still exceed VMEM for extreme d (d is not
        # tiled in this design).
        sel = (bm_cands[-1], tn_cands[-1])
    bm, tn = sel
    assert B % bm == 0, f"batch {B} must be divisible by bm={bm}"
    assert n_pad % tn == 0, f"padded features {n_pad} must be divisible by tn={tn}"

    z_pad, recon_pad = pl.pallas_call(
        relu_sae_kernel,
        out_shape=(
            jax.ShapeDtypeStruct((B, n_pad), z_dtype),      # z
            jax.ShapeDtypeStruct((B, d_pad), jnp.float32),  # recon (f32 accum)
        ),
        grid_spec=pltpu.PrefetchScalarGridSpec(
            num_scalar_prefetch=0,
            grid=(B // bm, n_pad // tn),
            in_specs=[
                pl.BlockSpec((bm, d_pad), lambda i, j: (i, 0)),   # x_pre
                pl.BlockSpec((d_pad, tn), lambda i, j: (0, j)),   # W_enc^T tile
                pl.BlockSpec((tn, d_pad), lambda i, j: (j, 0)),   # W_dec^T tile
                pl.BlockSpec((1, d_pad), lambda i, j: (0, 0)),    # bias
            ],
            out_specs=[
                pl.BlockSpec((bm, tn), lambda i, j: (i, j)),      # z
                pl.BlockSpec((bm, d_pad), lambda i, j: (i, 0)),   # recon (resident over j)
            ],
        ),
        compiler_params=pltpu.CompilerParams(
            dimension_semantics=("parallel", "arbitrary"),
            vmem_limit_bytes=int(budget),
        ),
    )(x_pre, w_enc_t, w_dec_t, b_row)

    z = z_pad[:, :n]
    recon = recon_pad[:, :d].astype(out_dtype)
    # Mirrors ReLUSAE.forward: (x, z, recon) with x the (alpha-scaled) input.
    return x, z, recon


def init_params(key, d, n):
    # Mirrors ReLUSAE.__init__: W_dec = randn(d, n)/sqrt(d), column-normalized;
    # W_enc = W_dec.T; b = zeros.
    W_dec = jax.random.normal(key, (d, n), dtype=jnp.float32) / math.sqrt(d)
    W_dec = W_dec / jnp.linalg.norm(W_dec, axis=0, keepdims=True)
    W_enc = W_dec.T
    b = jnp.zeros((d,), jnp.float32)
    return W_enc, W_dec, b


def reference_forward(x, W_enc, W_dec, b, alpha=None):
    if alpha is not None:
        x = alpha * x
    pre = (x - b) @ W_enc.T
    z = jnp.maximum(pre, 0.0)
    recon = z @ W_dec.T + b
    return x, z, recon


def reference_forward_bf16(x, W_enc, W_dec, b, alpha=None):
    """Reference emulating the kernel's bf16 inputs / f32 accumulation."""
    if alpha is not None:
        x = alpha * x
    f32 = jnp.float32
    xp = (x - b).astype(jnp.bfloat16).astype(f32)
    we = W_enc.T.astype(jnp.bfloat16).astype(f32)
    wd = W_dec.T.astype(jnp.bfloat16).astype(f32)
    pre = xp @ we
    z = jnp.maximum(pre, 0.0)
    recon = z.astype(jnp.bfloat16).astype(f32) @ wd + b
    return x, z, recon


if __name__ == "__main__":
    # Small but tile-exercising shapes.
    B, d, n = 512, 128, 512
    alpha = 1.25
    key = jax.random.PRNGKey(0)
    k_x, k_w, k_b = jax.random.split(key, 3)

    x = jax.random.normal(k_x, (B, d), dtype=jnp.float32)
    W_enc, W_dec, b = init_params(k_w, d, n)
    # Non-zero bias so the (x - b) / (+ b) paths are actually exercised.
    b = 0.1 * jax.random.normal(k_b, (d,), dtype=jnp.float32)

    # 1) Auto-tiled run (defaults: bf16 compute, VMEM-derived tiles).
    x_out, z, recon = jax.block_until_ready(
        relu_sae_forward(x, W_enc, W_dec, b, alpha=alpha))

    # 2) Forced small tiles so the 2-D grid and the resident-recon
    #    accumulation across multiple feature tiles are exercised.
    _, z_t, recon_t = jax.block_until_ready(
        relu_sae_forward(x, W_enc, W_dec, b, alpha=alpha, bm=128, tn=128))

    # Correctness checks.
    x_r, z_r, recon_r = reference_forward(x, W_enc, W_dec, b, alpha=alpha)
    _, z_rb, recon_rb = reference_forward_bf16(x, W_enc, W_dec, b, alpha=alpha)

    assert jnp.allclose(x_out, x_r, atol=1e-6), "x mismatch"
    for zz, rr, tag in ((z, recon, "auto"), (z_t, recon_t, "tiled")):
        # Tight check vs. a bf16-emulating reference (same arithmetic path).
        assert jnp.allclose(zz, z_rb, atol=1e-2, rtol=1e-2), f"z mismatch ({tag})"
        assert jnp.allclose(rr, recon_rb, atol=1e-2, rtol=1e-2), f"recon mismatch ({tag})"
        # Loose sanity check vs. the pure-f32 reference (bf16 compute path).
        assert jnp.allclose(zz, z_r, atol=1.5e-1, rtol=1.5e-1), f"z far from f32 ref ({tag})"
        assert jnp.allclose(rr, recon_r, atol=1.5e-1, rtol=1.5e-1), f"recon far from f32 ref ({tag})"

    print("KERNEL_OK")
</pallas_src>

<mosaic_0001>
module attributes {stable_mosaic.version = 11 : i64} {
  func.func @relu_sae_kernel(%arg0: i32, %arg1: i32, %arg2: memref<512x128xbf16, #tpu.memory_space<vmem>>, %arg3: memref<128x512xbf16, #tpu.memory_space<vmem>>, %arg4: memref<512x128xbf16, #tpu.memory_space<vmem>>, %arg5: memref<1x128xf32, #tpu.memory_space<vmem>>, %arg6: memref<512x512xf32, #tpu.memory_space<vmem>>, %arg7: memref<512x128xf32, #tpu.memory_space<vmem>>) attributes {dimension_semantics = [#tpu.dimension_semantics<parallel>, #tpu.dimension_semantics<arbitrary>], iteration_bounds = array<i64: 1, 1>, scalar_prefetch = 0 : i64, scratch_operands = 0 : i64, tpu.core_type = #tpu.core_type<tc>, window_params = [{transform_indices = @transform_0, window_bounds = array<i64: 512, 128>}, {transform_indices = @transform_1, window_bounds = array<i64: 128, 512>}, {transform_indices = @transform_2, window_bounds = array<i64: 512, 128>}, {pipeline_mode = #tpu.pipeline_mode<synchronous>, transform_indices = @transform_3, window_bounds = array<i64: 1, 128>}, {transform_indices = @transform_4, window_bounds = array<i64: 512, 512>}, {transform_indices = @transform_5, window_bounds = array<i64: 512, 128>}]} {
    %c0_i32 = arith.constant 0 : i32
    %0 = arith.cmpi eq, %arg1, %c0_i32 : i32
    %1 = arith.extui %0 : i1 to i32
    %c0_i32_0 = arith.constant 0 : i32
    %2 = arith.cmpi ne, %1, %c0_i32_0 : i32
    scf.if %2 {
      %c0_14 = arith.constant 0 : index
      %c0_15 = arith.constant 0 : index
      %15 = vector.load %arg5[%c0_14, %c0_15] : memref<1x128xf32, #tpu.memory_space<vmem>>, vector<1x128xf32>
      %16 = vector.shape_cast %15 : vector<1x128xf32> to vector<1x128xf32>
      %17 = vector.broadcast %16 : vector<1x128xf32> to vector<512x128xf32>
      %c0_16 = arith.constant 0 : index
      %c0_17 = arith.constant 0 : index
      %18 = vector.load %arg7[%c0_16, %c0_17] : memref<512x128xf32, #tpu.memory_space<vmem>>, vector<512x128xf32>
      tpu.vector_store %arg7[%c0_16, %c0_17], %17 {strides = array<i32>} : memref<512x128xf32, #tpu.memory_space<vmem>>, vector<512x128xf32>,
    } else {
    }
    %c0 = arith.constant 0 : index
    %c0_1 = arith.constant 0 : index
    %3 = vector.load %arg2[%c0, %c0_1] : memref<512x128xbf16, #tpu.memory_space<vmem>>, vector<512x128xbf16>
    %c0_2 = arith.constant 0 : index
    %c0_3 = arith.constant 0 : index
    %4 = vector.load %arg3[%c0_2, %c0_3] : memref<128x512xbf16, #tpu.memory_space<vmem>>, vector<128x512xbf16>
    %cst = arith.constant dense<0.000000e+00> : vector<512x512xf32>
    %5 = tpu.matmul %3, %4, %cst {dimension_numbers = #tpu.dot_dimension_numbers<[1], [0], [0], [1], [0, 0, 1, 1], [], []>} : vector<512x128xbf16>, vector<128x512xbf16>, vector<512x512xf32> -> vector<512x512xf32>
    %cst_4 = arith.constant 0.000000e+00 : f32
    %6 = vector.broadcast %cst_4 : f32 to vector<512x512xf32>
    %7 = arith.maximumf %5, %6 : vector<512x512xf32>
    %c0_5 = arith.constant 0 : index
    %c0_6 = arith.constant 0 : index
    %8 = vector.load %arg6[%c0_5, %c0_6] : memref<512x512xf32, #tpu.memory_space<vmem>>, vector<512x512xf32>
    tpu.vector_store %arg6[%c0_5, %c0_6], %7 {strides = array<i32>} : memref<512x512xf32, #tpu.memory_space<vmem>>, vector<512x512xf32>,
    %c0_7 = arith.constant 0 : index
    %c0_8 = arith.constant 0 : index
    %9 = vector.load %arg7[%c0_7, %c0_8] : memref<512x128xf32, #tpu.memory_space<vmem>>, vector<512x128xf32>
    %10 = arith.truncf %7 : vector<512x512xf32> to vector<512x512xbf16>
    %c0_9 = arith.constant 0 : index
    %c0_10 = arith.constant 0 : index
    %11 = vector.load %arg4[%c0_9, %c0_10] : memref<512x128xbf16, #tpu.memory_space<vmem>>, vector<512x128xbf16>
    %cst_11 = arith.constant dense<0.000000e+00> : vector<512x128xf32>
    %12 = tpu.matmul %10, %11, %cst_11 {dimension_numbers = #tpu.dot_dimension_numbers<[1], [0], [0], [1], [0, 0, 1, 1], [], []>} : vector<512x512xbf16>, vector<512x128xbf16>, vector<512x128xf32> -> vector<512x128xf32>
    %13 = arith.addf %9, %12 : vector<512x128xf32>
    %c0_12 = arith.constant 0 : index
    %c0_13 = arith.constant 0 : index
    %14 = vector.load %arg7[%c0_12, %c0_13] : memref<512x128xf32, #tpu.memory_space<vmem>>, vector<512x128xf32>
    tpu.vector_store %arg7[%c0_12, %c0_13], %13 {strides = array<i32>} : memref<512x128xf32, #tpu.memory_space<vmem>>, vector<512x128xf32>,
    return
  }
  func.func @transform_0(%arg0: i32, %arg1: i32) -> (i32, i32) {
    %c0_i32 = arith.constant 0 : i32
    %c0_i32_0 = arith.constant 0 : i32
    return %arg0, %c0_i32 : i32, i32
  }
  func.func @transform_1(%arg0: i32, %arg1: i32) -> (i32, i32) {
    %c0_i32 = arith.constant 0 : i32
    %c0_i32_0 = arith.constant 0 : i32
    return %c0_i32, %arg1 : i32, i32
  }
  func.func @transform_2(%arg0: i32, %arg1: i32) -> (i32, i32) {
    %c0_i32 = arith.constant 0 : i32
    %c0_i32_0 = arith.constant 0 : i32
    return %arg1, %c0_i32 : i32, i32
  }
  func.func @transform_3(%arg0: i32, %arg1: i32) -> (i32, i32) {
    %c0_i32 = arith.constant 0 : i32
    %c0_i32_0 = arith.constant 0 : i32
    %c0_i32_1 = arith.constant 0 : i32
    return %c0_i32, %c0_i32_0 : i32, i32
  }
  func.func @transform_4(%arg0: i32, %arg1: i32) -> (i32, i32) {
    %c0_i32 = arith.constant 0 : i32
    return %arg0, %arg1 : i32, i32
  }
  func.func @transform_5(%arg0: i32, %arg1: i32) -> (i32, i32) {
    %c0_i32 = arith.constant 0 : i32
    %c0_i32_0 = arith.constant 0 : i32
    return %arg0, %c0_i32 : i32, i32
  }
}

</mosaic_0001>

<llo_original>
// kernel: tpu_custom_call.1
$region0: #{tpu_custom_call.1}
  #allocation0 [shape = 'u32[]', space=smem, size = 0x4, offset = 0x4, fixed_abs, tag = 'smem constant byte address 0x4 - core index']
  #allocation1 [shape = 'u32[72,128]{1,0:T(1,128)}', space=vmem, size = 0x9000, scoped, tag = 'internal scratch']
  %s0 = inlined_call_operand.hbm [shape: bf16[512,128], index: 0, kind: input, shape index: {}]
  %s1 = inlined_call_operand.hbm [shape: bf16[128,512], index: 1, kind: input, shape index: {}]
  %s2 = inlined_call_operand.hbm [shape: bf16[512,128], index: 2, kind: input, shape index: {}]
  %s3 = inlined_call_operand.vmem [shape: f32[1,128], index: 3, kind: input, shape index: {}]
  %s4 = inlined_call_operand.hbm [shape: f32[512,512], index: 4, kind: output, shape index: {0}]
  %s5 = inlined_call_operand.hbm [shape: f32[512,128], index: 5, kind: output, shape index: {1}]
  %6 = xla_tuple %s4, %s5
  %s7 = sld [smem:[#allocation0]]
  $region50: #{tpu_custom_call.1} parent=0
    _
  %s9 = ssub.s32 1, %s7
  %s10 = scalar_select 0, %s9, %s7
  $region1: #{tpu_custom_call.1} parent=0
    #allocation2 [shape = 'u8[131072]{0}', space=vmem, size = 0x20000, scoped, tag = 'input window, operand 0, single buffered']
    #allocation3 [shape = 's32[1]{0}', space=sflag, size = 0x4, scoped, tag = 'scoped memory for tpu_custom_call.1']
    #allocation4 [shape = 's32[1]{0}', space=sflag, size = 0x4, scoped, tag = 'scoped memory for tpu_custom_call.1']
    #allocation5 [shape = 'u8[131072]{0}', space=vmem, size = 0x20000, scoped, tag = 'input window, operand 1, single buffered']
    #allocation6 [shape = 's32[1]{0}', space=sflag, size = 0x4, scoped, tag = 'scoped memory for tpu_custom_call.1']
    #allocation7 [shape = 'u8[131072]{0}', space=vmem, size = 0x20000, scoped, tag = 'input window, operand 2, single buffered']
    #allocation8 [shape = 'u8[1048576]{0}', space=vmem, size = 0x100000, scoped, tag = 'output window, operand 0, single buffered']
    #allocation9 [shape = 'u8[262144]{0}', space=vmem, size = 0x40000, scoped, tag = 'output window, operand 1, single buffered']
    #allocation10 [shape = 's32[1]{0}', space=sflag, size = 0x4, scoped, tag = 'scoped memory for tpu_custom_call.1']
    %11 = vsyncpa [#allocation3], 0
    %12 = vsyncpa [#allocation6], 0
    %13 = vsyncpa [#allocation4], 0
    %14 = vsyncpa [#allocation10], 0
    // Predicated region
    $region2: #{tpu_custom_call.1} parent=1 // pred_check
      _
    $region3: #{tpu_custom_call.1} parent=1 // pred_check_branch
      %16 = sbr.rel (0) target = $region5
    $region4: #{tpu_custom_call.1} parent=1 // pred_region
      %18 = vsyncadd [#allocation3], 0
      %s19 = sshll.u32 %s0, 4
      %s20 = int_to_ptr.hbm [resolvable:$true] %s19
      %s21 = sshll.u32 [#allocation2], 4
      %s22 = int_to_ptr.vmem [resolvable:$true] %s21
      %27 = dma.hbm_to_vmem [thread:$0]  %s20, 4096, %s22, [#allocation3], 64, 64, 4
    $region5: #{tpu_custom_call.1} parent=1 // pred_fallthru
      _
    // Predicated region
    $region6: #{tpu_custom_call.1} parent=1 // pred_check
      _
    $region7: #{tpu_custom_call.1} parent=1 // pred_check_branch
      %29 = sbr.rel (0) target = $region9
    $region8: #{tpu_custom_call.1} parent=1 // pred_region
      %31 = vsyncadd [#allocation6], 0
      %s32 = sshll.u32 %s1, 4
      %s33 = int_to_ptr.hbm [resolvable:$true] %s32
      %s34 = sshll.u32 [#allocation5], 4
      %s35 = int_to_ptr.vmem [resolvable:$true] %s34
      %40 = dma.hbm_to_vmem [thread:$0]  %s33, 4096, %s35, [#allocation6], 256, 256, 16
    $region9: #{tpu_custom_call.1} parent=1 // pred_fallthru
      _
    // Predicated region
    $region10: #{tpu_custom_call.1} parent=1 // pred_check
      _
    $region11: #{tpu_custom_call.1} parent=1 // pred_check_branch
      %42 = sbr.rel (0) target = $region13
    $region12: #{tpu_custom_call.1} parent=1 // pred_region
      %44 = vsyncadd [#allocation6], 0
      %s45 = sshll.u32 %s2, 4
      %s46 = int_to_ptr.hbm [resolvable:$true] %s45
      %s47 = sshll.u32 [#allocation7], 4
      %s48 = int_to_ptr.vmem [resolvable:$true] %s47
      %53 = dma.hbm_to_vmem [thread:$0]  %s46, 4096, %s48, [#allocation6], 64, 64, 4
    $region13: #{tpu_custom_call.1} parent=1 // pred_fallthru
      _
    // Predicated region
    $region14: #{tpu_custom_call.1} parent=1 // pred_check
      _
    $region15: #{tpu_custom_call.1} parent=1 // pred_check_branch
      %55 = sbr.rel (0) target = $region17
    $region16: #{tpu_custom_call.1} parent=1 // pred_region
      _
    $region17: #{tpu_custom_call.1} parent=1 // pred_fallthru
      _
    // Predicated region
    $region18: #{tpu_custom_call.1} parent=1 // pred_check
      _
    $region19: #{tpu_custom_call.1} parent=1 // pred_check_branch
      %57 = sbr.rel (0) target = $region21
    $region20: #{tpu_custom_call.1} parent=1 // pred_region
      %59 = dma.done [#allocation3], 4096
    $region21: #{tpu_custom_call.1} parent=1 // pred_fallthru
      _
    // Predicated region
    $region22: #{tpu_custom_call.1} parent=1 // pred_check
      _
    $region23: #{tpu_custom_call.1} parent=1 // pred_check_branch
      %61 = sbr.rel (0) target = $region25
    $region24: #{tpu_custom_call.1} parent=1 // pred_region
      %63 = dma.done [#allocation6], 4096
    $region25: #{tpu_custom_call.1} parent=1 // pred_fallthru
      _
    // Predicated region
    $region26: #{tpu_custom_call.1} parent=1 // pred_check
      _
    $region27: #{tpu_custom_call.1} parent=1 // pred_check_branch
      %65 = sbr.rel (0) target = $region29
    $region28: #{tpu_custom_call.1} parent=1 // pred_region
      %67 = dma.done [#allocation6], 4096
    $region29: #{tpu_custom_call.1} parent=1 // pred_fallthru
      _
    %p68 = scmp.eq.s32.totalorder 0, 0
    // Predicated region
    $region30: #{tpu_custom_call.1} parent=1 // pred_check
      %p69 = pneg %p68
    $region31: #{tpu_custom_call.1} parent=1 // pred_check_branch
      %71 = sbr.rel (%p69) target = $region33
    $region32: #{tpu_custom_call.1} parent=1 // pred_region
      %v72 = vld [vmem:[%s3] sm:$0x1]
      %v74 = vperm.slane %v72, 0
      %76 = vst [vmem:[#allocation9] sm:$0xff] %v74
      %77 = vst [vmem:[#allocation9 + $0x8] sm:$0xff] %v74
      %78 = vst [vmem:[#allocation9 + $0x10] sm:$0xff] %v74
      %79 = vst [vmem:[#allocation9 + $0x18] sm:$0xff] %v74
      %80 = vst [vmem:[#allocation9 + $0x20] sm:$0xff] %v74
      %81 = vst [vmem:[#allocation9 + $0x28] sm:$0xff] %v74
      %82 = vst [vmem:[#allocation9 + $0x30] sm:$0xff] %v74
      %83 = vst [vmem:[#allocation9 + $0x38] sm:$0xff] %v74
      %84 = vst [vmem:[#allocation9 + $0x40] sm:$0xff] %v74
      %85 = vst [vmem:[#allocation9 + $0x48] sm:$0xff] %v74
      %86 = vst [vmem:[#allocation9 + $0x50] sm:$0xff] %v74
      %87 = vst [vmem:[#allocation9 + $0x58] sm:$0xff] %v74
      %88 = vst [vmem:[#allocation9 + $0x60] sm:$0xff] %v74
      %89 = vst [vmem:[#allocation9 + $0x68] sm:$0xff] %v74
      %90 = vst [vmem:[#allocation9 + $0x70] sm:$0xff] %v74
      %91 = vst [vmem:[#allocation9 + $0x78] sm:$0xff] %v74
      %92 = vst [vmem:[#allocation9 + $0x80] sm:$0xff] %v74
      %93 = vst [vmem:[#allocation9 + $0x88] sm:$0xff] %v74
      %94 = vst [vmem:[#allocation9 + $0x90] sm:$0xff] %v74
      %95 = vst [vmem:[#allocation9 + $0x98] sm:$0xff] %v74
      %96 = vst [vmem:[#allocation9 + $0xa0] sm:$0xff] %v74
      %97 = vst [vmem:[#allocation9 + $0xa8] sm:$0xff] %v74
      %98 = vst [vmem:[#allocation9 + $0xb0] sm:$0xff] %v74
      %99 = vst [vmem:[#allocation9 + $0xb8] sm:$0xff] %v74
      %100 = vst [vmem:[#allocation9 + $0xc0] sm:$0xff] %v74
      %101 = vst [vmem:[#allocation9 + $0xc8] sm:$0xff] %v74
      %102 = vst [vmem:[#allocation9 + $0xd0] sm:$0xff] %v74
      %103 = vst [vmem:[#allocation9 + $0xd8] sm:$0xff] %v74
      %104 = vst [vmem:[#allocation9 + $0xe0] sm:$0xff] %v74
      %105 = vst [vmem:[#allocation9 + $0xe8] sm:$0xff] %v74
      %106 = vst [vmem:[#allocation9 + $0xf0] sm:$0xff] %v74
      %107 = vst [vmem:[#allocation9 + $0xf8] sm:$0xff] %v74
      %108 = vst [vmem:[#allocation9 + $0x100] sm:$0xff] %v74
      %109 = vst [vmem:[#allocation9 + $0x108] sm:$0xff] %v74
      %110 = vst [vmem:[#allocation9 + $0x110] sm:$0xff] %v74
      %111 = vst [vmem:[#allocation9 + $0x118] sm:$0xff] %v74
      %112 = vst [vmem:[#allocation9 + $0x120] sm:$0xff] %v74
      %113 = vst [vmem:[#allocation9 + $0x128] sm:$0xff] %v74
      %114 = vst [vmem:[#allocation9 + $0x130] sm:$0xff] %v74
      %115 = vst [vmem:[#allocation9 + $0x138] sm:$0xff] %v74
      %116 = vst [vmem:[#allocation9 + $0x140] sm:$0xff] %v74
      %117 = vst [vmem:[#allocation9 + $0x148] sm:$0xff] %v74
      %118 = vst [vmem:[#allocation9 + $0x150] sm:$0xff] %v74
      %119 = vst [vmem:[#allocation9 + $0x158] sm:$0xff] %v74
      %120 = vst [vmem:[#allocation9 + $0x160] sm:$0xff] %v74
      %121 = vst [vmem:[#allocation9 + $0x168] sm:$0xff] %v74
      %122 = vst [vmem:[#allocation9 + $0x170] sm:$0xff] %v74
      %123 = vst [vmem:[#allocation9 + $0x178] sm:$0xff] %v74
      %124 = vst [vmem:[#allocation9 + $0x180] sm:$0xff] %v74
      %125 = vst [vmem:[#allocation9 + $0x188] sm:$0xff] %v74
      %126 = vst [vmem:[#allocation9 + $0x190] sm:$0xff] %v74
      %127 = vst [vmem:[#allocation9 + $0x198] sm:$0xff] %v74
      %128 = vst [vmem:[#allocation9 + $0x1a0] sm:$0xff] %v74
      %129 = vst [vmem:[#allocation9 + $0x1a8] sm:$0xff] %v74
      %130 = vst [vmem:[#allocation9 + $0x1b0] sm:$0xff] %v74
      %131 = vst [vmem:[#allocation9 + $0x1b8] sm:$0xff] %v74
      %132 = vst [vmem:[#allocation9 + $0x1c0] sm:$0xff] %v74
      %133 = vst [vmem:[#allocation9 + $0x1c8] sm:$0xff] %v74
      %134 = vst [vmem:[#allocation9 + $0x1d0] sm:$0xff] %v74
      %135 = vst [vmem:[#allocation9 + $0x1d8] sm:$0xff] %v74
      %136 = vst [vmem:[#allocation9 + $0x1e0] sm:$0xff] %v74
      %137 = vst [vmem:[#allocation9 + $0x1e8] sm:$0xff] %v74
      %138 = vst [vmem:[#allocation9 + $0x1f0] sm:$0xff] %v74
      %139 = vst [vmem:[#allocation9 + $0x1f8] sm:$0xff] %v74
    $region33: #{tpu_custom_call.1} parent=1 // pred_fallthru
      _
    %v140 = vld [vmem:[#allocation2] sm:$0xf]
    %v141 = vld [vmem:[#allocation2 + $0x4] sm:$0xf]
    %v142 = vld [vmem:[#allocation2 + $0x8] sm:$0xf]
    %v143 = vld [vmem:[#allocation2 + $0xc] sm:$0xf]
    %v144 = vld [vmem:[#allocation2 + $0x10] sm:$0xf]
    %v145 = vld [vmem:[#allocation2 + $0x14] sm:$0xf]
    %v146 = vld [vmem:[#allocation2 + $0x18] sm:$0xf]
    %v147 = vld [vmem:[#allocation2 + $0x1c] sm:$0xf]
    %v148 = vld [vmem:[#allocation2 + $0x20] sm:$0xf]
    %v149 = vld [vmem:[#allocation2 + $0x24] sm:$0xf]
    %v150 = vld [vmem:[#allocation2 + $0x28] sm:$0xf]
    %v151 = vld [vmem:[#allocation2 + $0x2c] sm:$0xf]
    %v152 = vld [vmem:[#allocation2 + $0x30] sm:$0xf]
    %v153 = vld [vmem:[#allocation2 + $0x34] sm:$0xf]
    %v154 = vld [vmem:[#allocation2 + $0x38] sm:$0xf]
    %v155 = vld [vmem:[#allocation2 + $0x3c] sm:$0xf]
    %v156 = vld [vmem:[#allocation2 + $0x40] sm:$0xf]
    %v157 = vld [vmem:[#allocation2 + $0x44] sm:$0xf]
    %v158 = vld [vmem:[#allocation2 + $0x48] sm:$0xf]
    %v159 = vld [vmem:[#allocation2 + $0x4c] sm:$0xf]
    %v160 = vld [vmem:[#allocation2 + $0x50] sm:$0xf]
    %v161 = vld [vmem:[#allocation2 + $0x54] sm:$0xf]
    %v162 = vld [vmem:[#allocation2 + $0x58] sm:$0xf]
    %v163 = vld [vmem:[#allocation2 + $0x5c] sm:$0xf]
    %v164 = vld [vmem:[#allocation2 + $0x60] sm:$0xf]
    %v165 = vld [vmem:[#allocation2 + $0x64] sm:$0xf]
    %v166 = vld [vmem:[#allocation2 + $0x68] sm:$0xf]
    %v167 = vld [vmem:[#allocation2 + $0x6c] sm:$0xf]
    %v168 = vld [vmem:[#allocation2 + $0x70] sm:$0xf]
    %v169 = vld [vmem:[#allocation2 + $0x74] sm:$0xf]
    %v170 = vld [vmem:[#allocation2 + $0x78] sm:$0xf]
    %v171 = vld [vmem:[#allocation2 + $0x7c] sm:$0xf]
    %v172 = vld [vmem:[#allocation2 + $0x80] sm:$0xf]
    %v173 = vld [vmem:[#allocation2 + $0x84] sm:$0xf]
    %v174 = vld [vmem:[#allocation2 + $0x88] sm:$0xf]
    %v175 = vld [vmem:[#allocation2 + $0x8c] sm:$0xf]
    %v176 = vld [vmem:[#allocation2 + $0x90] sm:$0xf]
    %v177 = vld [vmem:[#allocation2 + $0x94] sm:$0xf]
    %v178 = vld [vmem:[#allocation2 + $0x98] sm:$0xf]
    %v179 = vld [vmem:[#allocation2 + $0x9c] sm:$0xf]
    %v180 = vld [vmem:[#allocation2 + $0xa0] sm:$0xf]
    %v181 = vld [vmem:[#allocation2 + $0xa4] sm:$0xf]
    %v182 = vld [vmem:[#allocation2 + $0xa8] sm:$0xf]
    %v183 = vld [vmem:[#allocation2 + $0xac] sm:$0xf]
    %v184 = vld [vmem:[#allocation2 + $0xb0] sm:$0xf]
    %v185 = vld [vmem:[#allocation2 + $0xb4] sm:$0xf]
    %v186 = vld [vmem:[#allocation2 + $0xb8] sm:$0xf]
    %v187 = vld [vmem:[#allocation2 + $0xbc] sm:$0xf]
    %v188 = vld [vmem:[#allocation2 + $0xc0] sm:$0xf]
    %v189 = vld [vmem:[#allocation2 + $0xc4] sm:$0xf]
    %v190 = vld [vmem:[#allocation2 + $0xc8] sm:$0xf]
    %v191 = vld [vmem:[#allocation2 + $0xcc] sm:$0xf]
    %v192 = vld [vmem:[#allocation2 + $0xd0] sm:$0xf]
    %v193 = vld [vmem:[#allocation2 + $0xd4] sm:$0xf]
    %v194 = vld [vmem:[#allocation2 + $0xd8] sm:$0xf]
    %v195 = vld [vmem:[#allocation2 + $0xdc] sm:$0xf]
    %v196 = vld [vmem:[#allocation2 + $0xe0] sm:$0xf]
    %v197 = vld [vmem:[#allocation2 + $0xe4] sm:$0xf]
    %v198 = vld [vmem:[#allocation2 + $0xe8] sm:$0xf]
    %v199 = vld [vmem:[#allocation2 + $0xec] sm:$0xf]
    %v200 = vld [vmem:[#allocation2 + $0xf0] sm:$0xf]
    %v201 = vld [vmem:[#allocation2 + $0xf4] sm:$0xf]
    %v202 = vld [vmem:[#allocation2 + $0xf8] sm:$0xf]
    %v203 = vld [vmem:[#allocation2 + $0xfc] sm:$0xf]
    %v204 = vld [vmem:[#allocation5] sm:$0xff]
    %v205 = vld [vmem:[#allocation5 + $0x8] sm:$0xff]
    %v206 = vld [vmem:[#allocation5 + $0x10] sm:$0xff]
    %v207 = vld [vmem:[#allocation5 + $0x18] sm:$0xff]
    %v208 = vld [vmem:[#allocation5 + $0x20] sm:$0xff]
    %v209 = vld [vmem:[#allocation5 + $0x28] sm:$0xff]
    %v210 = vld [vmem:[#allocation5 + $0x30] sm:$0xff]
    %v211 = vld [vmem:[#allocation5 + $0x38] sm:$0xff]
    %v212 = vld [vmem:[#allocation5 + $0x40] sm:$0xff]
    %v213 = vld [vmem:[#allocation5 + $0x48] sm:$0xff]
    %v214 = vld [vmem:[#allocation5 + $0x50] sm:$0xff]
    %v215 = vld [vmem:[#allocation5 + $0x58] sm:$0xff]
    %v216 = vld [vmem:[#allocation5 + $0x60] sm:$0xff]
    %v217 = vld [vmem:[#allocation5 + $0x68] sm:$0xff]
    %v218 = vld [vmem:[#allocation5 + $0x70] sm:$0xff]
    %v219 = vld [vmem:[#allocation5 + $0x78] sm:$0xff]
    %v220 = vld [vmem:[#allocation5 + $0x80] sm:$0xff]
    %v221 = vld [vmem:[#allocation5 + $0x88] sm:$0xff]
    %v222 = vld [vmem:[#allocation5 + $0x90] sm:$0xff]
    %v223 = vld [vmem:[#allocation5 + $0x98] sm:$0xff]
    %v224 = vld [vmem:[#allocation5 + $0xa0] sm:$0xff]
    %v225 = vld [vmem:[#allocation5 + $0xa8] sm:$0xff]
    %v226 = vld [vmem:[#allocation5 + $0xb0] sm:$0xff]
    %v227 = vld [vmem:[#allocation5 + $0xb8] sm:$0xff]
    %v228 = vld [vmem:[#allocation5 + $0xc0] sm:$0xff]
    %v229 = vld [vmem:[#allocation5 + $0xc8] sm:$0xff]
    %v230 = vld [vmem:[#allocation5 + $0xd0] sm:$0xff]
    %v231 = vld [vmem:[#allocation5 + $0xd8] sm:$0xff]
    %v232 = vld [vmem:[#allocation5 + $0xe0] sm:$0xff]
    %v233 = vld [vmem:[#allocation5 + $0xe8] sm:$0xff]
    %v234 = vld [vmem:[#allocation5 + $0xf0] sm:$0xff]
    %v235 = vld [vmem:[#allocation5 + $0xf8] sm:$0xff]
    %v300 = vunpack.c.l.b16 %v140
    %v301 = vunpack.c.l.b16 %v141
    %v302 = vunpack.c.l.b16 %v142
    %v303 = vunpack.c.l.b16 %v143
    %v304 = vunpack.c.l.b16 %v144
    %v305 = vunpack.c.l.b16 %v145
    %v306 = vunpack.c.l.b16 %v146
    %v307 = vunpack.c.l.b16 %v147
    %v308 = vunpack.c.l.b16 %v148
    %v309 = vunpack.c.l.b16 %v149
    %v310 = vunpack.c.l.b16 %v150
    %v311 = vunpack.c.l.b16 %v151
    %v312 = vunpack.c.l.b16 %v152
    %v313 = vunpack.c.l.b16 %v153
    %v314 = vunpack.c.l.b16 %v154
    %v315 = vunpack.c.l.b16 %v155
    %v316 = vunpack.c.l.b16 %v156
    %v317 = vunpack.c.l.b16 %v157
    %v318 = vunpack.c.l.b16 %v158
    %v319 = vunpack.c.l.b16 %v159
    %v320 = vunpack.c.l.b16 %v160
    %v321 = vunpack.c.l.b16 %v161
    %v322 = vunpack.c.l.b16 %v162
    %v323 = vunpack.c.l.b16 %v163
    %v324 = vunpack.c.l.b16 %v164
    %v325 = vunpack.c.l.b16 %v165
    %v326 = vunpack.c.l.b16 %v166
    %v327 = vunpack.c.l.b16 %v167
    %v328 = vunpack.c.l.b16 %v168
    %v329 = vunpack.c.l.b16 %v169
    %v330 = vunpack.c.l.b16 %v170
    %v331 = vunpack.c.l.b16 %v171
    %v332 = vunpack.c.l.b16 %v172
    %v333 = vunpack.c.l.b16 %v173
    %v334 = vunpack.c.l.b16 %v174
    %v335 = vunpack.c.l.b16 %v175
    %v336 = vunpack.c.l.b16 %v176
    %v337 = vunpack.c.l.b16 %v177
    %v338 = vunpack.c.l.b16 %v178
    %v339 = vunpack.c.l.b16 %v179
    %v340 = vunpack.c.l.b16 %v180
    %v341 = vunpack.c.l.b16 %v181
    %v342 = vunpack.c.l.b16 %v182
    %v343 = vunpack.c.l.b16 %v183
    %v344 = vunpack.c.l.b16 %v184
    %v345 = vunpack.c.l.b16 %v185
    %v346 = vunpack.c.l.b16 %v186
    %v347 = vunpack.c.l.b16 %v187
    %v348 = vunpack.c.l.b16 %v188
    %v349 = vunpack.c.l.b16 %v189
    %v350 = vunpack.c.l.b16 %v190
    %v351 = vunpack.c.l.b16 %v191
    %v352 = vunpack.c.l.b16 %v192
    %v353 = vunpack.c.l.b16 %v193
    %v354 = vunpack.c.l.b16 %v194
    %v355 = vunpack.c.l.b16 %v195
    %v356 = vunpack.c.l.b16 %v196
    %v357 = vunpack.c.l.b16 %v197
    %v358 = vunpack.c.l.b16 %v198
    %v359 = vunpack.c.l.b16 %v199
    %v360 = vunpack.c.l.b16 %v200
    %v361 = vunpack.c.l.b16 %v201
    %v362 = vunpack.c.l.b16 %v202
    %v363 = vunpack.c.l.b16 %v203
    %v364 = vpack.c.b16 %v301, %v300
    %v365 = vpack.c.b16 %v303, %v302
    %v366 = vpack.c.b16 %v305, %v304
    %v367 = vpack.c.b16 %v307, %v306
    %v368 = vpack.c.b16 %v309, %v308
    %v369 = vpack.c.b16 %v311, %v310
    %v370 = vpack.c.b16 %v313, %v312
    %v371 = vpack.c.b16 %v315, %v314
    %v372 = vpack.c.b16 %v317, %v316
    %v373 = vpack.c.b16 %v319, %v318
    %v374 = vpack.c.b16 %v321, %v320
    %v375 = vpack.c.b16 %v323, %v322
    %v376 = vpack.c.b16 %v325, %v324
    %v377 = vpack.c.b16 %v327, %v326
    %v378 = vpack.c.b16 %v329, %v328
    %v379 = vpack.c.b16 %v331, %v330
    %v380 = vpack.c.b16 %v333, %v332
    %v381 = vpack.c.b16 %v335, %v334
    %v382 = vpack.c.b16 %v337, %v336
    %v383 = vpack.c.b16 %v339, %v338
    %v384 = vpack.c.b16 %v341, %v340
    %v385 = vpack.c.b16 %v343, %v342
    %v386 = vpack.c.b16 %v345, %v344
    %v387 = vpack.c.b16 %v347, %v346
    %v388 = vpack.c.b16 %v349, %v348
    %v389 = vpack.c.b16 %v351, %v350
    %v390 = vpack.c.b16 %v353, %v352
    %v391 = vpack.c.b16 %v355, %v354
    %v392 = vpack.c.b16 %v357, %v356
    %v393 = vpack.c.b16 %v359, %v358
    %v394 = vpack.c.b16 %v361, %v360
    %v395 = vpack.c.b16 %v363, %v362
    %v460 = vunpack.c.l.b16 %v204
    %v461 = vunpack.c.h.b16 %v204
    %v462 = vunpack.c.l.b16 %v205
    %v463 = vunpack.c.h.b16 %v205
    %v464 = vunpack.c.l.b16 %v206
    %v465 = vunpack.c.h.b16 %v206
    %v466 = vunpack.c.l.b16 %v207
    %v467 = vunpack.c.h.b16 %v207
    %v468 = vunpack.c.l.b16 %v208
    %v469 = vunpack.c.h.b16 %v208
    %v470 = vunpack.c.l.b16 %v209
    %v471 = vunpack.c.h.b16 %v209
    %v472 = vunpack.c.l.b16 %v210
    %v473 = vunpack.c.h.b16 %v210
    %v474 = vunpack.c.l.b16 %v211
    %v475 = vunpack.c.h.b16 %v211
    %v476 = vunpack.c.l.b16 %v212
    %v477 = vunpack.c.h.b16 %v212
    %v478 = vunpack.c.l.b16 %v213
    %v479 = vunpack.c.h.b16 %v213
    %v480 = vunpack.c.l.b16 %v214
    %v481 = vunpack.c.h.b16 %v214
    %v482 = vunpack.c.l.b16 %v215
    %v483 = vunpack.c.h.b16 %v215
    %v484 = vunpack.c.l.b16 %v216
    %v485 = vunpack.c.h.b16 %v216
    %v486 = vunpack.c.l.b16 %v217
    %v487 = vunpack.c.h.b16 %v217
    %v488 = vunpack.c.l.b16 %v218
    %v489 = vunpack.c.h.b16 %v218
    %v490 = vunpack.c.l.b16 %v219
    %v491 = vunpack.c.h.b16 %v219
    %v492 = vunpack.c.l.b16 %v220
    %v493 = vunpack.c.h.b16 %v220
    %v494 = vunpack.c.l.b16 %v221
    %v495 = vunpack.c.h.b16 %v221
    %v496 = vunpack.c.l.b16 %v222
    %v497 = vunpack.c.h.b16 %v222
    %v498 = vunpack.c.l.b16 %v223
    %v499 = vunpack.c.h.b16 %v223
    %v500 = vunpack.c.l.b16 %v224
    %v501 = vunpack.c.h.b16 %v224
    %v502 = vunpack.c.l.b16 %v225
    %v503 = vunpack.c.h.b16 %v225
    %v504 = vunpack.c.l.b16 %v226
    %v505 = vunpack.c.h.b16 %v226
    %v506 = vunpack.c.l.b16 %v227
    %v507 = vunpack.c.h.b16 %v227
    %v508 = vunpack.c.l.b16 %v228
    %v509 = vunpack.c.h.b16 %v228
    %v510 = vunpack.c.l.b16 %v229
    %v511 = vunpack.c.h.b16 %v229
    %v512 = vunpack.c.l.b16 %v230
    %v513 = vunpack.c.h.b16 %v230
    %v514 = vunpack.c.l.b16 %v231
    %v515 = vunpack.c.h.b16 %v231
    %v516 = vunpack.c.l.b16 %v232
    %v517 = vunpack.c.h.b16 %v232
    %v518 = vunpack.c.l.b16 %v233
    %v519 = vunpack.c.h.b16 %v233
    %v520 = vunpack.c.l.b16 %v234
    %v521 = vunpack.c.h.b16 %v234
    %v522 = vunpack.c.l.b16 %v235
    %v523 = vunpack.c.h.b16 %v235
    %v524 = vpack.c.b16 %v464, %v460
    %v525 = vpack.c.b16 %v465, %v461
    %v526 = vpack.c.b16 %v466, %v462
    %v527 = vpack.c.b16 %v467, %v463
    %v528 = vpack.c.b16 %v472, %v468
    %v529 = vpack.c.b16 %v473, %v469
    %v530 = vpack.c.b16 %v474, %v470
    %v531 = vpack.c.b16 %v475, %v471
    %v532 = vpack.c.b16 %v480, %v476
    %v533 = vpack.c.b16 %v481, %v477
    %v534 = vpack.c.b16 %v482, %v478
    %v535 = vpack.c.b16 %v483, %v479
    %v536 = vpack.c.b16 %v488, %v484
    %v537 = vpack.c.b16 %v489, %v485
    %v538 = vpack.c.b16 %v490, %v486
    %v539 = vpack.c.b16 %v491, %v487
    %v540 = vpack.c.b16 %v496, %v492
    %v541 = vpack.c.b16 %v497, %v493
    %v542 = vpack.c.b16 %v498, %v494
    %v543 = vpack.c.b16 %v499, %v495
    %v544 = vpack.c.b16 %v504, %v500
    %v545 = vpack.c.b16 %v505, %v501
    %v546 = vpack.c.b16 %v506, %v502
    %v547 = vpack.c.b16 %v507, %v503
    %v548 = vpack.c.b16 %v512, %v508
    %v549 = vpack.c.b16 %v513, %v509
    %v550 = vpack.c.b16 %v514, %v510
    %v551 = vpack.c.b16 %v515, %v511
    %v552 = vpack.c.b16 %v520, %v516
    %v553 = vpack.c.b16 %v521, %v517
    %v554 = vpack.c.b16 %v522, %v518
    %v555 = vpack.c.b16 %v523, %v519
    %588 = vmatpush.bf16.msra.mxu0 %v552
    %589 = vmatpush.bf16.msra.mxu0 %v548
    %590 = vmatpush.bf16.msra.mxu0 %v544
    %591 = vmatpush.bf16.msra.mxu0 %v540
    %592 = vmatpush.bf16.msra.mxu0 %v536
    %593 = vmatpush.bf16.msra.mxu0 %v532
    %594 = vmatpush.bf16.msra.mxu0 %v528
    %595 = vmatpush.bf16.msra.mxu0 %v524
    %596 = vmatmul.bf16.gmra.mxu0 %v364
    %v597 = vpop.f32.mrf.mxu0
    %v598 = vadd.f32 0.0, %v597
    %v599 = vpop.f32.mrf.mxu0
    %v600 = vadd.f32 0.0, %v599
    %601 = vmatmul.bf16.gmra.mxu0 %v365
    %v602 = vpop.f32.mrf.mxu0
    %v603 = vadd.f32 0.0, %v602
    %v604 = vpop.f32.mrf.mxu0
    %v605 = vadd.f32 0.0, %v604
    %606 = vmatmul.bf16.gmra.mxu0 %v366
    %v607 = vpop.f32.mrf.mxu0
    %v608 = vadd.f32 0.0, %v607
    %v609 = vpop.f32.mrf.mxu0
    %v610 = vadd.f32 0.0, %v609
    %611 = vmatmul.bf16.gmra.mxu0 %v367
    %v612 = vpop.f32.mrf.mxu0
    %v613 = vadd.f32 0.0, %v612
    %v614 = vpop.f32.mrf.mxu0
    %v615 = vadd.f32 0.0, %v614
    %616 = vmatmul.bf16.gmra.mxu0 %v368
    %v617 = vpop.f32.mrf.mxu0
    %v618 = vadd.f32 0.0, %v617
    %v619 = vpop.f32.mrf.mxu0
    %v620 = vadd.f32 0.0, %v619
    %621 = vmatmul.bf16.gmra.mxu0 %v369
    %v622 = vpop.f32.mrf.mxu0
    %v623 = vadd.f32 0.0, %v622
    %v624 = vpop.f32.mrf.mxu0
    %v625 = vadd.f32 0.0, %v624
    %626 = vmatmul.bf16.gmra.mxu0 %v370
    %v627 = vpop.f32.mrf.mxu0
    %v628 = vadd.f32 0.0, %v627
    %v629 = vpop.f32.mrf.mxu0
    %v630 = vadd.f32 0.0, %v629
    %631 = vmatmul.bf16.gmra.mxu0 %v371
    %v632 = vpop.f32.mrf.mxu0
    %v633 = vadd.f32 0.0, %v632
    %v634 = vpop.f32.mrf.mxu0
    %v635 = vadd.f32 0.0, %v634
    %636 = vmatmul.bf16.gmra.mxu0 %v372
    %v637 = vpop.f32.mrf.mxu0
    %v638 = vadd.f32 0.0, %v637
    %v639 = vpop.f32.mrf.mxu0
    %v640 = vadd.f32 0.0, %v639
    %641 = vmatmul.bf16.gmra.mxu0 %v373
    %v642 = vpop.f32.mrf.mxu0
    %v643 = vadd.f32 0.0, %v642
    %v644 = vpop.f32.mrf.mxu0
    %v645 = vadd.f32 0.0, %v644
    %646 = vmatmul.bf16.gmra.mxu0 %v374
    %v647 = vpop.f32.mrf.mxu0
    %v648 = vadd.f32 0.0, %v647
    %v649 = vpop.f32.mrf.mxu0
    %v650 = vadd.f32 0.0, %v649
    %651 = vmatmul.bf16.gmra.mxu0 %v375
    %v652 = vpop.f32.mrf.mxu0
    %v653 = vadd.f32 0.0, %v652
    %v654 = vpop.f32.mrf.mxu0
    %v655 = vadd.f32 0.0, %v654
    %656 = vmatmul.bf16.gmra.mxu0 %v376
    %v657 = vpop.f32.mrf.mxu0
    %v658 = vadd.f32 0.0, %v657
    %v659 = vpop.f32.mrf.mxu0
    %v660 = vadd.f32 0.0, %v659
    %661 = vmatmul.bf16.gmra.mxu0 %v377
    %v662 = vpop.f32.mrf.mxu0
    %v663 = vadd.f32 0.0, %v662
    %v664 = vpop.f32.mrf.mxu0
    %v665 = vadd.f32 0.0, %v664
    %666 = vmatmul.bf16.gmra.mxu0 %v378
    %v667 = vpop.f32.mrf.mxu0
    %v668 = vadd.f32 0.0, %v667
    %v669 = vpop.f32.mrf.mxu0
    %v670 = vadd.f32 0.0, %v669
    %671 = vmatmul.bf16.gmra.mxu0 %v379
    %v672 = vpop.f32.mrf.mxu0
    %v673 = vadd.f32 0.0, %v672
    %v674 = vpop.f32.mrf.mxu0
    %v675 = vadd.f32 0.0, %v674
    %676 = vmatmul.bf16.gmra.mxu0 %v380
    %v677 = vpop.f32.mrf.mxu0
    %v678 = vadd.f32 0.0, %v677
    %v679 = vpop.f32.mrf.mxu0
    %v680 = vadd.f32 0.0, %v679
    %681 = vmatmul.bf16.gmra.mxu0 %v381
    %v682 = vpop.f32.mrf.mxu0
    %v683 = vadd.f32 0.0, %v682
    %v684 = vpop.f32.mrf.mxu0
    %v685 = vadd.f32 0.0, %v684
    %686 = vmatmul.bf16.gmra.mxu0 %v382
    %v687 = vpop.f32.mrf.mxu0
    %v688 = vadd.f32 0.0, %v687
    %v689 = vpop.f32.mrf.mxu0
    %v690 = vadd.f32 0.0, %v689
    %691 = vmatmul.bf16.gmra.mxu0 %v383
    %v692 = vpop.f32.mrf.mxu0
    %v693 = vadd.f32 0.0, %v692
    %v694 = vpop.f32.mrf.mxu0
    %v695 = vadd.f32 0.0, %v694
    %696 = vmatmul.bf16.gmra.mxu0 %v384
    %v697 = vpop.f32.mrf.mxu0
    %v698 = vadd.f32 0.0, %v697
    %v699 = vpop.f32.mrf.mxu0
    %v700 = vadd.f32 0.0, %v699
    %701 = vmatmul.bf16.gmra.mxu0 %v385
    %v702 = vpop.f32.mrf.mxu0
    %v703 = vadd.f32 0.0, %v702
    %v704 = vpop.f32.mrf.mxu0
    %v705 = vadd.f32 0.0, %v704
    %706 = vmatmul.bf16.gmra.mxu0 %v386
    %v707 = vpop.f32.mrf.mxu0
    %v708 = vadd.f32 0.0, %v707
    %v709 = vpop.f32.mrf.mxu0
    %v710 = vadd.f32 0.0, %v709
    %711 = vmatmul.bf16.gmra.mxu0 %v387
    %v712 = vpop.f32.mrf.mxu0
    %v713 = vadd.f32 0.0, %v712
    %v714 = vpop.f32.mrf.mxu0
    %v715 = vadd.f32 0.0, %v714
    %716 = vmatmul.bf16.gmra.mxu0 %v388
    %v717 = vpop.f32.mrf.mxu0
    %v718 = vadd.f32 0.0, %v717
    %v719 = vpop.f32.mrf.mxu0
    %v720 = vadd.f32 0.0, %v719
    %721 = vmatmul.bf16.gmra.mxu0 %v389
    %v722 = vpop.f32.mrf.mxu0
    %v723 = vadd.f32 0.0, %v722
    %v724 = vpop.f32.mrf.mxu0
    %v725 = vadd.f32 0.0, %v724
    %726 = vmatmul.bf16.gmra.mxu0 %v390
    %v727 = vpop.f32.mrf.mxu0
    %v728 = vadd.f32 0.0, %v727
    %v729 = vpop.f32.mrf.mxu0
    %v730 = vadd.f32 0.0, %v729
    %731 = vmatmul.bf16.gmra.mxu0 %v391
    %v732 = vpop.f32.mrf.mxu0
    %v733 = vadd.f32 0.0, %v732
    %v734 = vpop.f32.mrf.mxu0
    %v735 = vadd.f32 0.0, %v734
    %736 = vmatmul.bf16.gmra.mxu0 %v392
    %v737 = vpop.f32.mrf.mxu0
    %v738 = vadd.f32 0.0, %v737
    %v739 = vpop.f32.mrf.mxu0
    %v740 = vadd.f32 0.0, %v739
    %741 = vmatmul.bf16.gmra.mxu0 %v393
    %v742 = vpop.f32.mrf.mxu0
    %v743 = vadd.f32 0.0, %v742
    %v744 = vpop.f32.mrf.mxu0
    %v745 = vadd.f32 0.0, %v744
    %746 = vmatmul.bf16.gmra.mxu0 %v394
    %v747 = vpop.f32.mrf.mxu0
    %v748 = vadd.f32 0.0, %v747
    %v749 = vpop.f32.mrf.mxu0
    %v750 = vadd.f32 0.0, %v749
    %751 = vmatmul.bf16.gmra.mxu0 %v395
    %v752 = vpop.f32.mrf.mxu0
    %v753 = vadd.f32 0.0, %v752
    %v754 = vpop.f32.mrf.mxu0
    %v755 = vadd.f32 0.0, %v754
    %756 = vdwg.mxu0
    %757 = vmatpush.bf16.msra.mxu0 %v553
    %758 = vmatpush.bf16.msra.mxu0 %v549
    %759 = vmatpush.bf16.msra.mxu0 %v545
    %760 = vmatpush.bf16.msra.mxu0 %v541
    %761 = vmatpush.bf16.msra.mxu0 %v537
    %762 = vmatpush.bf16.msra.mxu0 %v533
    %763 = vmatpush.bf16.msra.mxu0 %v529
    %764 = vmatpush.bf16.msra.mxu0 %v525
    %765 = vmatmul.bf16.gmra.mxu0 %v364
    %v766 = vpop.f32.mrf.mxu0
    %v767 = vadd.f32 0.0, %v766
    %v768 = vpop.f32.mrf.mxu0
    %v769 = vadd.f32 0.0, %v768
    %770 = vmatmul.bf16.gmra.mxu0 %v365
    %v771 = vpop.f32.mrf.mxu0
    %v772 = vadd.f32 0.0, %v771
    %v773 = vpop.f32.mrf.mxu0
    %v774 = vadd.f32 0.0, %v773
    %775 = vmatmul.bf16.gmra.mxu0 %v366
    %v776 = vpop.f32.mrf.mxu0
    %v777 = vadd.f32 0.0, %v776
    %v778 = vpop.f32.mrf.mxu0
    %v779 = vadd.f32 0.0, %v778
    %780 = vmatmul.bf16.gmra.mxu0 %v367
    %v781 = vpop.f32.mrf.mxu0
    %v782 = vadd.f32 0.0, %v781
    %v783 = vpop.f32.mrf.mxu0
    %v784 = vadd.f32 0.0, %v783
    %785 = vmatmul.bf16.gmra.mxu0 %v368
    %v786 = vpop.f32.mrf.mxu0
    %v787 = vadd.f32 0.0, %v786
    %v788 = vpop.f32.mrf.mxu0
    %v789 = vadd.f32 0.0, %v788
    %790 = vmatmul.bf16.gmra.mxu0 %v369
    %v791 = vpop.f32.mrf.mxu0
    %v792 = vadd.f32 0.0, %v791
    %v793 = vpop.f32.mrf.mxu0
    %v794 = vadd.f32 0.0, %v793
    %795 = vmatmul.bf16.gmra.mxu0 %v370
    %v796 = vpop.f32.mrf.mxu0
    %v797 = vadd.f32 0.0, %v796
    %v798 = vpop.f32.mrf.mxu0
    %v799 = vadd.f32 0.0, %v798
    %800 = vmatmul.bf16.gmra.mxu0 %v371
    %v801 = vpop.f32.mrf.mxu0
    %v802 = vadd.f32 0.0, %v801
    %v803 = vpop.f32.mrf.mxu0
    %v804 = vadd.f32 0.0, %v803
    %805 = vmatmul.bf16.gmra.mxu0 %v372
    %v806 = vpop.f32.mrf.mxu0
    %v807 = vadd.f32 0.0, %v806
    %v808 = vpop.f32.mrf.mxu0
    %v809 = vadd.f32 0.0, %v808
    %810 = vmatmul.bf16.gmra.mxu0 %v373
    %v811 = vpop.f32.mrf.mxu0
    %v812 = vadd.f32 0.0, %v811
    %v813 = vpop.f32.mrf.mxu0
    %v814 = vadd.f32 0.0, %v813
    %815 = vmatmul.bf16.gmra.mxu0 %v374
    %v816 = vpop.f32.mrf.mxu0
    %v817 = vadd.f32 0.0, %v816
    %v818 = vpop.f32.mrf.mxu0
    %v819 = vadd.f32 0.0, %v818
    %820 = vmatmul.bf16.gmra.mxu0 %v375
    %v821 = vpop.f32.mrf.mxu0
    %v822 = vadd.f32 0.0, %v821
    %v823 = vpop.f32.mrf.mxu0
    %v824 = vadd.f32 0.0, %v823
    %825 = vmatmul.bf16.gmra.mxu0 %v376
    %v826 = vpop.f32.mrf.mxu0
    %v827 = vadd.f32 0.0, %v826
    %v828 = vpop.f32.mrf.mxu0
    %v829 = vadd.f32 0.0, %v828
    %830 = vmatmul.bf16.gmra.mxu0 %v377
    %v831 = vpop.f32.mrf.mxu0
    %v832 = vadd.f32 0.0, %v831
    %v833 = vpop.f32.mrf.mxu0
    %v834 = vadd.f32 0.0, %v833
    %835 = vmatmul.bf16.gmra.mxu0 %v378
    %v836 = vpop.f32.mrf.mxu0
    %v837 = vadd.f32 0.0, %v836
    %v838 = vpop.f32.mrf.mxu0
    %v839 = vadd.f32 0.0, %v838
    %840 = vmatmul.bf16.gmra.mxu0 %v379
    %v841 = vpop.f32.mrf.mxu0
    %v842 = vadd.f32 0.0, %v841
    %v843 = vpop.f32.mrf.mxu0
    %v844 = vadd.f32 0.0, %v843
    %845 = vmatmul.bf16.gmra.mxu0 %v380
    %v846 = vpop.f32.mrf.mxu0
    %v847 = vadd.f32 0.0, %v846
    %v848 = vpop.f32.mrf.mxu0
    %v849 = vadd.f32 0.0, %v848
    %850 = vmatmul.bf16.gmra.mxu0 %v381
    %v851 = vpop.f32.mrf.mxu0
    %v852 = vadd.f32 0.0, %v851
    %v853 = vpop.f32.mrf.mxu0
    %v854 = vadd.f32 0.0, %v853
    %855 = vmatmul.bf16.gmra.mxu0 %v382
    %v856 = vpop.f32.mrf.mxu0
    %v857 = vadd.f32 0.0, %v856
    %v858 = vpop.f32.mrf.mxu0
    %v859 = vadd.f32 0.0, %v858
    %860 = vmatmul.bf16.gmra.mxu0 %v383
    %v861 = vpop.f32.mrf.mxu0
    %v862 = vadd.f32 0.0, %v861
    %v863 = vpop.f32.mrf.mxu0
    %v864 = vadd.f32 0.0, %v863
    %865 = vmatmul.bf16.gmra.mxu0 %v384
    %v866 = vpop.f32.mrf.mxu0
    %v867 = vadd.f32 0.0, %v866
    %v868 = vpop.f32.mrf.mxu0
    %v869 = vadd.f32 0.0, %v868
    %870 = vmatmul.bf16.gmra.mxu0 %v385
    %v871 = vpop.f32.mrf.mxu0
    %v872 = vadd.f32 0.0, %v871
    %v873 = vpop.f32.mrf.mxu0
    %v874 = vadd.f32 0.0, %v873
    %875 = vmatmul.bf16.gmra.mxu0 %v386
    %v876 = vpop.f32.mrf.mxu0
    %v877 = vadd.f32 0.0, %v876
    %v878 = vpop.f32.mrf.mxu0
    %v879 = vadd.f32 0.0, %v878
    %880 = vmatmul.bf16.gmra.mxu0 %v387
    %v881 = vpop.f32.mrf.mxu0
    %v882 = vadd.f32 0.0, %v881
    %v883 = vpop.f32.mrf.mxu0
    %v884 = vadd.f32 0.0, %v883
    %885 = vmatmul.bf16.gmra.mxu0 %v388
    %v886 = vpop.f32.mrf.mxu0
    %v887 = vadd.f32 0.0, %v886
    %v888 = vpop.f32.mrf.mxu0
    %v889 = vadd.f32 0.0, %v888
    %890 = vmatmul.bf16.gmra.mxu0 %v389
    %v891 = vpop.f32.mrf.mxu0
    %v892 = vadd.f32 0.0, %v891
    %v893 = vpop.f32.mrf.mxu0
    %v894 = vadd.f32 0.0, %v893
    %895 = vmatmul.bf16.gmra.mxu0 %v390
    %v896 = vpop.f32.mrf.mxu0
    %v897 = vadd.f32 0.0, %v896
    %v898 = vpop.f32.mrf.mxu0
    %v899 = vadd.f32 0.0, %v898
    %900 = vmatmul.bf16.gmra.mxu0 %v391
    %v901 = vpop.f32.mrf.mxu0
    %v902 = vadd.f32 0.0, %v901
    %v903 = vpop.f32.mrf.mxu0
    %v904 = vadd.f32 0.0, %v903
    %905 = vmatmul.bf16.gmra.mxu0 %v392
    %v906 = vpop.f32.mrf.mxu0
    %v907 = vadd.f32 0.0, %v906
    %v908 = vpop.f32.mrf.mxu0
    %v909 = vadd.f32 0.0, %v908
    %910 = vmatmul.bf16.gmra.mxu0 %v393
    %v911 = vpop.f32.mrf.mxu0
    %v912 = vadd.f32 0.0, %v911
    %v913 = vpop.f32.mrf.mxu0
    %v914 = vadd.f32 0.0, %v913
    %915 = vmatmul.bf16.gmra.mxu0 %v394
    %v916 = vpop.f32.mrf.mxu0
    %v917 = vadd.f32 0.0, %v916
    %v918 = vpop.f32.mrf.mxu0
    %v919 = vadd.f32 0.0, %v918
    %920 = vmatmul.bf16.gmra.mxu0 %v395
    %v921 = vpop.f32.mrf.mxu0
    %v922 = vadd.f32 0.0, %v921
    %v923 = vpop.f32.mrf.mxu0
    %v924 = vadd.f32 0.0, %v923
    %925 = vdwg.mxu0
    %926 = vmatpush.bf16.msra.mxu0 %v554
    %927 = vmatpush.bf16.msra.mxu0 %v550
    %928 = vmatpush.bf16.msra.mxu0 %v546
    %929 = vmatpush.bf16.msra.mxu0 %v542
    %930 = vmatpush.bf16.msra.mxu0 %v538
    %931 = vmatpush.bf16.msra.mxu0 %v534
    %932 = vmatpush.bf16.msra.mxu0 %v530
    %933 = vmatpush.bf16.msra.mxu0 %v526
    %934 = vmatmul.bf16.gmra.mxu0 %v364
    %v935 = vpop.f32.mrf.mxu0
    %v936 = vadd.f32 0.0, %v935
    %v937 = vpop.f32.mrf.mxu0
    %v938 = vadd.f32 0.0, %v937
    %939 = vmatmul.bf16.gmra.mxu0 %v365
    %v940 = vpop.f32.mrf.mxu0
    %v941 = vadd.f32 0.0, %v940
    %v942 = vpop.f32.mrf.mxu0
    %v943 = vadd.f32 0.0, %v942
    %944 = vmatmul.bf16.gmra.mxu0 %v366
    %v945 = vpop.f32.mrf.mxu0
    %v946 = vadd.f32 0.0, %v945
    %v947 = vpop.f32.mrf.mxu0
    %v948 = vadd.f32 0.0, %v947
    %949 = vmatmul.bf16.gmra.mxu0 %v367
    %v950 = vpop.f32.mrf.mxu0
    %v951 = vadd.f32 0.0, %v950
    %v952 = vpop.f32.mrf.mxu0
    %v953 = vadd.f32 0.0, %v952
    %954 = vmatmul.bf16.gmra.mxu0 %v368
    %v955 = vpop.f32.mrf.mxu0
    %v956 = vadd.f32 0.0, %v955
    %v957 = vpop.f32.mrf.mxu0
    %v958 = vadd.f32 0.0, %v957
    %959 = vmatmul.bf16.gmra.mxu0 %v369
    %v960 = vpop.f32.mrf.mxu0
    %v961 = vadd.f32 0.0, %v960
    %v962 = vpop.f32.mrf.mxu0
    %v963 = vadd.f32 0.0, %v962
    %964 = vmatmul.bf16.gmra.mxu0 %v370
    %v965 = vpop.f32.mrf.mxu0
    %v966 = vadd.f32 0.0, %v965
    %v967 = vpop.f32.mrf.mxu0
    %v968 = vadd.f32 0.0, %v967
    %969 = vmatmul.bf16.gmra.mxu0 %v371
    %v970 = vpop.f32.mrf.mxu0
    %v971 = vadd.f32 0.0, %v970
    %v972 = vpop.f32.mrf.mxu0
    %v973 = vadd.f32 0.0, %v972
    %974 = vmatmul.bf16.gmra.mxu0 %v372
    %v975 = vpop.f32.mrf.mxu0
    %v976 = vadd.f32 0.0, %v975
    %v977 = vpop.f32.mrf.mxu0
    %v978 = vadd.f32 0.0, %v977
    %979 = vmatmul.bf16.gmra.mxu0 %v373
    %v980 = vpop.f32.mrf.mxu0
    %v981 = vadd.f32 0.0, %v980
    %v982 = vpop.f32.mrf.mxu0
    %v983 = vadd.f32 0.0, %v982
    %984 = vmatmul.bf16.gmra.mxu0 %v374
    %v985 = vpop.f32.mrf.mxu0
    %v986 = vadd.f32 0.0, %v985
    %v987 = vpop.f32.mrf.mxu0
    %v988 = vadd.f32 0.0, %v987
    %989 = vmatmul.bf16.gmra.mxu0 %v375
    %v990 = vpop.f32.mrf.mxu0
    %v991 = vadd.f32 0.0, %v990
    %v992 = vpop.f32.mrf.mxu0
    %v993 = vadd.f32 0.0, %v992
    %994 = vmatmul.bf16.gmra.mxu0 %v376
    %v995 = vpop.f32.mrf.mxu0
    %v996 = vadd.f32 0.0, %v995
    %v997 = vpop.f32.mrf.mxu0
    %v998 = vadd.f32 0.0, %v997
    %999 = vmatmul.bf16.gmra.mxu0 %v377
    %v1000 = vpop.f32.mrf.mxu0
    %v1001 = vadd.f32 0.0, %v1000
    %v1002 = vpop.f32.mrf.mxu0
    %v1003 = vadd.f32 0.0, %v1002
    %1004 = vmatmul.bf16.gmra.mxu0 %v378
    %v1005 = vpop.f32.mrf.mxu0
    %v1006 = vadd.f32 0.0, %v1005
    %v1007 = vpop.f32.mrf.mxu0
    %v1008 = vadd.f32 0.0, %v1007
    %1009 = vmatmul.bf16.gmra.mxu0 %v379
    %v1010 = vpop.f32.mrf.mxu0
    %v1011 = vadd.f32 0.0, %v1010
    %v1012 = vpop.f32.mrf.mxu0
    %v1013 = vadd.f32 0.0, %v1012
    %1014 = vmatmul.bf16.gmra.mxu0 %v380
    %v1015 = vpop.f32.mrf.mxu0
    %v1016 = vadd.f32 0.0, %v1015
    %v1017 = vpop.f32.mrf.mxu0
    %v1018 = vadd.f32 0.0, %v1017
    %1019 = vmatmul.bf16.gmra.mxu0 %v381
    %v1020 = vpop.f32.mrf.mxu0
    %v1021 = vadd.f32 0.0, %v1020
    %v1022 = vpop.f32.mrf.mxu0
    %v1023 = vadd.f32 0.0, %v1022
    %1024 = vmatmul.bf16.gmra.mxu0 %v382
    %v1025 = vpop.f32.mrf.mxu0
    %v1026 = vadd.f32 0.0, %v1025
    %v1027 = vpop.f32.mrf.mxu0
    %v1028 = vadd.f32 0.0, %v1027
    %1029 = vmatmul.bf16.gmra.mxu0 %v383
    %v1030 = vpop.f32.mrf.mxu0
    %v1031 = vadd.f32 0.0, %v1030
    %v1032 = vpop.f32.mrf.mxu0
    %v1033 = vadd.f32 0.0, %v1032
    %1034 = vmatmul.bf16.gmra.mxu0 %v384
    %v1035 = vpop.f32.mrf.mxu0
    %v1036 = vadd.f32 0.0, %v1035
    %v1037 = vpop.f32.mrf.mxu0
    %v1038 = vadd.f32 0.0, %v1037
    %1039 = vmatmul.bf16.gmra.mxu0 %v385
    %v1040 = vpop.f32.mrf.mxu0
    %v1041 = vadd.f32 0.0, %v1040
    %v1042 = vpop.f32.mrf.mxu0
    %v1043 = vadd.f32 0.0, %v1042
    %1044 = vmatmul.bf16.gmra.mxu0 %v386
    %v1045 = vpop.f32.mrf.mxu0
    %v1046 = vadd.f32 0.0, %v1045
    %v1047 = vpop.f32.mrf.mxu0
    %v1048 = vadd.f32 0.0, %v1047
    %1049 = vmatmul.bf16.gmra.mxu0 %v387
    %v1050 = vpop.f32.mrf.mxu0
    %v1051 = vadd.f32 0.0, %v1050
    %v1052 = vpop.f32.mrf.mxu0
    %v1053 = vadd.f32 0.0, %v1052
    %1054 = vmatmul.bf16.gmra.mxu0 %v388
    %v1055 = vpop.f32.mrf.mxu0
    %v1056 = vadd.f32 0.0, %v1055
    %v1057 = vpop.f32.mrf.mxu0
    %v1058 = vadd.f32 0.0, %v1057
    %1059 = vmatmul.bf16.gmra.mxu0 %v389
    %v1060 = vpop.f32.mrf.mxu0
    %v1061 = vadd.f32 0.0, %v1060
    %v1062 = vpop.f32.mrf.mxu0
    %v1063 = vadd.f32 0.0, %v1062
    %1064 = vmatmul.bf16.gmra.mxu0 %v390
    %v1065 = vpop.f32.mrf.mxu0
    %v1066 = vadd.f32 0.0, %v1065
    %v1067 = vpop.f32.mrf.mxu0
    %v1068 = vadd.f32 0.0, %v1067
    %1069 = vmatmul.bf16.gmra.mxu0 %v391
    %v1070 = vpop.f32.mrf.mxu0
    %v1071 = vadd.f32 0.0, %v1070
    %v1072 = vpop.f32.mrf.mxu0
    %v1073 = vadd.f32 0.0, %v1072
    %1074 = vmatmul.bf16.gmra.mxu0 %v392
    %v1075 = vpop.f32.mrf.mxu0
    %v1076 = vadd.f32 0.0, %v1075
    %v1077 = vpop.f32.mrf.mxu0
    %v1078 = vadd.f32 0.0, %v1077
    %1079 = vmatmul.bf16.gmra.mxu0 %v393
    %v1080 = vpop.f32.mrf.mxu0
    %v1081 = vadd.f32 0.0, %v1080
    %v1082 = vpop.f32.mrf.mxu0
    %v1083 = vadd.f32 0.0, %v1082
    %1084 = vmatmul.bf16.gmra.mxu0 %v394
    %v1085 = vpop.f32.mrf.mxu0
    %v1086 = vadd.f32 0.0, %v1085
    %v1087 = vpop.f32.mrf.mxu0
    %v1088 = vadd.f32 0.0, %v1087
    %1089 = vmatmul.bf16.gmra.mxu0 %v395
    %v1090 = vpop.f32.mrf.mxu0
    %v1091 = vadd.f32 0.0, %v1090
    %v1092 = vpop.f32.mrf.mxu0
    %v1093 = vadd.f32 0.0, %v1092
    %1094 = vdwg.mxu0
    %1095 = vmatpush.bf16.msra.mxu0 %v555
    %1096 = vmatpush.bf16.msra.mxu0 %v551
    %1097 = vmatpush.bf16.msra.mxu0 %v547
    %1098 = vmatpush.bf16.msra.mxu0 %v543
    %1099 = vmatpush.bf16.msra.mxu0 %v539
    %1100 = vmatpush.bf16.msra.mxu0 %v535
    %1101 = vmatpush.bf16.msra.mxu0 %v531
    %1102 = vmatpush.bf16.msra.mxu0 %v527
    %1103 = vmatmul.bf16.gmra.mxu0 %v364
    %v1104 = vpop.f32.mrf.mxu0
    %v1105 = vadd.f32 0.0, %v1104
    %v1106 = vpop.f32.mrf.mxu0
    %v1107 = vadd.f32 0.0, %v1106
    %1108 = vmatmul.bf16.gmra.mxu0 %v365
    %v1109 = vpop.f32.mrf.mxu0
    %v1110 = vadd.f32 0.0, %v1109
    %v1111 = vpop.f32.mrf.mxu0
    %v1112 = vadd.f32 0.0, %v1111
    %1113 = vmatmul.bf16.gmra.mxu0 %v366
    %v1114 = vpop.f32.mrf.mxu0
    %v1115 = vadd.f32 0.0, %v1114
    %v1116 = vpop.f32.mrf.mxu0
    %v1117 = vadd.f32 0.0, %v1116
    %1118 = vmatmul.bf16.gmra.mxu0 %v367
    %v1119 = vpop.f32.mrf.mxu0
    %v1120 = vadd.f32 0.0, %v1119
    %v1121 = vpop.f32.mrf.mxu0
    %v1122 = vadd.f32 0.0, %v1121
    %1123 = vmatmul.bf16.gmra.mxu0 %v368
    %v1124 = vpop.f32.mrf.mxu0
    %v1125 = vadd.f32 0.0, %v1124
    %v1126 = vpop.f32.mrf.mxu0
    %v1127 = vadd.f32 0.0, %v1126
    %1128 = vmatmul.bf16.gmra.mxu0 %v369
    %v1129 = vpop.f32.mrf.mxu0
    %v1130 = vadd.f32 0.0, %v1129
    %v1131 = vpop.f32.mrf.mxu0
    %v1132 = vadd.f32 0.0, %v1131
    %1133 = vmatmul.bf16.gmra.mxu0 %v370
    %v1134 = vpop.f32.mrf.mxu0
    %v1135 = vadd.f32 0.0, %v1134
    %v1136 = vpop.f32.mrf.mxu0
    %v1137 = vadd.f32 0.0, %v1136
    %1138 = vmatmul.bf16.gmra.mxu0 %v371
    %v1139 = vpop.f32.mrf.mxu0
    %v1140 = vadd.f32 0.0, %v1139
    %v1141 = vpop.f32.mrf.mxu0
    %v1142 = vadd.f32 0.0, %v1141
    %1143 = vmatmul.bf16.gmra.mxu0 %v372
    %v1144 = vpop.f32.mrf.mxu0
    %v1145 = vadd.f32 0.0, %v1144
    %v1146 = vpop.f32.mrf.mxu0
    %v1147 = vadd.f32 0.0, %v1146
    %1148 = vmatmul.bf16.gmra.mxu0 %v373
    %v1149 = vpop.f32.mrf.mxu0
    %v1150 = vadd.f32 0.0, %v1149
    %v1151 = vpop.f32.mrf.mxu0
    %v1152 = vadd.f32 0.0, %v1151
    %1153 = vmatmul.bf16.gmra.mxu0 %v374
    %v1154 = vpop.f32.mrf.mxu0
    %v1155 = vadd.f32 0.0, %v1154
    %v1156 = vpop.f32.mrf.mxu0
    %v1157 = vadd.f32 0.0, %v1156
    %1158 = vmatmul.bf16.gmra.mxu0 %v375
    %v1159 = vpop.f32.mrf.mxu0
    %v1160 = vadd.f32 0.0, %v1159
    %v1161 = vpop.f32.mrf.mxu0
    %v1162 = vadd.f32 0.0, %v1161
    %1163 = vmatmul.bf16.gmra.mxu0 %v376
    %v1164 = vpop.f32.mrf.mxu0
    %v1165 = vadd.f32 0.0, %v1164
    %v1166 = vpop.f32.mrf.mxu0
    %v1167 = vadd.f32 0.0, %v1166
    %1168 = vmatmul.bf16.gmra.mxu0 %v377
    %v1169 = vpop.f32.mrf.mxu0
    %v1170 = vadd.f32 0.0, %v1169
    %v1171 = vpop.f32.mrf.mxu0
    %v1172 = vadd.f32 0.0, %v1171
    %1173 = vmatmul.bf16.gmra.mxu0 %v378
    %v1174 = vpop.f32.mrf.mxu0
    %v1175 = vadd.f32 0.0, %v1174
    %v1176 = vpop.f32.mrf.mxu0
    %v1177 = vadd.f32 0.0, %v1176
    %1178 = vmatmul.bf16.gmra.mxu0 %v379
    %v1179 = vpop.f32.mrf.mxu0
    %v1180 = vadd.f32 0.0, %v1179
    %v1181 = vpop.f32.mrf.mxu0
    %v1182 = vadd.f32 0.0, %v1181
    %1183 = vmatmul.bf16.gmra.mxu0 %v380
    %v1184 = vpop.f32.mrf.mxu0
    %v1185 = vadd.f32 0.0, %v1184
    %v1186 = vpop.f32.mrf.mxu0
    %v1187 = vadd.f32 0.0, %v1186
    %1188 = vmatmul.bf16.gmra.mxu0 %v381
    %v1189 = vpop.f32.mrf.mxu0
    %v1190 = vadd.f32 0.0, %v1189
    %v1191 = vpop.f32.mrf.mxu0
    %v1192 = vadd.f32 0.0, %v1191
    %1193 = vmatmul.bf16.gmra.mxu0 %v382
    %v1194 = vpop.f32.mrf.mxu0
    %v1195 = vadd.f32 0.0, %v1194
    %v1196 = vpop.f32.mrf.mxu0
    %v1197 = vadd.f32 0.0, %v1196
    %1198 = vmatmul.bf16.gmra.mxu0 %v383
    %v1199 = vpop.f32.mrf.mxu0
    %v1200 = vadd.f32 0.0, %v1199
    %v1201 = vpop.f32.mrf.mxu0
    %v1202 = vadd.f32 0.0, %v1201
    %1203 = vmatmul.bf16.gmra.mxu0 %v384
    %v1204 = vpop.f32.mrf.mxu0
    %v1205 = vadd.f32 0.0, %v1204
    %v1206 = vpop.f32.mrf.mxu0
    %v1207 = vadd.f32 0.0, %v1206
    %1208 = vmatmul.bf16.gmra.mxu0 %v385
    %v1209 = vpop.f32.mrf.mxu0
    %v1210 = vadd.f32 0.0, %v1209
    %v1211 = vpop.f32.mrf.mxu0
    %v1212 = vadd.f32 0.0, %v1211
    %1213 = vmatmul.bf16.gmra.mxu0 %v386
    %v1214 = vpop.f32.mrf.mxu0
    %v1215 = vadd.f32 0.0, %v1214
    %v1216 = vpop.f32.mrf.mxu0
    %v1217 = vadd.f32 0.0, %v1216
    %1218 = vmatmul.bf16.gmra.mxu0 %v387
    %v1219 = vpop.f32.mrf.mxu0
    %v1220 = vadd.f32 0.0, %v1219
    %v1221 = vpop.f32.mrf.mxu0
    %v1222 = vadd.f32 0.0, %v1221
    %1223 = vmatmul.bf16.gmra.mxu0 %v388
    %v1224 = vpop.f32.mrf.mxu0
    %v1225 = vadd.f32 0.0, %v1224
    %v1226 = vpop.f32.mrf.mxu0
    %v1227 = vadd.f32 0.0, %v1226
    %1228 = vmatmul.bf16.gmra.mxu0 %v389
    %v1229 = vpop.f32.mrf.mxu0
    %v1230 = vadd.f32 0.0, %v1229
    %v1231 = vpop.f32.mrf.mxu0
    %v1232 = vadd.f32 0.0, %v1231
    %1233 = vmatmul.bf16.gmra.mxu0 %v390
    %v1234 = vpop.f32.mrf.mxu0
    %v1235 = vadd.f32 0.0, %v1234
    %v1236 = vpop.f32.mrf.mxu0
    %v1237 = vadd.f32 0.0, %v1236
    %1238 = vmatmul.bf16.gmra.mxu0 %v391
    %v1239 = vpop.f32.mrf.mxu0
    %v1240 = vadd.f32 0.0, %v1239
    %v1241 = vpop.f32.mrf.mxu0
    %v1242 = vadd.f32 0.0, %v1241
    %1243 = vmatmul.bf16.gmra.mxu0 %v392
    %v1244 = vpop.f32.mrf.mxu0
    %v1245 = vadd.f32 0.0, %v1244
    %v1246 = vpop.f32.mrf.mxu0
    %v1247 = vadd.f32 0.0, %v1246
    %1248 = vmatmul.bf16.gmra.mxu0 %v393
    %v1249 = vpop.f32.mrf.mxu0
    %v1250 = vadd.f32 0.0, %v1249
    %v1251 = vpop.f32.mrf.mxu0
    %v1252 = vadd.f32 0.0, %v1251
    %1253 = vmatmul.bf16.gmra.mxu0 %v394
    %v1254 = vpop.f32.mrf.mxu0
    %v1255 = vadd.f32 0.0, %v1254
    %v1256 = vpop.f32.mrf.mxu0
    %v1257 = vadd.f32 0.0, %v1256
    %1258 = vmatmul.bf16.gmra.mxu0 %v395
    %v1259 = vpop.f32.mrf.mxu0
    %v1260 = vadd.f32 0.0, %v1259
    %v1261 = vpop.f32.mrf.mxu0
    %v1262 = vadd.f32 0.0, %v1261
    %1263 = vdwg.mxu0
    %v1264 = vmax.f32 %v598, 0.0
    %v1265 = vmax.f32 %v767, 0.0
    %v1266 = vmax.f32 %v936, 0.0
    %v1267 = vmax.f32 %v1105, 0.0
    %v1268 = vmax.f32 %v600, 0.0
    %v1269 = vmax.f32 %v769, 0.0
    %v1270 = vmax.f32 %v938, 0.0
    %v1271 = vmax.f32 %v1107, 0.0
    %v1272 = vmax.f32 %v603, 0.0
    %v1273 = vmax.f32 %v772, 0.0
    %v1274 = vmax.f32 %v941, 0.0
    %v1275 = vmax.f32 %v1110, 0.0
    %v1276 = vmax.f32 %v605, 0.0
    %v1277 = vmax.f32 %v774, 0.0
    %v1278 = vmax.f32 %v943, 0.0
    %v1279 = vmax.f32 %v1112, 0.0
    %v1280 = vmax.f32 %v608, 0.0
    %v1281 = vmax.f32 %v777, 0.0
    %v1282 = vmax.f32 %v946, 0.0
    %v1283 = vmax.f32 %v1115, 0.0
    %v1284 = vmax.f32 %v610, 0.0
    %v1285 = vmax.f32 %v779, 0.0
    %v1286 = vmax.f32 %v948, 0.0
    %v1287 = vmax.f32 %v1117, 0.0
    %v1288 = vmax.f32 %v613, 0.0
    %v1289 = vmax.f32 %v782, 0.0
    %v1290 = vmax.f32 %v951, 0.0
    %v1291 = vmax.f32 %v1120, 0.0
    %v1292 = vmax.f32 %v615, 0.0
    %v1293 = vmax.f32 %v784, 0.0
    %v1294 = vmax.f32 %v953, 0.0
    %v1295 = vmax.f32 %v1122, 0.0
    %v1296 = vmax.f32 %v618, 0.0
    %v1297 = vmax.f32 %v787, 0.0
    %v1298 = vmax.f32 %v956, 0.0
    %v1299 = vmax.f32 %v1125, 0.0
    %v1300 = vmax.f32 %v620, 0.0
    %v1301 = vmax.f32 %v789, 0.0
    %v1302 = vmax.f32 %v958, 0.0
    %v1303 = vmax.f32 %v1127, 0.0
    %v1304 = vmax.f32 %v623, 0.0
    %v1305 = vmax.f32 %v792, 0.0
    %v1306 = vmax.f32 %v961, 0.0
    %v1307 = vmax.f32 %v1130, 0.0
    %v1308 = vmax.f32 %v625, 0.0
    %v1309 = vmax.f32 %v794, 0.0
    %v1310 = vmax.f32 %v963, 0.0
    %v1311 = vmax.f32 %v1132, 0.0
    %v1312 = vmax.f32 %v628, 0.0
    %v1313 = vmax.f32 %v797, 0.0
    %v1314 = vmax.f32 %v966, 0.0
    %v1315 = vmax.f32 %v1135, 0.0
    %v1316 = vmax.f32 %v630, 0.0
    %v1317 = vmax.f32 %v799, 0.0
    %v1318 = vmax.f32 %v968, 0.0
    %v1319 = vmax.f32 %v1137, 0.0
    %v1320 = vmax.f32 %v633, 0.0
    %v1321 = vmax.f32 %v802, 0.0
    %v1322 = vmax.f32 %v971, 0.0
    %v1323 = vmax.f32 %v1140, 0.0
    %v1324 = vmax.f32 %v635, 0.0
    %v1325 = vmax.f32 %v804, 0.0
    %v1326 = vmax.f32 %v973, 0.0
    %v1327 = vmax.f32 %v1142, 0.0
    %v1328 = vmax.f32 %v638, 0.0
    %v1329 = vmax.f32 %v807, 0.0
    %v1330 = vmax.f32 %v976, 0.0
    %v1331 = vmax.f32 %v1145, 0.0
    %v1332 = vmax.f32 %v640, 0.0
    %v1333 = vmax.f32 %v809, 0.0
    %v1334 = vmax.f32 %v978, 0.0
    %v1335 = vmax.f32 %v1147, 0.0
    %v1336 = vmax.f32 %v643, 0.0
    %v1337 = vmax.f32 %v812, 0.0
    %v1338 = vmax.f32 %v981, 0.0
    %v1339 = vmax.f32 %v1150, 0.0
    %v1340 = vmax.f32 %v645, 0.0
    %v1341 = vmax.f32 %v814, 0.0
    %v1342 = vmax.f32 %v983, 0.0
    %v1343 = vmax.f32 %v1152, 0.0
    %v1344 = vmax.f32 %v648, 0.0
    %v1345 = vmax.f32 %v817, 0.0
    %v1346 = vmax.f32 %v986, 0.0
    %v1347 = vmax.f32 %v1155, 0.0
    %v1348 = vmax.f32 %v650, 0.0
    %v1349 = vmax.f32 %v819, 0.0
    %v1350 = vmax.f32 %v988, 0.0
    %v1351 = vmax.f32 %v1157, 0.0
    %v1352 = vmax.f32 %v653, 0.0
    %v1353 = vmax.f32 %v822, 0.0
    %v1354 = vmax.f32 %v991, 0.0
    %v1355 = vmax.f32 %v1160, 0.0
    %v1356 = vmax.f32 %v655, 0.0
    %v1357 = vmax.f32 %v824, 0.0
    %v1358 = vmax.f32 %v993, 0.0
    %v1359 = vmax.f32 %v1162, 0.0
    %v1360 = vmax.f32 %v658, 0.0
    %v1361 = vmax.f32 %v827, 0.0
    %v1362 = vmax.f32 %v996, 0.0
    %v1363 = vmax.f32 %v1165, 0.0
    %v1364 = vmax.f32 %v660, 0.0
    %v1365 = vmax.f32 %v829, 0.0
    %v1366 = vmax.f32 %v998, 0.0
    %v1367 = vmax.f32 %v1167, 0.0
    %v1368 = vmax.f32 %v663, 0.0
    %v1369 = vmax.f32 %v832, 0.0
    %v1370 = vmax.f32 %v1001, 0.0
    %v1371 = vmax.f32 %v1170, 0.0
    %v1372 = vmax.f32 %v665, 0.0
    %v1373 = vmax.f32 %v834, 0.0
    %v1374 = vmax.f32 %v1003, 0.0
    %v1375 = vmax.f32 %v1172, 0.0
    %v1376 = vmax.f32 %v668, 0.0
    %v1377 = vmax.f32 %v837, 0.0
    %v1378 = vmax.f32 %v1006, 0.0
    %v1379 = vmax.f32 %v1175, 0.0
    %v1380 = vmax.f32 %v670, 0.0
    %v1381 = vmax.f32 %v839, 0.0
    %v1382 = vmax.f32 %v1008, 0.0
    %v1383 = vmax.f32 %v1177, 0.0
    %v1384 = vmax.f32 %v673, 0.0
    %v1385 = vmax.f32 %v842, 0.0
    %v1386 = vmax.f32 %v1011, 0.0
    %v1387 = vmax.f32 %v1180, 0.0
    %v1388 = vmax.f32 %v675, 0.0
    %v1389 = vmax.f32 %v844, 0.0
    %v1390 = vmax.f32 %v1013, 0.0
    %v1391 = vmax.f32 %v1182, 0.0
    %v1392 = vmax.f32 %v678, 0.0
    %v1393 = vmax.f32 %v847, 0.0
    %v1394 = vmax.f32 %v1016, 0.0
    %v1395 = vmax.f32 %v1185, 0.0
    %v1396 = vmax.f32 %v680, 0.0
    %v1397 = vmax.f32 %v849, 0.0
    %v1398 = vmax.f32 %v1018, 0.0
    %v1399 = vmax.f32 %v1187, 0.0
    %v1400 = vmax.f32 %v683, 0.0
    %v1401 = vmax.f32 %v852, 0.0
    %v1402 = vmax.f32 %v1021, 0.0
    %v1403 = vmax.f32 %v1190, 0.0
    %v1404 = vmax.f32 %v685, 0.0
    %v1405 = vmax.f32 %v854, 0.0
    %v1406 = vmax.f32 %v1023, 0.0
    %v1407 = vmax.f32 %v1192, 0.0
    %v1408 = vmax.f32 %v688, 0.0
    %v1409 = vmax.f32 %v857, 0.0
    %v1410 = vmax.f32 %v1026, 0.0
    %v1411 = vmax.f32 %v1195, 0.0
    %v1412 = vmax.f32 %v690, 0.0
    %v1413 = vmax.f32 %v859, 0.0
    %v1414 = vmax.f32 %v1028, 0.0
    %v1415 = vmax.f32 %v1197, 0.0
    %v1416 = vmax.f32 %v693, 0.0
    %v1417 = vmax.f32 %v862, 0.0
    %v1418 = vmax.f32 %v1031, 0.0
    %v1419 = vmax.f32 %v1200, 0.0
    %v1420 = vmax.f32 %v695, 0.0
    %v1421 = vmax.f32 %v864, 0.0
    %v1422 = vmax.f32 %v1033, 0.0
    %v1423 = vmax.f32 %v1202, 0.0
    %v1424 = vmax.f32 %v698, 0.0
    %v1425 = vmax.f32 %v867, 0.0
    %v1426 = vmax.f32 %v1036, 0.0
    %v1427 = vmax.f32 %v1205, 0.0
    %v1428 = vmax.f32 %v700, 0.0
    %v1429 = vmax.f32 %v869, 0.0
    %v1430 = vmax.f32 %v1038, 0.0
    %v1431 = vmax.f32 %v1207, 0.0
    %v1432 = vmax.f32 %v703, 0.0
    %v1433 = vmax.f32 %v872, 0.0
    %v1434 = vmax.f32 %v1041, 0.0
    %v1435 = vmax.f32 %v1210, 0.0
    %v1436 = vmax.f32 %v705, 0.0
    %v1437 = vmax.f32 %v874, 0.0
    %v1438 = vmax.f32 %v1043, 0.0
    %v1439 = vmax.f32 %v1212, 0.0
    %v1440 = vmax.f32 %v708, 0.0
    %v1441 = vmax.f32 %v877, 0.0
    %v1442 = vmax.f32 %v1046, 0.0
    %v1443 = vmax.f32 %v1215, 0.0
    %v1444 = vmax.f32 %v710, 0.0
    %v1445 = vmax.f32 %v879, 0.0
    %v1446 = vmax.f32 %v1048, 0.0
    %v1447 = vmax.f32 %v1217, 0.0
    %v1448 = vmax.f32 %v713, 0.0
    %v1449 = vmax.f32 %v882, 0.0
    %v1450 = vmax.f32 %v1051, 0.0
    %v1451 = vmax.f32 %v1220, 0.0
    %v1452 = vmax.f32 %v715, 0.0
    %v1453 = vmax.f32 %v884, 0.0
    %v1454 = vmax.f32 %v1053, 0.0
    %v1455 = vmax.f32 %v1222, 0.0
    %v1456 = vmax.f32 %v718, 0.0
    %v1457 = vmax.f32 %v887, 0.0
    %v1458 = vmax.f32 %v1056, 0.0
    %v1459 = vmax.f32 %v1225, 0.0
    %v1460 = vmax.f32 %v720, 0.0
    %v1461 = vmax.f32 %v889, 0.0
    %v1462 = vmax.f32 %v1058, 0.0
    %v1463 = vmax.f32 %v1227, 0.0
    %v1464 = vmax.f32 %v723, 0.0
    %v1465 = vmax.f32 %v892, 0.0
    %v1466 = vmax.f32 %v1061, 0.0
    %v1467 = vmax.f32 %v1230, 0.0
    %v1468 = vmax.f32 %v725, 0.0
    %v1469 = vmax.f32 %v894, 0.0
    %v1470 = vmax.f32 %v1063, 0.0
    %v1471 = vmax.f32 %v1232, 0.0
    %v1472 = vmax.f32 %v728, 0.0
    %v1473 = vmax.f32 %v897, 0.0
    %v1474 = vmax.f32 %v1066, 0.0
    %v1475 = vmax.f32 %v1235, 0.0
    %v1476 = vmax.f32 %v730, 0.0
    %v1477 = vmax.f32 %v899, 0.0
    %v1478 = vmax.f32 %v1068, 0.0
    %v1479 = vmax.f32 %v1237, 0.0
    %v1480 = vmax.f32 %v733, 0.0
    %v1481 = vmax.f32 %v902, 0.0
    %v1482 = vmax.f32 %v1071, 0.0
    %v1483 = vmax.f32 %v1240, 0.0
    %v1484 = vmax.f32 %v735, 0.0
    %v1485 = vmax.f32 %v904, 0.0
    %v1486 = vmax.f32 %v1073, 0.0
    %v1487 = vmax.f32 %v1242, 0.0
    %v1488 = vmax.f32 %v738, 0.0
    %v1489 = vmax.f32 %v907, 0.0
    %v1490 = vmax.f32 %v1076, 0.0
    %v1491 = vmax.f32 %v1245, 0.0
    %v1492 = vmax.f32 %v740, 0.0
    %v1493 = vmax.f32 %v909, 0.0
    %v1494 = vmax.f32 %v1078, 0.0
    %v1495 = vmax.f32 %v1247, 0.0
    %v1496 = vmax.f32 %v743, 0.0
    %v1497 = vmax.f32 %v912, 0.0
    %v1498 = vmax.f32 %v1081, 0.0
    %v1499 = vmax.f32 %v1250, 0.0
    %v1500 = vmax.f32 %v745, 0.0
    %v1501 = vmax.f32 %v914, 0.0
    %v1502 = vmax.f32 %v1083, 0.0
    %v1503 = vmax.f32 %v1252, 0.0
    %v1504 = vmax.f32 %v748, 0.0
    %v1505 = vmax.f32 %v917, 0.0
    %v1506 = vmax.f32 %v1086, 0.0
    %v1507 = vmax.f32 %v1255, 0.0
    %v1508 = vmax.f32 %v750, 0.0
    %v1509 = vmax.f32 %v919, 0.0
    %v1510 = vmax.f32 %v1088, 0.0
    %v1511 = vmax.f32 %v1257, 0.0
    %v1512 = vmax.f32 %v753, 0.0
    %v1513 = vmax.f32 %v922, 0.0
    %v1514 = vmax.f32 %v1091, 0.0
    %v1515 = vmax.f32 %v1260, 0.0
    %v1516 = vmax.f32 %v755, 0.0
    %v1517 = vmax.f32 %v924, 0.0
    %v1518 = vmax.f32 %v1093, 0.0
    %v1519 = vmax.f32 %v1262, 0.0
    %1520 = vst [vmem:[#allocation8] sm:$0xff] %v1264
    %1521 = vst [vmem:[#allocation8 + $0x8] sm:$0xff] %v1265
    %1522 = vst [vmem:[#allocation8 + $0x10] sm:$0xff] %v1266
    %1523 = vst [vmem:[#allocation8 + $0x18] sm:$0xff] %v1267
    %1524 = vst [vmem:[#allocation8 + $0x20] sm:$0xff] %v1268
    %1525 = vst [vmem:[#allocation8 + $0x28] sm:$0xff] %v1269
    %1526 = vst [vmem:[#allocation8 + $0x30] sm:$0xff] %v1270
    %1527 = vst [vmem:[#allocation8 + $0x38] sm:$0xff] %v1271
    %1528 = vst [vmem:[#allocation8 + $0x40] sm:$0xff] %v1272
    %1529 = vst [vmem:[#allocation8 + $0x48] sm:$0xff] %v1273
    %1530 = vst [vmem:[#allocation8 + $0x50] sm:$0xff] %v1274
    %1531 = vst [vmem:[#allocation8 + $0x58] sm:$0xff] %v1275
    %1532 = vst [vmem:[#allocation8 + $0x60] sm:$0xff] %v1276
    %1533 = vst [vmem:[#allocation8 + $0x68] sm:$0xff] %v1277
    %1534 = vst [vmem:[#allocation8 + $0x70] sm:$0xff] %v1278
    %1535 = vst [vmem:[#allocation8 + $0x78] sm:$0xff] %v1279
    %1536 = vst [vmem:[#allocation8 + $0x80] sm:$0xff] %v1280
    %1537 = vst [vmem:[#allocation8 + $0x88] sm:$0xff] %v1281
    %1538 = vst [vmem:[#allocation8 + $0x90] sm:$0xff] %v1282
    %1539 = vst [vmem:[#allocation8 + $0x98] sm:$0xff] %v1283
    %1540 = vst [vmem:[#allocation8 + $0xa0] sm:$0xff] %v1284
    %1541 = vst [vmem:[#allocation8 + $0xa8] sm:$0xff] %v1285
    %1542 = vst [vmem:[#allocation8 + $0xb0] sm:$0xff] %v1286
    %1543 = vst [vmem:[#allocation8 + $0xb8] sm:$0xff] %v1287
    %1544 = vst [vmem:[#allocation8 + $0xc0] sm:$0xff] %v1288
    %1545 = vst [vmem:[#allocation8 + $0xc8] sm:$0xff] %v1289
    %1546 = vst [vmem:[#allocation8 + $0xd0] sm:$0xff] %v1290
    %1547 = vst [vmem:[#allocation8 + $0xd8] sm:$0xff] %v1291
    %1548 = vst [vmem:[#allocation8 + $0xe0] sm:$0xff] %v1292
    %1549 = vst [vmem:[#allocation8 + $0xe8] sm:$0xff] %v1293
    %1550 = vst [vmem:[#allocation8 + $0xf0] sm:$0xff] %v1294
    %1551 = vst [vmem:[#allocation8 + $0xf8] sm:$0xff] %v1295
    %1552 = vst [vmem:[#allocation8 + $0x100] sm:$0xff] %v1296
    %1553 = vst [vmem:[#allocation8 + $0x108] sm:$0xff] %v1297
    %1554 = vst [vmem:[#allocation8 + $0x110] sm:$0xff] %v1298
    %1555 = vst [vmem:[#allocation8 + $0x118] sm:$0xff] %v1299
    %1556 = vst [vmem:[#allocation8 + $0x120] sm:$0xff] %v1300
    %1557 = vst [vmem:[#allocation8 + $0x128] sm:$0xff] %v1301
    %1558 = vst [vmem:[#allocation8 + $0x130] sm:$0xff] %v1302
    %1559 = vst [vmem:[#allocation8 + $0x138] sm:$0xff] %v1303
    %1560 = vst [vmem:[#allocation8 + $0x140] sm:$0xff] %v1304
    %1561 = vst [vmem:[#allocation8 + $0x148] sm:$0xff] %v1305
    %1562 = vst [vmem:[#allocation8 + $0x150] sm:$0xff] %v1306
    %1563 = vst [vmem:[#allocation8 + $0x158] sm:$0xff] %v1307
    %1564 = vst [vmem:[#allocation8 + $0x160] sm:$0xff] %v1308
    %1565 = vst [vmem:[#allocation8 + $0x168] sm:$0xff] %v1309
    %1566 = vst [vmem:[#allocation8 + $0x170] sm:$0xff] %v1310
    %1567 = vst [vmem:[#allocation8 + $0x178] sm:$0xff] %v1311
    %1568 = vst [vmem:[#allocation8 + $0x180] sm:$0xff] %v1312
    %1569 = vst [vmem:[#allocation8 + $0x188] sm:$0xff] %v1313
    %1570 = vst [vmem:[#allocation8 + $0x190] sm:$0xff] %v1314
    %1571 = vst [vmem:[#allocation8 + $0x198] sm:$0xff] %v1315
    %1572 = vst [vmem:[#allocation8 + $0x1a0] sm:$0xff] %v1316
    %1573 = vst [vmem:[#allocation8 + $0x1a8] sm:$0xff] %v1317
    %1574 = vst [vmem:[#allocation8 + $0x1b0] sm:$0xff] %v1318
    %1575 = vst [vmem:[#allocation8 + $0x1b8] sm:$0xff] %v1319
    %1576 = vst [vmem:[#allocation8 + $0x1c0] sm:$0xff] %v1320
    %1577 = vst [vmem:[#allocation8 + $0x1c8] sm:$0xff] %v1321
    %1578 = vst [vmem:[#allocation8 + $0x1d0] sm:$0xff] %v1322
    %1579 = vst [vmem:[#allocation8 + $0x1d8] sm:$0xff] %v1323
    %1580 = vst [vmem:[#allocation8 + $0x1e0] sm:$0xff] %v1324
    %1581 = vst [vmem:[#allocation8 + $0x1e8] sm:$0xff] %v1325
    %1582 = vst [vmem:[#allocation8 + $0x1f0] sm:$0xff] %v1326
    %1583 = vst [vmem:[#allocation8 + $0x1f8] sm:$0xff] %v1327
    %1584 = vst [vmem:[#allocation8 + $0x200] sm:$0xff] %v1328
    %1585 = vst [vmem:[#allocation8 + $0x208] sm:$0xff] %v1329
    %1586 = vst [vmem:[#allocation8 + $0x210] sm:$0xff] %v1330
    %1587 = vst [vmem:[#allocation8 + $0x218] sm:$0xff] %v1331
    %1588 = vst [vmem:[#allocation8 + $0x220] sm:$0xff] %v1332
    %1589 = vst [vmem:[#allocation8 + $0x228] sm:$0xff] %v1333
    %1590 = vst [vmem:[#allocation8 + $0x230] sm:$0xff] %v1334
    %1591 = vst [vmem:[#allocation8 + $0x238] sm:$0xff] %v1335
    %1592 = vst [vmem:[#allocation8 + $0x240] sm:$0xff] %v1336
    %1593 = vst [vmem:[#allocation8 + $0x248] sm:$0xff] %v1337
    %1594 = vst [vmem:[#allocation8 + $0x250] sm:$0xff] %v1338
    %1595 = vst [vmem:[#allocation8 + $0x258] sm:$0xff] %v1339
    %1596 = vst [vmem:[#allocation8 + $0x260] sm:$0xff] %v1340
    %1597 = vst [vmem:[#allocation8 + $0x268] sm:$0xff] %v1341
    %1598 = vst [vmem:[#allocation8 + $0x270] sm:$0xff] %v1342
    %1599 = vst [vmem:[#allocation8 + $0x278] sm:$0xff] %v1343
    %1600 = vst [vmem:[#allocation8 + $0x280] sm:$0xff] %v1344
    %1601 = vst [vmem:[#allocation8 + $0x288] sm:$0xff] %v1345
    %1602 = vst [vmem:[#allocation8 + $0x290] sm:$0xff] %v1346
    %1603 = vst [vmem:[#allocation8 + $0x298] sm:$0xff] %v1347
    %1604 = vst [vmem:[#allocation8 + $0x2a0] sm:$0xff] %v1348
    %1605 = vst [vmem:[#allocation8 + $0x2a8] sm:$0xff] %v1349
    %1606 = vst [vmem:[#allocation8 + $0x2b0] sm:$0xff] %v1350
    %1607 = vst [vmem:[#allocation8 + $0x2b8] sm:$0xff] %v1351
    %1608 = vst [vmem:[#allocation8 + $0x2c0] sm:$0xff] %v1352
    %1609 = vst [vmem:[#allocation8 + $0x2c8] sm:$0xff] %v1353
    %1610 = vst [vmem:[#allocation8 + $0x2d0] sm:$0xff] %v1354
    %1611 = vst [vmem:[#allocation8 + $0x2d8] sm:$0xff] %v1355
    %1612 = vst [vmem:[#allocation8 + $0x2e0] sm:$0xff] %v1356
    %1613 = vst [vmem:[#allocation8 + $0x2e8] sm:$0xff] %v1357
    %1614 = vst [vmem:[#allocation8 + $0x2f0] sm:$0xff] %v1358
    %1615 = vst [vmem:[#allocation8 + $0x2f8] sm:$0xff] %v1359
    %1616 = vst [vmem:[#allocation8 + $0x300] sm:$0xff] %v1360
    %1617 = vst [vmem:[#allocation8 + $0x308] sm:$0xff] %v1361
    %1618 = vst [vmem:[#allocation8 + $0x310] sm:$0xff] %v1362
    %1619 = vst [vmem:[#allocation8 + $0x318] sm:$0xff] %v1363
    %1620 = vst [vmem:[#allocation8 + $0x320] sm:$0xff] %v1364
    %1621 = vst [vmem:[#allocation8 + $0x328] sm:$0xff] %v1365
    %1622 = vst [vmem:[#allocation8 + $0x330] sm:$0xff] %v1366
    %1623 = vst [vmem:[#allocation8 + $0x338] sm:$0xff] %v1367
    %1624 = vst [vmem:[#allocation8 + $0x340] sm:$0xff] %v1368
    %1625 = vst [vmem:[#allocation8 + $0x348] sm:$0xff] %v1369
    %1626 = vst [vmem:[#allocation8 + $0x350] sm:$0xff] %v1370
    %1627 = vst [vmem:[#allocation8 + $0x358] sm:$0xff] %v1371
    %1628 = vst [vmem:[#allocation8 + $0x360] sm:$0xff] %v1372
    %1629 = vst [vmem:[#allocation8 + $0x368] sm:$0xff] %v1373
    %1630 = vst [vmem:[#allocation8 + $0x370] sm:$0xff] %v1374
    %1631 = vst [vmem:[#allocation8 + $0x378] sm:$0xff] %v1375
    %1632 = vst [vmem:[#allocation8 + $0x380] sm:$0xff] %v1376
    %1633 = vst [vmem:[#allocation8 + $0x388] sm:$0xff] %v1377
    %1634 = vst [vmem:[#allocation8 + $0x390] sm:$0xff] %v1378
    %1635 = vst [vmem:[#allocation8 + $0x398] sm:$0xff] %v1379
    %1636 = vst [vmem:[#allocation8 + $0x3a0] sm:$0xff] %v1380
    %1637 = vst [vmem:[#allocation8 + $0x3a8] sm:$0xff] %v1381
    %1638 = vst [vmem:[#allocation8 + $0x3b0] sm:$0xff] %v1382
    %1639 = vst [vmem:[#allocation8 + $0x3b8] sm:$0xff] %v1383
    %1640 = vst [vmem:[#allocation8 + $0x3c0] sm:$0xff] %v1384
    %1641 = vst [vmem:[#allocation8 + $0x3c8] sm:$0xff] %v1385
    %1642 = vst [vmem:[#allocation8 + $0x3d0] sm:$0xff] %v1386
    %1643 = vst [vmem:[#allocation8 + $0x3d8] sm:$0xff] %v1387
    %1644 = vst [vmem:[#allocation8 + $0x3e0] sm:$0xff] %v1388
    %1645 = vst [vmem:[#allocation8 + $0x3e8] sm:$0xff] %v1389
    %1646 = vst [vmem:[#allocation8 + $0x3f0] sm:$0xff] %v1390
    %1647 = vst [vmem:[#allocation8 + $0x3f8] sm:$0xff] %v1391
    %1648 = vst [vmem:[#allocation8 + $0x400] sm:$0xff] %v1392
    %1649 = vst [vmem:[#allocation8 + $0x408] sm:$0xff] %v1393
    %1650 = vst [vmem:[#allocation8 + $0x410] sm:$0xff] %v1394
    %1651 = vst [vmem:[#allocation8 + $0x418] sm:$0xff] %v1395
    %1652 = vst [vmem:[#allocation8 + $0x420] sm:$0xff] %v1396
    %1653 = vst [vmem:[#allocation8 + $0x428] sm:$0xff] %v1397
    %1654 = vst [vmem:[#allocation8 + $0x430] sm:$0xff] %v1398
    %1655 = vst [vmem:[#allocation8 + $0x438] sm:$0xff] %v1399
    %1656 = vst [vmem:[#allocation8 + $0x440] sm:$0xff] %v1400
    %1657 = vst [vmem:[#allocation8 + $0x448] sm:$0xff] %v1401
    %1658 = vst [vmem:[#allocation8 + $0x450] sm:$0xff] %v1402
    %1659 = vst [vmem:[#allocation8 + $0x458] sm:$0xff] %v1403
    %1660 = vst [vmem:[#allocation8 + $0x460] sm:$0xff] %v1404
    %1661 = vst [vmem:[#allocation8 + $0x468] sm:$0xff] %v1405
    %1662 = vst [vmem:[#allocation8 + $0x470] sm:$0xff] %v1406
    %1663 = vst [vmem:[#allocation8 + $0x478] sm:$0xff] %v1407
    %1664 = vst [vmem:[#allocation8 + $0x480] sm:$0xff] %v1408
    %1665 = vst [vmem:[#allocation8 + $0x488] sm:$0xff] %v1409
    %1666 = vst [vmem:[#allocation8 + $0x490] sm:$0xff] %v1410
    %1667 = vst [vmem:[#allocation8 + $0x498] sm:$0xff] %v1411
    %1668 = vst [vmem:[#allocation8 + $0x4a0] sm:$0xff] %v1412
    %1669 = vst [vmem:[#allocation8 + $0x4a8] sm:$0xff] %v1413
    %1670 = vst [vmem:[#allocation8 + $0x4b0] sm:$0xff] %v1414
    %1671 = vst [vmem:[#allocation8 + $0x4b8] sm:$0xff] %v1415
    %1672 = vst [vmem:[#allocation8 + $0x4c0] sm:$0xff] %v1416
    %1673 = vst [vmem:[#allocation8 + $0x4c8] sm:$0xff] %v1417
    %1674 = vst [vmem:[#allocation8 + $0x4d0] sm:$0xff] %v1418
    %1675 = vst [vmem:[#allocation8 + $0x4d8] sm:$0xff] %v1419
    %1676 = vst [vmem:[#allocation8 + $0x4e0] sm:$0xff] %v1420
    %1677 = vst [vmem:[#allocation8 + $0x4e8] sm:$0xff] %v1421
    %1678 = vst [vmem:[#allocation8 + $0x4f0] sm:$0xff] %v1422
    %1679 = vst [vmem:[#allocation8 + $0x4f8] sm:$0xff] %v1423
    %1680 = vst [vmem:[#allocation8 + $0x500] sm:$0xff] %v1424
    %1681 = vst [vmem:[#allocation8 + $0x508] sm:$0xff] %v1425
    %1682 = vst [vmem:[#allocation8 + $0x510] sm:$0xff] %v1426
    %1683 = vst [vmem:[#allocation8 + $0x518] sm:$0xff] %v1427
    %1684 = vst [vmem:[#allocation8 + $0x520] sm:$0xff] %v1428
    %1685 = vst [vmem:[#allocation8 + $0x528] sm:$0xff] %v1429
    %1686 = vst [vmem:[#allocation8 + $0x530] sm:$0xff] %v1430
    %1687 = vst [vmem:[#allocation8 + $0x538] sm:$0xff] %v1431
    %1688 = vst [vmem:[#allocation8 + $0x540] sm:$0xff] %v1432
    %1689 = vst [vmem:[#allocation8 + $0x548] sm:$0xff] %v1433
    %1690 = vst [vmem:[#allocation8 + $0x550] sm:$0xff] %v1434
    %1691 = vst [vmem:[#allocation8 + $0x558] sm:$0xff] %v1435
    %1692 = vst [vmem:[#allocation8 + $0x560] sm:$0xff] %v1436
    %1693 = vst [vmem:[#allocation8 + $0x568] sm:$0xff] %v1437
    %1694 = vst [vmem:[#allocation8 + $0x570] sm:$0xff] %v1438
    %1695 = vst [vmem:[#allocation8 + $0x578] sm:$0xff] %v1439
    %1696 = vst [vmem:[#allocation8 + $0x580] sm:$0xff] %v1440
    %1697 = vst [vmem:[#allocation8 + $0x588] sm:$0xff] %v1441
    %1698 = vst [vmem:[#allocation8 + $0x590] sm:$0xff] %v1442
    %1699 = vst [vmem:[#allocation8 + $0x598] sm:$0xff] %v1443
    %1700 = vst [vmem:[#allocation8 + $0x5a0] sm:$0xff] %v1444
    %1701 = vst [vmem:[#allocation8 + $0x5a8] sm:$0xff] %v1445
    %1702 = vst [vmem:[#allocation8 + $0x5b0] sm:$0xff] %v1446
    %1703 = vst [vmem:[#allocation8 + $0x5b8] sm:$0xff] %v1447
    %1704 = vst [vmem:[#allocation8 + $0x5c0] sm:$0xff] %v1448
    %1705 = vst [vmem:[#allocation8 + $0x5c8] sm:$0xff] %v1449
    %1706 = vst [vmem:[#allocation8 + $0x5d0] sm:$0xff] %v1450
    %1707 = vst [vmem:[#allocation8 + $0x5d8] sm:$0xff] %v1451
    %1708 = vst [vmem:[#allocation8 + $0x5e0] sm:$0xff] %v1452
    %1709 = vst [vmem:[#allocation8 + $0x5e8] sm:$0xff] %v1453
    %1710 = vst [vmem:[#allocation8 + $0x5f0] sm:$0xff] %v1454
    %1711 = vst [vmem:[#allocation8 + $0x5f8] sm:$0xff] %v1455
    %1712 = vst [vmem:[#allocation8 + $0x600] sm:$0xff] %v1456
    %1713 = vst [vmem:[#allocation8 + $0x608] sm:$0xff] %v1457
    %1714 = vst [vmem:[#allocation8 + $0x610] sm:$0xff] %v1458
    %1715 = vst [vmem:[#allocation8 + $0x618] sm:$0xff] %v1459
    %1716 = vst [vmem:[#allocation8 + $0x620] sm:$0xff] %v1460
    %1717 = vst [vmem:[#allocation8 + $0x628] sm:$0xff] %v1461
    %1718 = vst [vmem:[#allocation8 + $0x630] sm:$0xff] %v1462
    %1719 = vst [vmem:[#allocation8 + $0x638] sm:$0xff] %v1463
    %1720 = vst [vmem:[#allocation8 + $0x640] sm:$0xff] %v1464
    %1721 = vst [vmem:[#allocation8 + $0x648] sm:$0xff] %v1465
    %1722 = vst [vmem:[#allocation8 + $0x650] sm:$0xff] %v1466
    %1723 = vst [vmem:[#allocation8 + $0x658] sm:$0xff] %v1467
    %1724 = vst [vmem:[#allocation8 + $0x660] sm:$0xff] %v1468
    %1725 = vst [vmem:[#allocation8 + $0x668] sm:$0xff] %v1469
    %1726 = vst [vmem:[#allocation8 + $0x670] sm:$0xff] %v1470
    %1727 = vst [vmem:[#allocation8 + $0x678] sm:$0xff] %v1471
    %1728 = vst [vmem:[#allocation8 + $0x680] sm:$0xff] %v1472
    %1729 = vst [vmem:[#allocation8 + $0x688] sm:$0xff] %v1473
    %1730 = vst [vmem:[#allocation8 + $0x690] sm:$0xff] %v1474
    %1731 = vst [vmem:[#allocation8 + $0x698] sm:$0xff] %v1475
    %1732 = vst [vmem:[#allocation8 + $0x6a0] sm:$0xff] %v1476
    %1733 = vst [vmem:[#allocation8 + $0x6a8] sm:$0xff] %v1477
    %1734 = vst [vmem:[#allocation8 + $0x6b0] sm:$0xff] %v1478
    %1735 = vst [vmem:[#allocation8 + $0x6b8] sm:$0xff] %v1479
    %1736 = vst [vmem:[#allocation8 + $0x6c0] sm:$0xff] %v1480
    %1737 = vst [vmem:[#allocation8 + $0x6c8] sm:$0xff] %v1481
    %1738 = vst [vmem:[#allocation8 + $0x6d0] sm:$0xff] %v1482
    %1739 = vst [vmem:[#allocation8 + $0x6d8] sm:$0xff] %v1483
    %1740 = vst [vmem:[#allocation8 + $0x6e0] sm:$0xff] %v1484
    %1741 = vst [vmem:[#allocation8 + $0x6e8] sm:$0xff] %v1485
    %1742 = vst [vmem:[#allocation8 + $0x6f0] sm:$0xff] %v1486
    %1743 = vst [vmem:[#allocation8 + $0x6f8] sm:$0xff] %v1487
    %1744 = vst [vmem:[#allocation8 + $0x700] sm:$0xff] %v1488
    %1745 = vst [vmem:[#allocation8 + $0x708] sm:$0xff] %v1489
    %1746 = vst [vmem:[#allocation8 + $0x710] sm:$0xff] %v1490
    %1747 = vst [vmem:[#allocation8 + $0x718] sm:$0xff] %v1491
    %1748 = vst [vmem:[#allocation8 + $0x720] sm:$0xff] %v1492
    %1749 = vst [vmem:[#allocation8 + $0x728] sm:$0xff] %v1493
    %1750 = vst [vmem:[#allocation8 + $0x730] sm:$0xff] %v1494
    %1751 = vst [vmem:[#allocation8 + $0x738] sm:$0xff] %v1495
    %1752 = vst [vmem:[#allocation8 + $0x740] sm:$0xff] %v1496
    %1753 = vst [vmem:[#allocation8 + $0x748] sm:$0xff] %v1497
    %1754 = vst [vmem:[#allocation8 + $0x750] sm:$0xff] %v1498
    %1755 = vst [vmem:[#allocation8 + $0x758] sm:$0xff] %v1499
    %1756 = vst [vmem:[#allocation8 + $0x760] sm:$0xff] %v1500
    %1757 = vst [vmem:[#allocation8 + $0x768] sm:$0xff] %v1501
    %1758 = vst [vmem:[#allocation8 + $0x770] sm:$0xff] %v1502
    %1759 = vst [vmem:[#allocation8 + $0x778] sm:$0xff] %v1503
    %1760 = vst [vmem:[#allocation8 + $0x780] sm:$0xff] %v1504
    %1761 = vst [vmem:[#allocation8 + $0x788] sm:$0xff] %v1505
    %1762 = vst [vmem:[#allocation8 + $0x790] sm:$0xff] %v1506
    %1763 = vst [vmem:[#allocation8 + $0x798] sm:$0xff] %v1507
    %1764 = vst [vmem:[#allocation8 + $0x7a0] sm:$0xff] %v1508
    %1765 = vst [vmem:[#allocation8 + $0x7a8] sm:$0xff] %v1509
    %1766 = vst [vmem:[#allocation8 + $0x7b0] sm:$0xff] %v1510
    %1767 = vst [vmem:[#allocation8 + $0x7b8] sm:$0xff] %v1511
    %1768 = vst [vmem:[#allocation8 + $0x7c0] sm:$0xff] %v1512
    %1769 = vst [vmem:[#allocation8 + $0x7c8] sm:$0xff] %v1513
    %1770 = vst [vmem:[#allocation8 + $0x7d0] sm:$0xff] %v1514
    %1771 = vst [vmem:[#allocation8 + $0x7d8] sm:$0xff] %v1515
    %1772 = vst [vmem:[#allocation8 + $0x7e0] sm:$0xff] %v1516
    %1773 = vst [vmem:[#allocation8 + $0x7e8] sm:$0xff] %v1517
    %1774 = vst [vmem:[#allocation8 + $0x7f0] sm:$0xff] %v1518
    %1775 = vst [vmem:[#allocation8 + $0x7f8] sm:$0xff] %v1519
    %v1776 = vld [vmem:[#allocation9] sm:$0xff]
    %v1777 = vld [vmem:[#allocation9 + $0x8] sm:$0xff]
    %v1778 = vld [vmem:[#allocation9 + $0x10] sm:$0xff]
    %v1779 = vld [vmem:[#allocation9 + $0x18] sm:$0xff]
    %v1780 = vld [vmem:[#allocation9 + $0x20] sm:$0xff]
    %v1781 = vld [vmem:[#allocation9 + $0x28] sm:$0xff]
    %v1782 = vld [vmem:[#allocation9 + $0x30] sm:$0xff]
    %v1783 = vld [vmem:[#allocation9 + $0x38] sm:$0xff]
    %v1784 = vld [vmem:[#allocation9 + $0x40] sm:$0xff]
    %v1785 = vld [vmem:[#allocation9 + $0x48] sm:$0xff]
    %v1786 = vld [vmem:[#allocation9 + $0x50] sm:$0xff]
    %v1787 = vld [vmem:[#allocation9 + $0x58] sm:$0xff]
    %v1788 = vld [vmem:[#allocation9 + $0x60] sm:$0xff]
    %v1789 = vld [vmem:[#allocation9 + $0x68] sm:$0xff]
    %v1790 = vld [vmem:[#allocation9 + $0x70] sm:$0xff]
    %v1791 = vld [vmem:[#allocation9 + $0x78] sm:$0xff]
    %v1792 = vld [vmem:[#allocation9 + $0x80] sm:$0xff]
    %v1793 = vld [vmem:[#allocation9 + $0x88] sm:$0xff]
    %v1794 = vld [vmem:[#allocation9 + $0x90] sm:$0xff]
    %v1795 = vld [vmem:[#allocation9 + $0x98] sm:$0xff]
    %v1796 = vld [vmem:[#allocation9 + $0xa0] sm:$0xff]
    %v1797 = vld [vmem:[#allocation9 + $0xa8] sm:$0xff]
    %v1798 = vld [vmem:[#allocation9 + $0xb0] sm:$0xff]
    %v1799 = vld [vmem:[#allocation9 + $0xb8] sm:$0xff]
    %v1800 = vld [vmem:[#allocation9 + $0xc0] sm:$0xff]
    %v1801 = vld [vmem:[#allocation9 + $0xc8] sm:$0xff]
    %v1802 = vld [vmem:[#allocation9 + $0xd0] sm:$0xff]
    %v1803 = vld [vmem:[#allocation9 + $0xd8] sm:$0xff]
    %v1804 = vld [vmem:[#allocation9 + $0xe0] sm:$0xff]
    %v1805 = vld [vmem:[#allocation9 + $0xe8] sm:$0xff]
    %v1806 = vld [vmem:[#allocation9 + $0xf0] sm:$0xff]
    %v1807 = vld [vmem:[#allocation9 + $0xf8] sm:$0xff]
    %v1808 = vld [vmem:[#allocation9 + $0x100] sm:$0xff]
    %v1809 = vld [vmem:[#allocation9 + $0x108] sm:$0xff]
    %v1810 = vld [vmem:[#allocation9 + $0x110] sm:$0xff]
    %v1811 = vld [vmem:[#allocation9 + $0x118] sm:$0xff]
    %v1812 = vld [vmem:[#allocation9 + $0x120] sm:$0xff]
    %v1813 = vld [vmem:[#allocation9 + $0x128] sm:$0xff]
    %v1814 = vld [vmem:[#allocation9 + $0x130] sm:$0xff]
    %v1815 = vld [vmem:[#allocation9 + $0x138] sm:$0xff]
    %v1816 = vld [vmem:[#allocation9 + $0x140] sm:$0xff]
    %v1817 = vld [vmem:[#allocation9 + $0x148] sm:$0xff]
    %v1818 = vld [vmem:[#allocation9 + $0x150] sm:$0xff]
    %v1819 = vld [vmem:[#allocation9 + $0x158] sm:$0xff]
    %v1820 = vld [vmem:[#allocation9 + $0x160] sm:$0xff]
    %v1821 = vld [vmem:[#allocation9 + $0x168] sm:$0xff]
    %v1822 = vld [vmem:[#allocation9 + $0x170] sm:$0xff]
    %v1823 = vld [vmem:[#allocation9 + $0x178] sm:$0xff]
    %v1824 = vld [vmem:[#allocation9 + $0x180] sm:$0xff]
    %v1825 = vld [vmem:[#allocation9 + $0x188] sm:$0xff]
    %v1826 = vld [vmem:[#allocation9 + $0x190] sm:$0xff]
    %v1827 = vld [vmem:[#allocation9 + $0x198] sm:$0xff]
    %v1828 = vld [vmem:[#allocation9 + $0x1a0] sm:$0xff]
    %v1829 = vld [vmem:[#allocation9 + $0x1a8] sm:$0xff]
    %v1830 = vld [vmem:[#allocation9 + $0x1b0] sm:$0xff]
    %v1831 = vld [vmem:[#allocation9 + $0x1b8] sm:$0xff]
    %v1832 = vld [vmem:[#allocation9 + $0x1c0] sm:$0xff]
    %v1833 = vld [vmem:[#allocation9 + $0x1c8] sm:$0xff]
    %v1834 = vld [vmem:[#allocation9 + $0x1d0] sm:$0xff]
    %v1835 = vld [vmem:[#allocation9 + $0x1d8] sm:$0xff]
    %v1836 = vld [vmem:[#allocation9 + $0x1e0] sm:$0xff]
    %v1837 = vld [vmem:[#allocation9 + $0x1e8] sm:$0xff]
    %v1838 = vld [vmem:[#allocation9 + $0x1f0] sm:$0xff]
    %v1839 = vld [vmem:[#allocation9 + $0x1f8] sm:$0xff]
    %v1840 = vpack.c.bf16 %v1268, %v1264
    %v1841 = vpack.c.bf16 %v1269, %v1265
    %v1842 = vpack.c.bf16 %v1270, %v1266
    %v1843 = vpack.c.bf16 %v1271, %v1267
    %v1844 = vpack.c.bf16 %v1276, %v1272
    %v1845 = vpack.c.bf16 %v1277, %v1273
    %v1846 = vpack.c.bf16 %v1278, %v1274
    %v1847 = vpack.c.bf16 %v1279, %v1275
    %v1848 = vpack.c.bf16 %v1284, %v1280
    %v1849 = vpack.c.bf16 %v1285, %v1281
    %v1850 = vpack.c.bf16 %v1286, %v1282
    %v1851 = vpack.c.bf16 %v1287, %v1283
    %v1852 = vpack.c.bf16 %v1292, %v1288
    %v1853 = vpack.c.bf16 %v1293, %v1289
    %v1854 = vpack.c.bf16 %v1294, %v1290
    %v1855 = vpack.c.bf16 %v1295, %v1291
    %v1856 = vpack.c.bf16 %v1300, %v1296
    %v1857 = vpack.c.bf16 %v1301, %v1297
    %v1858 = vpack.c.bf16 %v1302, %v1298
    %v1859 = vpack.c.bf16 %v1303, %v1299
    %v1860 = vpack.c.bf16 %v1308, %v1304
    %v1861 = vpack.c.bf16 %v1309, %v1305
    %v1862 = vpack.c.bf16 %v1310, %v1306
    %v1863 = vpack.c.bf16 %v1311, %v1307
    %v1864 = vpack.c.bf16 %v1316, %v1312
    %v1865 = vpack.c.bf16 %v1317, %v1313
    %v1866 = vpack.c.bf16 %v1318, %v1314
    %v1867 = vpack.c.bf16 %v1319, %v1315
    %v1868 = vpack.c.bf16 %v1324, %v1320
    %v1869 = vpack.c.bf16 %v1325, %v1321
    %v1870 = vpack.c.bf16 %v1326, %v1322
    %v1871 = vpack.c.bf16 %v1327, %v1323
    %v1872 = vpack.c.bf16 %v1332, %v1328
    %v1873 = vpack.c.bf16 %v1333, %v1329
    %v1874 = vpack.c.bf16 %v1334, %v1330
    %v1875 = vpack.c.bf16 %v1335, %v1331
    %v1876 = vpack.c.bf16 %v1340, %v1336
    %v1877 = vpack.c.bf16 %v1341, %v1337
    %v1878 = vpack.c.bf16 %v1342, %v1338
    %v1879 = vpack.c.bf16 %v1343, %v1339
    %v1880 = vpack.c.bf16 %v1348, %v1344
    %v1881 = vpack.c.bf16 %v1349, %v1345
    %v1882 = vpack.c.bf16 %v1350, %v1346
    %v1883 = vpack.c.bf16 %v1351, %v1347
    %v1884 = vpack.c.bf16 %v1356, %v1352
    %v1885 = vpack.c.bf16 %v1357, %v1353
    %v1886 = vpack.c.bf16 %v1358, %v1354
    %v1887 = vpack.c.bf16 %v1359, %v1355
    %v1888 = vpack.c.bf16 %v1364, %v1360
    %v1889 = vpack.c.bf16 %v1365, %v1361
    %v1890 = vpack.c.bf16 %v1366, %v1362
    %v1891 = vpack.c.bf16 %v1367, %v1363
    %v1892 = vpack.c.bf16 %v1372, %v1368
    %v1893 = vpack.c.bf16 %v1373, %v1369
    %v1894 = vpack.c.bf16 %v1374, %v1370
    %v1895 = vpack.c.bf16 %v1375, %v1371
    %v1896 = vpack.c.bf16 %v1380, %v1376
    %v1897 = vpack.c.bf16 %v1381, %v1377
    %v1898 = vpack.c.bf16 %v1382, %v1378
    %v1899 = vpack.c.bf16 %v1383, %v1379
    %v1900 = vpack.c.bf16 %v1388, %v1384
    %v1901 = vpack.c.bf16 %v1389, %v1385
    %v1902 = vpack.c.bf16 %v1390, %v1386
    %v1903 = vpack.c.bf16 %v1391, %v1387
    %v1904 = vpack.c.bf16 %v1396, %v1392
    %v1905 = vpack.c.bf16 %v1397, %v1393
    %v1906 = vpack.c.bf16 %v1398, %v1394
    %v1907 = vpack.c.bf16 %v1399, %v1395
    %v1908 = vpack.c.bf16 %v1404, %v1400
    %v1909 = vpack.c.bf16 %v1405, %v1401
    %v1910 = vpack.c.bf16 %v1406, %v1402
    %v1911 = vpack.c.bf16 %v1407, %v1403
    %v1912 = vpack.c.bf16 %v1412, %v1408
    %v1913 = vpack.c.bf16 %v1413, %v1409
    %v1914 = vpack.c.bf16 %v1414, %v1410
    %v1915 = vpack.c.bf16 %v1415, %v1411
    %v1916 = vpack.c.bf16 %v1420, %v1416
    %v1917 = vpack.c.bf16 %v1421, %v1417
    %v1918 = vpack.c.bf16 %v1422, %v1418
    %v1919 = vpack.c.bf16 %v1423, %v1419
    %v1920 = vpack.c.bf16 %v1428, %v1424
    %v1921 = vpack.c.bf16 %v1429, %v1425
    %v1922 = vpack.c.bf16 %v1430, %v1426
    %v1923 = vpack.c.bf16 %v1431, %v1427
    %v1924 = vpack.c.bf16 %v1436, %v1432
    %v1925 = vpack.c.bf16 %v1437, %v1433
    %v1926 = vpack.c.bf16 %v1438, %v1434
    %v1927 = vpack.c.bf16 %v1439, %v1435
    %v1928 = vpack.c.bf16 %v1444, %v1440
    %v1929 = vpack.c.bf16 %v1445, %v1441
    %v1930 = vpack.c.bf16 %v1446, %v1442
    %v1931 = vpack.c.bf16 %v1447, %v1443
    %v1932 = vpack.c.bf16 %v1452, %v1448
    %v1933 = vpack.c.bf16 %v1453, %v1449
    %v1934 = vpack.c.bf16 %v1454, %v1450
    %v1935 = vpack.c.bf16 %v1455, %v1451
    %v1936 = vpack.c.bf16 %v1460, %v1456
    %v1937 = vpack.c.bf16 %v1461, %v1457
    %v1938 = vpack.c.bf16 %v1462, %v1458
    %v1939 = vpack.c.bf16 %v1463, %v1459
    %v1940 = vpack.c.bf16 %v1468, %v1464
    %v1941 = vpack.c.bf16 %v1469, %v1465
    %v1942 = vpack.c.bf16 %v1470, %v1466
    %v1943 = vpack.c.bf16 %v1471, %v1467
    %v1944 = vpack.c.bf16 %v1476, %v1472
    %v1945 = vpack.c.bf16 %v1477, %v1473
    %v1946 = vpack.c.bf16 %v1478, %v1474
    %v1947 = vpack.c.bf16 %v1479, %v1475
    %v1948 = vpack.c.bf16 %v1484, %v1480
    %v1949 = vpack.c.bf16 %v1485, %v1481
    %v1950 = vpack.c.bf16 %v1486, %v1482
    %v1951 = vpack.c.bf16 %v1487, %v1483
    %v1952 = vpack.c.bf16 %v1492, %v1488
    %v1953 = vpack.c.bf16 %v1493, %v1489
    %v1954 = vpack.c.bf16 %v1494, %v1490
    %v1955 = vpack.c.bf16 %v1495, %v1491
    %v1956 = vpack.c.bf16 %v1500, %v1496
    %v1957 = vpack.c.bf16 %v1501, %v1497
    %v1958 = vpack.c.bf16 %v1502, %v1498
    %v1959 = vpack.c.bf16 %v1503, %v1499
    %v1960 = vpack.c.bf16 %v1508, %v1504
    %v1961 = vpack.c.bf16 %v1509, %v1505
    %v1962 = vpack.c.bf16 %v1510, %v1506
    %v1963 = vpack.c.bf16 %v1511, %v1507
    %v1964 = vpack.c.bf16 %v1516, %v1512
    %v1965 = vpack.c.bf16 %v1517, %v1513
    %v1966 = vpack.c.bf16 %v1518, %v1514
    %v1967 = vpack.c.bf16 %v1519, %v1515
    %v1968 = vld [vmem:[#allocation7] sm:$0xf]
    %v1969 = vld [vmem:[#allocation7 + $0x4] sm:$0xf]
    %v1970 = vld [vmem:[#allocation7 + $0x8] sm:$0xf]
    %v1971 = vld [vmem:[#allocation7 + $0xc] sm:$0xf]
    %v1972 = vld [vmem:[#allocation7 + $0x10] sm:$0xf]
    %v1973 = vld [vmem:[#allocation7 + $0x14] sm:$0xf]
    %v1974 = vld [vmem:[#allocation7 + $0x18] sm:$0xf]
    %v1975 = vld [vmem:[#allocation7 + $0x1c] sm:$0xf]
    %v1976 = vld [vmem:[#allocation7 + $0x20] sm:$0xf]
    %v1977 = vld [vmem:[#allocation7 + $0x24] sm:$0xf]
    %v1978 = vld [vmem:[#allocation7 + $0x28] sm:$0xf]
    %v1979 = vld [vmem:[#allocation7 + $0x2c] sm:$0xf]
    %v1980 = vld [vmem:[#allocation7 + $0x30] sm:$0xf]
    %v1981 = vld [vmem:[#allocation7 + $0x34] sm:$0xf]
    %v1982 = vld [vmem:[#allocation7 + $0x38] sm:$0xf]
    %v1983 = vld [vmem:[#allocation7 + $0x3c] sm:$0xf]
    %v1984 = vld [vmem:[#allocation7 + $0x40] sm:$0xf]
    %v1985 = vld [vmem:[#allocation7 + $0x44] sm:$0xf]
    %v1986 = vld [vmem:[#allocation7 + $0x48] sm:$0xf]
    %v1987 = vld [vmem:[#allocation7 + $0x4c] sm:$0xf]
    %v1988 = vld [vmem:[#allocation7 + $0x50] sm:$0xf]
    %v1989 = vld [vmem:[#allocation7 + $0x54] sm:$0xf]
    %v1990 = vld [vmem:[#allocation7 + $0x58] sm:$0xf]
    %v1991 = vld [vmem:[#allocation7 + $0x5c] sm:$0xf]
    %v1992 = vld [vmem:[#allocation7 + $0x60] sm:$0xf]
    %v1993 = vld [vmem:[#allocation7 + $0x64] sm:$0xf]
    %v1994 = vld [vmem:[#allocation7 + $0x68] sm:$0xf]
    %v1995 = vld [vmem:[#allocation7 + $0x6c] sm:$0xf]
    %v1996 = vld [vmem:[#allocation7 + $0x70] sm:$0xf]
    %v1997 = vld [vmem:[#allocation7 + $0x74] sm:$0xf]
    %v1998 = vld [vmem:[#allocation7 + $0x78] sm:$0xf]
    %v1999 = vld [vmem:[#allocation7 + $0x7c] sm:$0xf]
    %v2000 = vld [vmem:[#allocation7 + $0x80] sm:$0xf]
    %v2001 = vld [vmem:[#allocation7 + $0x84] sm:$0xf]
    %v2002 = vld [vmem:[#allocation7 + $0x88] sm:$0xf]
    %v2003 = vld [vmem:[#allocation7 + $0x8c] sm:$0xf]
    %v2004 = vld [vmem:[#allocation7 + $0x90] sm:$0xf]
    %v2005 = vld [vmem:[#allocation7 + $0x94] sm:$0xf]
    %v2006 = vld [vmem:[#allocation7 + $0x98] sm:$0xf]
    %v2007 = vld [vmem:[#allocation7 + $0x9c] sm:$0xf]
    %v2008 = vld [vmem:[#allocation7 + $0xa0] sm:$0xf]
    %v2009 = vld [vmem:[#allocation7 + $0xa4] sm:$0xf]
    %v2010 = vld [vmem:[#allocation7 + $0xa8] sm:$0xf]
    %v2011 = vld [vmem:[#allocation7 + $0xac] sm:$0xf]
    %v2012 = vld [vmem:[#allocation7 + $0xb0] sm:$0xf]
    %v2013 = vld [vmem:[#allocation7 + $0xb4] sm:$0xf]
    %v2014 = vld [vmem:[#allocation7 + $0xb8] sm:$0xf]
    %v2015 = vld [vmem:[#allocation7 + $0xbc] sm:$0xf]
    %v2016 = vld [vmem:[#allocation7 + $0xc0] sm:$0xf]
    %v2017 = vld [vmem:[#allocation7 + $0xc4] sm:$0xf]
    %v2018 = vld [vmem:[#allocation7 + $0xc8] sm:$0xf]
    %v2019 = vld [vmem:[#allocation7 + $0xcc] sm:$0xf]
    %v2020 = vld [vmem:[#allocation7 + $0xd0] sm:$0xf]
    %v2021 = vld [vmem:[#allocation7 + $0xd4] sm:$0xf]
    %v2022 = vld [vmem:[#allocation7 + $0xd8] sm:$0xf]
    %v2023 = vld [vmem:[#allocation7 + $0xdc] sm:$0xf]
    %v2024 = vld [vmem:[#allocation7 + $0xe0] sm:$0xf]
    %v2025 = vld [vmem:[#allocation7 + $0xe4] sm:$0xf]
    %v2026 = vld [vmem:[#allocation7 + $0xe8] sm:$0xf]
    %v2027 = vld [vmem:[#allocation7 + $0xec] sm:$0xf]
    %v2028 = vld [vmem:[#allocation7 + $0xf0] sm:$0xf]
    %v2029 = vld [vmem:[#allocation7 + $0xf4] sm:$0xf]
    %v2030 = vld [vmem:[#allocation7 + $0xf8] sm:$0xf]
    %v2031 = vld [vmem:[#allocation7 + $0xfc] sm:$0xf]
    %v2096 = vunpack.c.l.b16 %v1968
    %v2097 = vunpack.c.l.b16 %v1969
    %v2098 = vunpack.c.l.b16 %v1970
    %v2099 = vunpack.c.l.b16 %v1971
    %v2100 = vunpack.c.l.b16 %v1972
    %v2101 = vunpack.c.l.b16 %v1973
    %v2102 = vunpack.c.l.b16 %v1974
    %v2103 = vunpack.c.l.b16 %v1975
    %v2104 = vunpack.c.l.b16 %v1976
    %v2105 = vunpack.c.l.b16 %v1977
    %v2106 = vunpack.c.l.b16 %v1978
    %v2107 = vunpack.c.l.b16 %v1979
    %v2108 = vunpack.c.l.b16 %v1980
    %v2109 = vunpack.c.l.b16 %v1981
    %v2110 = vunpack.c.l.b16 %v1982
    %v2111 = vunpack.c.l.b16 %v1983
    %v2112 = vunpack.c.l.b16 %v1984
    %v2113 = vunpack.c.l.b16 %v1985
    %v2114 = vunpack.c.l.b16 %v1986
    %v2115 = vunpack.c.l.b16 %v1987
    %v2116 = vunpack.c.l.b16 %v1988
    %v2117 = vunpack.c.l.b16 %v1989
    %v2118 = vunpack.c.l.b16 %v1990
    %v2119 = vunpack.c.l.b16 %v1991
    %v2120 = vunpack.c.l.b16 %v1992
    %v2121 = vunpack.c.l.b16 %v1993
    %v2122 = vunpack.c.l.b16 %v1994
    %v2123 = vunpack.c.l.b16 %v1995
    %v2124 = vunpack.c.l.b16 %v1996
    %v2125 = vunpack.c.l.b16 %v1997
    %v2126 = vunpack.c.l.b16 %v1998
    %v2127 = vunpack.c.l.b16 %v1999
    %v2128 = vunpack.c.l.b16 %v2000
    %v2129 = vunpack.c.l.b16 %v2001
    %v2130 = vunpack.c.l.b16 %v2002
    %v2131 = vunpack.c.l.b16 %v2003
    %v2132 = vunpack.c.l.b16 %v2004
    %v2133 = vunpack.c.l.b16 %v2005
    %v2134 = vunpack.c.l.b16 %v2006
    %v2135 = vunpack.c.l.b16 %v2007
    %v2136 = vunpack.c.l.b16 %v2008
    %v2137 = vunpack.c.l.b16 %v2009
    %v2138 = vunpack.c.l.b16 %v2010
    %v2139 = vunpack.c.l.b16 %v2011
    %v2140 = vunpack.c.l.b16 %v2012
    %v2141 = vunpack.c.l.b16 %v2013
    %v2142 = vunpack.c.l.b16 %v2014
    %v2143 = vunpack.c.l.b16 %v2015
    %v2144 = vunpack.c.l.b16 %v2016
    %v2145 = vunpack.c.l.b16 %v2017
    %v2146 = vunpack.c.l.b16 %v2018
    %v2147 = vunpack.c.l.b16 %v2019
    %v2148 = vunpack.c.l.b16 %v2020
    %v2149 = vunpack.c.l.b16 %v2021
    %v2150 = vunpack.c.l.b16 %v2022
    %v2151 = vunpack.c.l.b16 %v2023
    %v2152 = vunpack.c.l.b16 %v2024
    %v2153 = vunpack.c.l.b16 %v2025
    %v2154 = vunpack.c.l.b16 %v2026
    %v2155 = vunpack.c.l.b16 %v2027
    %v2156 = vunpack.c.l.b16 %v2028
    %v2157 = vunpack.c.l.b16 %v2029
    %v2158 = vunpack.c.l.b16 %v2030
    %v2159 = vunpack.c.l.b16 %v2031
    %v2160 = vpack.c.b16 %v2097, %v2096
    %v2161 = vpack.c.b16 %v2099, %v2098
    %v2162 = vpack.c.b16 %v2101, %v2100
    %v2163 = vpack.c.b16 %v2103, %v2102
    %v2164 = vpack.c.b16 %v2105, %v2104
    %v2165 = vpack.c.b16 %v2107, %v2106
    %v2166 = vpack.c.b16 %v2109, %v2108
    %v2167 = vpack.c.b16 %v2111, %v2110
    %v2168 = vpack.c.b16 %v2113, %v2112
    %v2169 = vpack.c.b16 %v2115, %v2114
    %v2170 = vpack.c.b16 %v2117, %v2116
    %v2171 = vpack.c.b16 %v2119, %v2118
    %v2172 = vpack.c.b16 %v2121, %v2120
    %v2173 = vpack.c.b16 %v2123, %v2122
    %v2174 = vpack.c.b16 %v2125, %v2124
    %v2175 = vpack.c.b16 %v2127, %v2126
    %v2176 = vpack.c.b16 %v2129, %v2128
    %v2177 = vpack.c.b16 %v2131, %v2130
    %v2178 = vpack.c.b16 %v2133, %v2132
    %v2179 = vpack.c.b16 %v2135, %v2134
    %v2180 = vpack.c.b16 %v2137, %v2136
    %v2181 = vpack.c.b16 %v2139, %v2138
    %v2182 = vpack.c.b16 %v2141, %v2140
    %v2183 = vpack.c.b16 %v2143, %v2142
    %v2184 = vpack.c.b16 %v2145, %v2144
    %v2185 = vpack.c.b16 %v2147, %v2146
    %v2186 = vpack.c.b16 %v2149, %v2148
    %v2187 = vpack.c.b16 %v2151, %v2150
    %v2188 = vpack.c.b16 %v2153, %v2152
    %v2189 = vpack.c.b16 %v2155, %v2154
    %v2190 = vpack.c.b16 %v2157, %v2156
    %v2191 = vpack.c.b16 %v2159, %v2158
    %2224 = vmatpush.bf16.msra.mxu0 %v2167
    %2225 = vmatpush.bf16.msra.mxu0 %v2166
    %2226 = vmatpush.bf16.msra.mxu0 %v2165
    %2227 = vmatpush.bf16.msra.mxu0 %v2164
    %2228 = vmatpush.bf16.msra.mxu0 %v2163
    %2229 = vmatpush.bf16.msra.mxu0 %v2162
    %2230 = vmatpush.bf16.msra.mxu0 %v2161
    %2231 = vmatpush.bf16.msra.mxu0 %v2160
    %2232 = vmatmul.bf16.gmra.mxu0 %v1840
    %v2233 = vpop.f32.mrf.mxu0
    %v2234 = vadd.f32 0.0, %v2233
    %v2235 = vpop.f32.mrf.mxu0
    %v2236 = vadd.f32 0.0, %v2235
    %2237 = vmatmul.bf16.gmra.mxu0 %v1844
    %v2238 = vpop.f32.mrf.mxu0
    %v2239 = vadd.f32 0.0, %v2238
    %v2240 = vpop.f32.mrf.mxu0
    %v2241 = vadd.f32 0.0, %v2240
    %2242 = vmatmul.bf16.gmra.mxu0 %v1848
    %v2243 = vpop.f32.mrf.mxu0
    %v2244 = vadd.f32 0.0, %v2243
    %v2245 = vpop.f32.mrf.mxu0
    %v2246 = vadd.f32 0.0, %v2245
    %2247 = vmatmul.bf16.gmra.mxu0 %v1852
    %v2248 = vpop.f32.mrf.mxu0
    %v2249 = vadd.f32 0.0, %v2248
    %v2250 = vpop.f32.mrf.mxu0
    %v2251 = vadd.f32 0.0, %v2250
    %2252 = vmatmul.bf16.gmra.mxu0 %v1856
    %v2253 = vpop.f32.mrf.mxu0
    %v2254 = vadd.f32 0.0, %v2253
    %v2255 = vpop.f32.mrf.mxu0
    %v2256 = vadd.f32 0.0, %v2255
    %2257 = vmatmul.bf16.gmra.mxu0 %v1860
    %v2258 = vpop.f32.mrf.mxu0
    %v2259 = vadd.f32 0.0, %v2258
    %v2260 = vpop.f32.mrf.mxu0
    %v2261 = vadd.f32 0.0, %v2260
    %2262 = vmatmul.bf16.gmra.mxu0 %v1864
    %v2263 = vpop.f32.mrf.mxu0
    %v2264 = vadd.f32 0.0, %v2263
    %v2265 = vpop.f32.mrf.mxu0
    %v2266 = vadd.f32 0.0, %v2265
    %2267 = vmatmul.bf16.gmra.mxu0 %v1868
    %v2268 = vpop.f32.mrf.mxu0
    %v2269 = vadd.f32 0.0, %v2268
    %v2270 = vpop.f32.mrf.mxu0
    %v2271 = vadd.f32 0.0, %v2270
    %2272 = vmatmul.bf16.gmra.mxu0 %v1872
    %v2273 = vpop.f32.mrf.mxu0
    %v2274 = vadd.f32 0.0, %v2273
    %v2275 = vpop.f32.mrf.mxu0
    %v2276 = vadd.f32 0.0, %v2275
    %2277 = vmatmul.bf16.gmra.mxu0 %v1876
    %v2278 = vpop.f32.mrf.mxu0
    %v2279 = vadd.f32 0.0, %v2278
    %v2280 = vpop.f32.mrf.mxu0
    %v2281 = vadd.f32 0.0, %v2280
    %2282 = vmatmul.bf16.gmra.mxu0 %v1880
    %v2283 = vpop.f32.mrf.mxu0
    %v2284 = vadd.f32 0.0, %v2283
    %v2285 = vpop.f32.mrf.mxu0
    %v2286 = vadd.f32 0.0, %v2285
    %2287 = vmatmul.bf16.gmra.mxu0 %v1884
    %v2288 = vpop.f32.mrf.mxu0
    %v2289 = vadd.f32 0.0, %v2288
    %v2290 = vpop.f32.mrf.mxu0
    %v2291 = vadd.f32 0.0, %v2290
    %2292 = vmatmul.bf16.gmra.mxu0 %v1888
    %v2293 = vpop.f32.mrf.mxu0
    %v2294 = vadd.f32 0.0, %v2293
    %v2295 = vpop.f32.mrf.mxu0
    %v2296 = vadd.f32 0.0, %v2295
    %2297 = vmatmul.bf16.gmra.mxu0 %v1892
    %v2298 = vpop.f32.mrf.mxu0
    %v2299 = vadd.f32 0.0, %v2298
    %v2300 = vpop.f32.mrf.mxu0
    %v2301 = vadd.f32 0.0, %v2300
    %2302 = vmatmul.bf16.gmra.mxu0 %v1896
    %v2303 = vpop.f32.mrf.mxu0
    %v2304 = vadd.f32 0.0, %v2303
    %v2305 = vpop.f32.mrf.mxu0
    %v2306 = vadd.f32 0.0, %v2305
    %2307 = vmatmul.bf16.gmra.mxu0 %v1900
    %v2308 = vpop.f32.mrf.mxu0
    %v2309 = vadd.f32 0.0, %v2308
    %v2310 = vpop.f32.mrf.mxu0
    %v2311 = vadd.f32 0.0, %v2310
    %2312 = vmatmul.bf16.gmra.mxu0 %v1904
    %v2313 = vpop.f32.mrf.mxu0
    %v2314 = vadd.f32 0.0, %v2313
    %v2315 = vpop.f32.mrf.mxu0
    %v2316 = vadd.f32 0.0, %v2315
    %2317 = vmatmul.bf16.gmra.mxu0 %v1908
    %v2318 = vpop.f32.mrf.mxu0
    %v2319 = vadd.f32 0.0, %v2318
    %v2320 = vpop.f32.mrf.mxu0
    %v2321 = vadd.f32 0.0, %v2320
    %2322 = vmatmul.bf16.gmra.mxu0 %v1912
    %v2323 = vpop.f32.mrf.mxu0
    %v2324 = vadd.f32 0.0, %v2323
    %v2325 = vpop.f32.mrf.mxu0
    %v2326 = vadd.f32 0.0, %v2325
    %2327 = vmatmul.bf16.gmra.mxu0 %v1916
    %v2328 = vpop.f32.mrf.mxu0
    %v2329 = vadd.f32 0.0, %v2328
    %v2330 = vpop.f32.mrf.mxu0
    %v2331 = vadd.f32 0.0, %v2330
    %2332 = vmatmul.bf16.gmra.mxu0 %v1920
    %v2333 = vpop.f32.mrf.mxu0
    %v2334 = vadd.f32 0.0, %v2333
    %v2335 = vpop.f32.mrf.mxu0
    %v2336 = vadd.f32 0.0, %v2335
    %2337 = vmatmul.bf16.gmra.mxu0 %v1924
    %v2338 = vpop.f32.mrf.mxu0
    %v2339 = vadd.f32 0.0, %v2338
    %v2340 = vpop.f32.mrf.mxu0
    %v2341 = vadd.f32 0.0, %v2340
    %2342 = vmatmul.bf16.gmra.mxu0 %v1928
    %v2343 = vpop.f32.mrf.mxu0
    %v2344 = vadd.f32 0.0, %v2343
    %v2345 = vpop.f32.mrf.mxu0
    %v2346 = vadd.f32 0.0, %v2345
    %2347 = vmatmul.bf16.gmra.mxu0 %v1932
    %v2348 = vpop.f32.mrf.mxu0
    %v2349 = vadd.f32 0.0, %v2348
    %v2350 = vpop.f32.mrf.mxu0
    %v2351 = vadd.f32 0.0, %v2350
    %2352 = vmatmul.bf16.gmra.mxu0 %v1936
    %v2353 = vpop.f32.mrf.mxu0
    %v2354 = vadd.f32 0.0, %v2353
    %v2355 = vpop.f32.mrf.mxu0
    %v2356 = vadd.f32 0.0, %v2355
    %2357 = vmatmul.bf16.gmra.mxu0 %v1940
    %v2358 = vpop.f32.mrf.mxu0
    %v2359 = vadd.f32 0.0, %v2358
    %v2360 = vpop.f32.mrf.mxu0
    %v2361 = vadd.f32 0.0, %v2360
    %2362 = vmatmul.bf16.gmra.mxu0 %v1944
    %v2363 = vpop.f32.mrf.mxu0
    %v2364 = vadd.f32 0.0, %v2363
    %v2365 = vpop.f32.mrf.mxu0
    %v2366 = vadd.f32 0.0, %v2365
    %2367 = vmatmul.bf16.gmra.mxu0 %v1948
    %v2368 = vpop.f32.mrf.mxu0
    %v2369 = vadd.f32 0.0, %v2368
    %v2370 = vpop.f32.mrf.mxu0
    %v2371 = vadd.f32 0.0, %v2370
    %2372 = vmatmul.bf16.gmra.mxu0 %v1952
    %v2373 = vpop.f32.mrf.mxu0
    %v2374 = vadd.f32 0.0, %v2373
    %v2375 = vpop.f32.mrf.mxu0
    %v2376 = vadd.f32 0.0, %v2375
    %2377 = vmatmul.bf16.gmra.mxu0 %v1956
    %v2378 = vpop.f32.mrf.mxu0
    %v2379 = vadd.f32 0.0, %v2378
    %v2380 = vpop.f32.mrf.mxu0
    %v2381 = vadd.f32 0.0, %v2380
    %2382 = vmatmul.bf16.gmra.mxu0 %v1960
    %v2383 = vpop.f32.mrf.mxu0
    %v2384 = vadd.f32 0.0, %v2383
    %v2385 = vpop.f32.mrf.mxu0
    %v2386 = vadd.f32 0.0, %v2385
    %2387 = vmatmul.bf16.gmra.mxu0 %v1964
    %v2388 = vpop.f32.mrf.mxu0
    %v2389 = vadd.f32 0.0, %v2388
    %v2390 = vpop.f32.mrf.mxu0
    %v2391 = vadd.f32 0.0, %v2390
    %2392 = vdwg.mxu0
    %2393 = vmatpush.bf16.msra.mxu0 %v2175
    %2394 = vmatpush.bf16.msra.mxu0 %v2174
    %2395 = vmatpush.bf16.msra.mxu0 %v2173
    %2396 = vmatpush.bf16.msra.mxu0 %v2172
    %2397 = vmatpush.bf16.msra.mxu0 %v2171
    %2398 = vmatpush.bf16.msra.mxu0 %v2170
    %2399 = vmatpush.bf16.msra.mxu0 %v2169
    %2400 = vmatpush.bf16.msra.mxu0 %v2168
    %2401 = vmatmul.bf16.gmra.mxu0 %v1841
    %v2402 = vpop.f32.mrf.mxu0
    %v2403 = vadd.f32 %v2234, %v2402
    %v2404 = vpop.f32.mrf.mxu0
    %v2405 = vadd.f32 %v2236, %v2404
    %2406 = vmatmul.bf16.gmra.mxu0 %v1845
    %v2407 = vpop.f32.mrf.mxu0
    %v2408 = vadd.f32 %v2239, %v2407
    %v2409 = vpop.f32.mrf.mxu0
    %v2410 = vadd.f32 %v2241, %v2409
    %2411 = vmatmul.bf16.gmra.mxu0 %v1849
    %v2412 = vpop.f32.mrf.mxu0
    %v2413 = vadd.f32 %v2244, %v2412
    %v2414 = vpop.f32.mrf.mxu0
    %v2415 = vadd.f32 %v2246, %v2414
    %2416 = vmatmul.bf16.gmra.mxu0 %v1853
    %v2417 = vpop.f32.mrf.mxu0
    %v2418 = vadd.f32 %v2249, %v2417
    %v2419 = vpop.f32.mrf.mxu0
    %v2420 = vadd.f32 %v2251, %v2419
    %2421 = vmatmul.bf16.gmra.mxu0 %v1857
    %v2422 = vpop.f32.mrf.mxu0
    %v2423 = vadd.f32 %v2254, %v2422
    %v2424 = vpop.f32.mrf.mxu0
    %v2425 = vadd.f32 %v2256, %v2424
    %2426 = vmatmul.bf16.gmra.mxu0 %v1861
    %v2427 = vpop.f32.mrf.mxu0
    %v2428 = vadd.f32 %v2259, %v2427
    %v2429 = vpop.f32.mrf.mxu0
    %v2430 = vadd.f32 %v2261, %v2429
    %2431 = vmatmul.bf16.gmra.mxu0 %v1865
    %v2432 = vpop.f32.mrf.mxu0
    %v2433 = vadd.f32 %v2264, %v2432
    %v2434 = vpop.f32.mrf.mxu0
    %v2435 = vadd.f32 %v2266, %v2434
    %2436 = vmatmul.bf16.gmra.mxu0 %v1869
    %v2437 = vpop.f32.mrf.mxu0
    %v2438 = vadd.f32 %v2269, %v2437
    %v2439 = vpop.f32.mrf.mxu0
    %v2440 = vadd.f32 %v2271, %v2439
    %2441 = vmatmul.bf16.gmra.mxu0 %v1873
    %v2442 = vpop.f32.mrf.mxu0
    %v2443 = vadd.f32 %v2274, %v2442
    %v2444 = vpop.f32.mrf.mxu0
    %v2445 = vadd.f32 %v2276, %v2444
    %2446 = vmatmul.bf16.gmra.mxu0 %v1877
    %v2447 = vpop.f32.mrf.mxu0
    %v2448 = vadd.f32 %v2279, %v2447
    %v2449 = vpop.f32.mrf.mxu0
    %v2450 = vadd.f32 %v2281, %v2449
    %2451 = vmatmul.bf16.gmra.mxu0 %v1881
    %v2452 = vpop.f32.mrf.mxu0
    %v2453 = vadd.f32 %v2284, %v2452
    %v2454 = vpop.f32.mrf.mxu0
    %v2455 = vadd.f32 %v2286, %v2454
    %2456 = vmatmul.bf16.gmra.mxu0 %v1885
    %v2457 = vpop.f32.mrf.mxu0
    %v2458 = vadd.f32 %v2289, %v2457
    %v2459 = vpop.f32.mrf.mxu0
    %v2460 = vadd.f32 %v2291, %v2459
    %2461 = vmatmul.bf16.gmra.mxu0 %v1889
    %v2462 = vpop.f32.mrf.mxu0
    %v2463 = vadd.f32 %v2294, %v2462
    %v2464 = vpop.f32.mrf.mxu0
    %v2465 = vadd.f32 %v2296, %v2464
    %2466 = vmatmul.bf16.gmra.mxu0 %v1893
    %v2467 = vpop.f32.mrf.mxu0
    %v2468 = vadd.f32 %v2299, %v2467
    %v2469 = vpop.f32.mrf.mxu0
    %v2470 = vadd.f32 %v2301, %v2469
    %2471 = vmatmul.bf16.gmra.mxu0 %v1897
    %v2472 = vpop.f32.mrf.mxu0
    %v2473 = vadd.f32 %v2304, %v2472
    %v2474 = vpop.f32.mrf.mxu0
    %v2475 = vadd.f32 %v2306, %v2474
    %2476 = vmatmul.bf16.gmra.mxu0 %v1901
    %v2477 = vpop.f32.mrf.mxu0
    %v2478 = vadd.f32 %v2309, %v2477
    %v2479 = vpop.f32.mrf.mxu0
    %v2480 = vadd.f32 %v2311, %v2479
    %2481 = vmatmul.bf16.gmra.mxu0 %v1905
    %v2482 = vpop.f32.mrf.mxu0
    %v2483 = vadd.f32 %v2314, %v2482
    %v2484 = vpop.f32.mrf.mxu0
    %v2485 = vadd.f32 %v2316, %v2484
    %2486 = vmatmul.bf16.gmra.mxu0 %v1909
    %v2487 = vpop.f32.mrf.mxu0
    %v2488 = vadd.f32 %v2319, %v2487
    %v2489 = vpop.f32.mrf.mxu0
    %v2490 = vadd.f32 %v2321, %v2489
    %2491 = vmatmul.bf16.gmra.mxu0 %v1913
    %v2492 = vpop.f32.mrf.mxu0
    %v2493 = vadd.f32 %v2324, %v2492
    %v2494 = vpop.f32.mrf.mxu0
    %v2495 = vadd.f32 %v2326, %v2494
    %2496 = vmatmul.bf16.gmra.mxu0 %v1917
    %v2497 = vpop.f32.mrf.mxu0
    %v2498 = vadd.f32 %v2329, %v2497
    %v2499 = vpop.f32.mrf.mxu0
    %v2500 = vadd.f32 %v2331, %v2499
    %2501 = vmatmul.bf16.gmra.mxu0 %v1921
    %v2502 = vpop.f32.mrf.mxu0
    %v2503 = vadd.f32 %v2334, %v2502
    %v2504 = vpop.f32.mrf.mxu0
    %v2505 = vadd.f32 %v2336, %v2504
    %2506 = vmatmul.bf16.gmra.mxu0 %v1925
    %v2507 = vpop.f32.mrf.mxu0
    %v2508 = vadd.f32 %v2339, %v2507
    %v2509 = vpop.f32.mrf.mxu0
    %v2510 = vadd.f32 %v2341, %v2509
    %2511 = vmatmul.bf16.gmra.mxu0 %v1929
    %v2512 = vpop.f32.mrf.mxu0
    %v2513 = vadd.f32 %v2344, %v2512
    %v2514 = vpop.f32.mrf.mxu0
    %v2515 = vadd.f32 %v2346, %v2514
    %2516 = vmatmul.bf16.gmra.mxu0 %v1933
    %v2517 = vpop.f32.mrf.mxu0
    %v2518 = vadd.f32 %v2349, %v2517
    %v2519 = vpop.f32.mrf.mxu0
    %v2520 = vadd.f32 %v2351, %v2519
    %2521 = vmatmul.bf16.gmra.mxu0 %v1937
    %v2522 = vpop.f32.mrf.mxu0
    %v2523 = vadd.f32 %v2354, %v2522
    %v2524 = vpop.f32.mrf.mxu0
    %v2525 = vadd.f32 %v2356, %v2524
    %2526 = vmatmul.bf16.gmra.mxu0 %v1941
    %v2527 = vpop.f32.mrf.mxu0
    %v2528 = vadd.f32 %v2359, %v2527
    %v2529 = vpop.f32.mrf.mxu0
    %v2530 = vadd.f32 %v2361, %v2529
    %2531 = vmatmul.bf16.gmra.mxu0 %v1945
    %v2532 = vpop.f32.mrf.mxu0
    %v2533 = vadd.f32 %v2364, %v2532
    %v2534 = vpop.f32.mrf.mxu0
    %v2535 = vadd.f32 %v2366, %v2534
    %2536 = vmatmul.bf16.gmra.mxu0 %v1949
    %v2537 = vpop.f32.mrf.mxu0
    %v2538 = vadd.f32 %v2369, %v2537
    %v2539 = vpop.f32.mrf.mxu0
    %v2540 = vadd.f32 %v2371, %v2539
    %2541 = vmatmul.bf16.gmra.mxu0 %v1953
    %v2542 = vpop.f32.mrf.mxu0
    %v2543 = vadd.f32 %v2374, %v2542
    %v2544 = vpop.f32.mrf.mxu0
    %v2545 = vadd.f32 %v2376, %v2544
    %2546 = vmatmul.bf16.gmra.mxu0 %v1957
    %v2547 = vpop.f32.mrf.mxu0
    %v2548 = vadd.f32 %v2379, %v2547
    %v2549 = vpop.f32.mrf.mxu0
    %v2550 = vadd.f32 %v2381, %v2549
    %2551 = vmatmul.bf16.gmra.mxu0 %v1961
    %v2552 = vpop.f32.mrf.mxu0
    %v2553 = vadd.f32 %v2384, %v2552
    %v2554 = vpop.f32.mrf.mxu0
    %v2555 = vadd.f32 %v2386, %v2554
    %2556 = vmatmul.bf16.gmra.mxu0 %v1965
    %v2557 = vpop.f32.mrf.mxu0
    %v2558 = vadd.f32 %v2389, %v2557
    %v2559 = vpop.f32.mrf.mxu0
    %v2560 = vadd.f32 %v2391, %v2559
    %2561 = vdwg.mxu0
    %2562 = vmatpush.bf16.msra.mxu0 %v2183
    %2563 = vmatpush.bf16.msra.mxu0 %v2182
    %2564 = vmatpush.bf16.msra.mxu0 %v2181
    %2565 = vmatpush.bf16.msra.mxu0 %v2180
    %2566 = vmatpush.bf16.msra.mxu0 %v2179
    %2567 = vmatpush.bf16.msra.mxu0 %v2178
    %2568 = vmatpush.bf16.msra.mxu0 %v2177
    %2569 = vmatpush.bf16.msra.mxu0 %v2176
    %2570 = vmatmul.bf16.gmra.mxu0 %v1842
    %v2571 = vpop.f32.mrf.mxu0
    %v2572 = vadd.f32 %v2403, %v2571
    %v2573 = vpop.f32.mrf.mxu0
    %v2574 = vadd.f32 %v2405, %v2573
    %2575 = vmatmul.bf16.gmra.mxu0 %v1846
    %v2576 = vpop.f32.mrf.mxu0
    %v2577 = vadd.f32 %v2408, %v2576
    %v2578 = vpop.f32.mrf.mxu0
    %v2579 = vadd.f32 %v2410, %v2578
    %2580 = vmatmul.bf16.gmra.mxu0 %v1850
    %v2581 = vpop.f32.mrf.mxu0
    %v2582 = vadd.f32 %v2413, %v2581
    %v2583 = vpop.f32.mrf.mxu0
    %v2584 = vadd.f32 %v2415, %v2583
    %2585 = vmatmul.bf16.gmra.mxu0 %v1854
    %v2586 = vpop.f32.mrf.mxu0
    %v2587 = vadd.f32 %v2418, %v2586
    %v2588 = vpop.f32.mrf.mxu0
    %v2589 = vadd.f32 %v2420, %v2588
    %2590 = vmatmul.bf16.gmra.mxu0 %v1858
    %v2591 = vpop.f32.mrf.mxu0
    %v2592 = vadd.f32 %v2423, %v2591
    %v2593 = vpop.f32.mrf.mxu0
    %v2594 = vadd.f32 %v2425, %v2593
    %2595 = vmatmul.bf16.gmra.mxu0 %v1862
    %v2596 = vpop.f32.mrf.mxu0
    %v2597 = vadd.f32 %v2428, %v2596
    %v2598 = vpop.f32.mrf.mxu0
    %v2599 = vadd.f32 %v2430, %v2598
    %2600 = vmatmul.bf16.gmra.mxu0 %v1866
    %v2601 = vpop.f32.mrf.mxu0
    %v2602 = vadd.f32 %v2433, %v2601
    %v2603 = vpop.f32.mrf.mxu0
    %v2604 = vadd.f32 %v2435, %v2603
    %2605 = vmatmul.bf16.gmra.mxu0 %v1870
    %v2606 = vpop.f32.mrf.mxu0
    %v2607 = vadd.f32 %v2438, %v2606
    %v2608 = vpop.f32.mrf.mxu0
    %v2609 = vadd.f32 %v2440, %v2608
    %2610 = vmatmul.bf16.gmra.mxu0 %v1874
    %v2611 = vpop.f32.mrf.mxu0
    %v2612 = vadd.f32 %v2443, %v2611
    %v2613 = vpop.f32.mrf.mxu0
    %v2614 = vadd.f32 %v2445, %v2613
    %2615 = vmatmul.bf16.gmra.mxu0 %v1878
    %v2616 = vpop.f32.mrf.mxu0
    %v2617 = vadd.f32 %v2448, %v2616
    %v2618 = vpop.f32.mrf.mxu0
    %v2619 = vadd.f32 %v2450, %v2618
    %2620 = vmatmul.bf16.gmra.mxu0 %v1882
    %v2621 = vpop.f32.mrf.mxu0
    %v2622 = vadd.f32 %v2453, %v2621
    %v2623 = vpop.f32.mrf.mxu0
    %v2624 = vadd.f32 %v2455, %v2623
    %2625 = vmatmul.bf16.gmra.mxu0 %v1886
    %v2626 = vpop.f32.mrf.mxu0
    %v2627 = vadd.f32 %v2458, %v2626
    %v2628 = vpop.f32.mrf.mxu0
    %v2629 = vadd.f32 %v2460, %v2628
    %2630 = vmatmul.bf16.gmra.mxu0 %v1890
    %v2631 = vpop.f32.mrf.mxu0
    %v2632 = vadd.f32 %v2463, %v2631
    %v2633 = vpop.f32.mrf.mxu0
    %v2634 = vadd.f32 %v2465, %v2633
    %2635 = vmatmul.bf16.gmra.mxu0 %v1894
    %v2636 = vpop.f32.mrf.mxu0
    %v2637 = vadd.f32 %v2468, %v2636
    %v2638 = vpop.f32.mrf.mxu0
    %v2639 = vadd.f32 %v2470, %v2638
    %2640 = vmatmul.bf16.gmra.mxu0 %v1898
    %v2641 = vpop.f32.mrf.mxu0
    %v2642 = vadd.f32 %v2473, %v2641
    %v2643 = vpop.f32.mrf.mxu0
    %v2644 = vadd.f32 %v2475, %v2643
    %2645 = vmatmul.bf16.gmra.mxu0 %v1902
    %v2646 = vpop.f32.mrf.mxu0
    %v2647 = vadd.f32 %v2478, %v2646
    %v2648 = vpop.f32.mrf.mxu0
    %v2649 = vadd.f32 %v2480, %v2648
    %2650 = vmatmul.bf16.gmra.mxu0 %v1906
    %v2651 = vpop.f32.mrf.mxu0
    %v2652 = vadd.f32 %v2483, %v2651
    %v2653 = vpop.f32.mrf.mxu0
    %v2654 = vadd.f32 %v2485, %v2653
    %2655 = vmatmul.bf16.gmra.mxu0 %v1910
    %v2656 = vpop.f32.mrf.mxu0
    %v2657 = vadd.f32 %v2488, %v2656
    %v2658 = vpop.f32.mrf.mxu0
    %v2659 = vadd.f32 %v2490, %v2658
    %2660 = vmatmul.bf16.gmra.mxu0 %v1914
    %v2661 = vpop.f32.mrf.mxu0
    %v2662 = vadd.f32 %v2493, %v2661
    %v2663 = vpop.f32.mrf.mxu0
    %v2664 = vadd.f32 %v2495, %v2663
    %2665 = vmatmul.bf16.gmra.mxu0 %v1918
    %v2666 = vpop.f32.mrf.mxu0
    %v2667 = vadd.f32 %v2498, %v2666
    %v2668 = vpop.f32.mrf.mxu0
    %v2669 = vadd.f32 %v2500, %v2668
    %2670 = vmatmul.bf16.gmra.mxu0 %v1922
    %v2671 = vpop.f32.mrf.mxu0
    %v2672 = vadd.f32 %v2503, %v2671
    %v2673 = vpop.f32.mrf.mxu0
    %v2674 = vadd.f32 %v2505, %v2673
    %2675 = vmatmul.bf16.gmra.mxu0 %v1926
    %v2676 = vpop.f32.mrf.mxu0
    %v2677 = vadd.f32 %v2508, %v2676
    %v2678 = vpop.f32.mrf.mxu0
    %v2679 = vadd.f32 %v2510, %v2678
    %2680 = vmatmul.bf16.gmra.mxu0 %v1930
    %v2681 = vpop.f32.mrf.mxu0
    %v2682 = vadd.f32 %v2513, %v2681
    %v2683 = vpop.f32.mrf.mxu0
    %v2684 = vadd.f32 %v2515, %v2683
    %2685 = vmatmul.bf16.gmra.mxu0 %v1934
    %v2686 = vpop.f32.mrf.mxu0
    %v2687 = vadd.f32 %v2518, %v2686
    %v2688 = vpop.f32.mrf.mxu0
    %v2689 = vadd.f32 %v2520, %v2688
    %2690 = vmatmul.bf16.gmra.mxu0 %v1938
    %v2691 = vpop.f32.mrf.mxu0
    %v2692 = vadd.f32 %v2523, %v2691
    %v2693 = vpop.f32.mrf.mxu0
    %v2694 = vadd.f32 %v2525, %v2693
    %2695 = vmatmul.bf16.gmra.mxu0 %v1942
    %v2696 = vpop.f32.mrf.mxu0
    %v2697 = vadd.f32 %v2528, %v2696
    %v2698 = vpop.f32.mrf.mxu0
    %v2699 = vadd.f32 %v2530, %v2698
    %2700 = vmatmul.bf16.gmra.mxu0 %v1946
    %v2701 = vpop.f32.mrf.mxu0
    %v2702 = vadd.f32 %v2533, %v2701
    %v2703 = vpop.f32.mrf.mxu0
    %v2704 = vadd.f32 %v2535, %v2703
    %2705 = vmatmul.bf16.gmra.mxu0 %v1950
    %v2706 = vpop.f32.mrf.mxu0
    %v2707 = vadd.f32 %v2538, %v2706
    %v2708 = vpop.f32.mrf.mxu0
    %v2709 = vadd.f32 %v2540, %v2708
    %2710 = vmatmul.bf16.gmra.mxu0 %v1954
    %v2711 = vpop.f32.mrf.mxu0
    %v2712 = vadd.f32 %v2543, %v2711
    %v2713 = vpop.f32.mrf.mxu0
    %v2714 = vadd.f32 %v2545, %v2713
    %2715 = vmatmul.bf16.gmra.mxu0 %v1958
    %v2716 = vpop.f32.mrf.mxu0
    %v2717 = vadd.f32 %v2548, %v2716
    %v2718 = vpop.f32.mrf.mxu0
    %v2719 = vadd.f32 %v2550, %v2718
    %2720 = vmatmul.bf16.gmra.mxu0 %v1962
    %v2721 = vpop.f32.mrf.mxu0
    %v2722 = vadd.f32 %v2553, %v2721
    %v2723 = vpop.f32.mrf.mxu0
    %v2724 = vadd.f32 %v2555, %v2723
    %2725 = vmatmul.bf16.gmra.mxu0 %v1966
    %v2726 = vpop.f32.mrf.mxu0
    %v2727 = vadd.f32 %v2558, %v2726
    %v2728 = vpop.f32.mrf.mxu0
    %v2729 = vadd.f32 %v2560, %v2728
    %2730 = vdwg.mxu0
    %2731 = vmatpush.bf16.msra.mxu0 %v2191
    %2732 = vmatpush.bf16.msra.mxu0 %v2190
    %2733 = vmatpush.bf16.msra.mxu0 %v2189
    %2734 = vmatpush.bf16.msra.mxu0 %v2188
    %2735 = vmatpush.bf16.msra.mxu0 %v2187
    %2736 = vmatpush.bf16.msra.mxu0 %v2186
    %2737 = vmatpush.bf16.msra.mxu0 %v2185
    %2738 = vmatpush.bf16.msra.mxu0 %v2184
    %2739 = vmatmul.bf16.gmra.mxu0 %v1843
    %v2740 = vpop.f32.mrf.mxu0
    %v2741 = vadd.f32 %v2572, %v2740
    %v2742 = vpop.f32.mrf.mxu0
    %v2743 = vadd.f32 %v2574, %v2742
    %2744 = vmatmul.bf16.gmra.mxu0 %v1847
    %v2745 = vpop.f32.mrf.mxu0
    %v2746 = vadd.f32 %v2577, %v2745
    %v2747 = vpop.f32.mrf.mxu0
    %v2748 = vadd.f32 %v2579, %v2747
    %2749 = vmatmul.bf16.gmra.mxu0 %v1851
    %v2750 = vpop.f32.mrf.mxu0
    %v2751 = vadd.f32 %v2582, %v2750
    %v2752 = vpop.f32.mrf.mxu0
    %v2753 = vadd.f32 %v2584, %v2752
    %2754 = vmatmul.bf16.gmra.mxu0 %v1855
    %v2755 = vpop.f32.mrf.mxu0
    %v2756 = vadd.f32 %v2587, %v2755
    %v2757 = vpop.f32.mrf.mxu0
    %v2758 = vadd.f32 %v2589, %v2757
    %2759 = vmatmul.bf16.gmra.mxu0 %v1859
    %v2760 = vpop.f32.mrf.mxu0
    %v2761 = vadd.f32 %v2592, %v2760
    %v2762 = vpop.f32.mrf.mxu0
    %v2763 = vadd.f32 %v2594, %v2762
    %2764 = vmatmul.bf16.gmra.mxu0 %v1863
    %v2765 = vpop.f32.mrf.mxu0
    %v2766 = vadd.f32 %v2597, %v2765
    %v2767 = vpop.f32.mrf.mxu0
    %v2768 = vadd.f32 %v2599, %v2767
    %2769 = vmatmul.bf16.gmra.mxu0 %v1867
    %v2770 = vpop.f32.mrf.mxu0
    %v2771 = vadd.f32 %v2602, %v2770
    %v2772 = vpop.f32.mrf.mxu0
    %v2773 = vadd.f32 %v2604, %v2772
    %2774 = vmatmul.bf16.gmra.mxu0 %v1871
    %v2775 = vpop.f32.mrf.mxu0
    %v2776 = vadd.f32 %v2607, %v2775
    %v2777 = vpop.f32.mrf.mxu0
    %v2778 = vadd.f32 %v2609, %v2777
    %2779 = vmatmul.bf16.gmra.mxu0 %v1875
    %v2780 = vpop.f32.mrf.mxu0
    %v2781 = vadd.f32 %v2612, %v2780
    %v2782 = vpop.f32.mrf.mxu0
    %v2783 = vadd.f32 %v2614, %v2782
    %2784 = vmatmul.bf16.gmra.mxu0 %v1879
    %v2785 = vpop.f32.mrf.mxu0
    %v2786 = vadd.f32 %v2617, %v2785
    %v2787 = vpop.f32.mrf.mxu0
    %v2788 = vadd.f32 %v2619, %v2787
    %2789 = vmatmul.bf16.gmra.mxu0 %v1883
    %v2790 = vpop.f32.mrf.mxu0
    %v2791 = vadd.f32 %v2622, %v2790
    %v2792 = vpop.f32.mrf.mxu0
    %v2793 = vadd.f32 %v2624, %v2792
    %2794 = vmatmul.bf16.gmra.mxu0 %v1887
    %v2795 = vpop.f32.mrf.mxu0
    %v2796 = vadd.f32 %v2627, %v2795
    %v2797 = vpop.f32.mrf.mxu0
    %v2798 = vadd.f32 %v2629, %v2797
    %2799 = vmatmul.bf16.gmra.mxu0 %v1891
    %v2800 = vpop.f32.mrf.mxu0
    %v2801 = vadd.f32 %v2632, %v2800
    %v2802 = vpop.f32.mrf.mxu0
    %v2803 = vadd.f32 %v2634, %v2802
    %2804 = vmatmul.bf16.gmra.mxu0 %v1895
    %v2805 = vpop.f32.mrf.mxu0
    %v2806 = vadd.f32 %v2637, %v2805
    %v2807 = vpop.f32.mrf.mxu0
    %v2808 = vadd.f32 %v2639, %v2807
    %2809 = vmatmul.bf16.gmra.mxu0 %v1899
    %v2810 = vpop.f32.mrf.mxu0
    %v2811 = vadd.f32 %v2642, %v2810
    %v2812 = vpop.f32.mrf.mxu0
    %v2813 = vadd.f32 %v2644, %v2812
    %2814 = vmatmul.bf16.gmra.mxu0 %v1903
    %v2815 = vpop.f32.mrf.mxu0
    %v2816 = vadd.f32 %v2647, %v2815
    %v2817 = vpop.f32.mrf.mxu0
    %v2818 = vadd.f32 %v2649, %v2817
    %2819 = vmatmul.bf16.gmra.mxu0 %v1907
    %v2820 = vpop.f32.mrf.mxu0
    %v2821 = vadd.f32 %v2652, %v2820
    %v2822 = vpop.f32.mrf.mxu0
    %v2823 = vadd.f32 %v2654, %v2822
    %2824 = vmatmul.bf16.gmra.mxu0 %v1911
    %v2825 = vpop.f32.mrf.mxu0
    %v2826 = vadd.f32 %v2657, %v2825
    %v2827 = vpop.f32.mrf.mxu0
    %v2828 = vadd.f32 %v2659, %v2827
    %2829 = vmatmul.bf16.gmra.mxu0 %v1915
    %v2830 = vpop.f32.mrf.mxu0
    %v2831 = vadd.f32 %v2662, %v2830
    %v2832 = vpop.f32.mrf.mxu0
    %v2833 = vadd.f32 %v2664, %v2832
    %2834 = vmatmul.bf16.gmra.mxu0 %v1919
    %v2835 = vpop.f32.mrf.mxu0
    %v2836 = vadd.f32 %v2667, %v2835
    %v2837 = vpop.f32.mrf.mxu0
    %v2838 = vadd.f32 %v2669, %v2837
    %2839 = vmatmul.bf16.gmra.mxu0 %v1923
    %v2840 = vpop.f32.mrf.mxu0
    %v2841 = vadd.f32 %v2672, %v2840
    %v2842 = vpop.f32.mrf.mxu0
    %v2843 = vadd.f32 %v2674, %v2842
    %2844 = vmatmul.bf16.gmra.mxu0 %v1927
    %v2845 = vpop.f32.mrf.mxu0
    %v2846 = vadd.f32 %v2677, %v2845
    %v2847 = vpop.f32.mrf.mxu0
    %v2848 = vadd.f32 %v2679, %v2847
    %2849 = vmatmul.bf16.gmra.mxu0 %v1931
    %v2850 = vpop.f32.mrf.mxu0
    %v2851 = vadd.f32 %v2682, %v2850
    %v2852 = vpop.f32.mrf.mxu0
    %v2853 = vadd.f32 %v2684, %v2852
    %2854 = vmatmul.bf16.gmra.mxu0 %v1935
    %v2855 = vpop.f32.mrf.mxu0
    %v2856 = vadd.f32 %v2687, %v2855
    %v2857 = vpop.f32.mrf.mxu0
    %v2858 = vadd.f32 %v2689, %v2857
    %2859 = vmatmul.bf16.gmra.mxu0 %v1939
    %v2860 = vpop.f32.mrf.mxu0
    %v2861 = vadd.f32 %v2692, %v2860
    %v2862 = vpop.f32.mrf.mxu0
    %v2863 = vadd.f32 %v2694, %v2862
    %2864 = vmatmul.bf16.gmra.mxu0 %v1943
    %v2865 = vpop.f32.mrf.mxu0
    %v2866 = vadd.f32 %v2697, %v2865
    %v2867 = vpop.f32.mrf.mxu0
    %v2868 = vadd.f32 %v2699, %v2867
    %2869 = vmatmul.bf16.gmra.mxu0 %v1947
    %v2870 = vpop.f32.mrf.mxu0
    %v2871 = vadd.f32 %v2702, %v2870
    %v2872 = vpop.f32.mrf.mxu0
    %v2873 = vadd.f32 %v2704, %v2872
    %2874 = vmatmul.bf16.gmra.mxu0 %v1951
    %v2875 = vpop.f32.mrf.mxu0
    %v2876 = vadd.f32 %v2707, %v2875
    %v2877 = vpop.f32.mrf.mxu0
    %v2878 = vadd.f32 %v2709, %v2877
    %2879 = vmatmul.bf16.gmra.mxu0 %v1955
    %v2880 = vpop.f32.mrf.mxu0
    %v2881 = vadd.f32 %v2712, %v2880
    %v2882 = vpop.f32.mrf.mxu0
    %v2883 = vadd.f32 %v2714, %v2882
    %2884 = vmatmul.bf16.gmra.mxu0 %v1959
    %v2885 = vpop.f32.mrf.mxu0
    %v2886 = vadd.f32 %v2717, %v2885
    %v2887 = vpop.f32.mrf.mxu0
    %v2888 = vadd.f32 %v2719, %v2887
    %2889 = vmatmul.bf16.gmra.mxu0 %v1963
    %v2890 = vpop.f32.mrf.mxu0
    %v2891 = vadd.f32 %v2722, %v2890
    %v2892 = vpop.f32.mrf.mxu0
    %v2893 = vadd.f32 %v2724, %v2892
    %2894 = vmatmul.bf16.gmra.mxu0 %v1967
    %v2895 = vpop.f32.mrf.mxu0
    %v2896 = vadd.f32 %v2727, %v2895
    %v2897 = vpop.f32.mrf.mxu0
    %v2898 = vadd.f32 %v2729, %v2897
    %2899 = vdwg.mxu0
    %v2900 = vadd.f32 %v1776, %v2741
    %v2901 = vadd.f32 %v1777, %v2743
    %v2902 = vadd.f32 %v1778, %v2746
    %v2903 = vadd.f32 %v1779, %v2748
    %v2904 = vadd.f32 %v1780, %v2751
    %v2905 = vadd.f32 %v1781, %v2753
    %v2906 = vadd.f32 %v1782, %v2756
    %v2907 = vadd.f32 %v1783, %v2758
    %v2908 = vadd.f32 %v1784, %v2761
    %v2909 = vadd.f32 %v1785, %v2763
    %v2910 = vadd.f32 %v1786, %v2766
    %v2911 = vadd.f32 %v1787, %v2768
    %v2912 = vadd.f32 %v1788, %v2771
    %v2913 = vadd.f32 %v1789, %v2773
    %v2914 = vadd.f32 %v1790, %v2776
    %v2915 = vadd.f32 %v1791, %v2778
    %v2916 = vadd.f32 %v1792, %v2781
    %v2917 = vadd.f32 %v1793, %v2783
    %v2918 = vadd.f32 %v1794, %v2786
    %v2919 = vadd.f32 %v1795, %v2788
    %v2920 = vadd.f32 %v1796, %v2791
    %v2921 = vadd.f32 %v1797, %v2793
    %v2922 = vadd.f32 %v1798, %v2796
    %v2923 = vadd.f32 %v1799, %v2798
    %v2924 = vadd.f32 %v1800, %v2801
    %v2925 = vadd.f32 %v1801, %v2803
    %v2926 = vadd.f32 %v1802, %v2806
    %v2927 = vadd.f32 %v1803, %v2808
    %v2928 = vadd.f32 %v1804, %v2811
    %v2929 = vadd.f32 %v1805, %v2813
    %v2930 = vadd.f32 %v1806, %v2816
    %v2931 = vadd.f32 %v1807, %v2818
    %v2932 = vadd.f32 %v1808, %v2821
    %v2933 = vadd.f32 %v1809, %v2823
    %v2934 = vadd.f32 %v1810, %v2826
    %v2935 = vadd.f32 %v1811, %v2828
    %v2936 = vadd.f32 %v1812, %v2831
    %v2937 = vadd.f32 %v1813, %v2833
    %v2938 = vadd.f32 %v1814, %v2836
    %v2939 = vadd.f32 %v1815, %v2838
    %v2940 = vadd.f32 %v1816, %v2841
    %v2941 = vadd.f32 %v1817, %v2843
    %v2942 = vadd.f32 %v1818, %v2846
    %v2943 = vadd.f32 %v1819, %v2848
    %v2944 = vadd.f32 %v1820, %v2851
    %v2945 = vadd.f32 %v1821, %v2853
    %v2946 = vadd.f32 %v1822, %v2856
    %v2947 = vadd.f32 %v1823, %v2858
    %v2948 = vadd.f32 %v1824, %v2861
    %v2949 = vadd.f32 %v1825, %v2863
    %v2950 = vadd.f32 %v1826, %v2866
    %v2951 = vadd.f32 %v1827, %v2868
    %v2952 = vadd.f32 %v1828, %v2871
    %v2953 = vadd.f32 %v1829, %v2873
    %v2954 = vadd.f32 %v1830, %v2876
    %v2955 = vadd.f32 %v1831, %v2878
    %v2956 = vadd.f32 %v1832, %v2881
    %v2957 = vadd.f32 %v1833, %v2883
    %v2958 = vadd.f32 %v1834, %v2886
    %v2959 = vadd.f32 %v1835, %v2888
    %v2960 = vadd.f32 %v1836, %v2891
    %v2961 = vadd.f32 %v1837, %v2893
    %v2962 = vadd.f32 %v1838, %v2896
    %v2963 = vadd.f32 %v1839, %v2898
    %2964 = vst [vmem:[#allocation9] sm:$0xff] %v2900
    %2965 = vst [vmem:[#allocation9 + $0x8] sm:$0xff] %v2901
    %2966 = vst [vmem:[#allocation9 + $0x10] sm:$0xff] %v2902
    %2967 = vst [vmem:[#allocation9 + $0x18] sm:$0xff] %v2903
    %2968 = vst [vmem:[#allocation9 + $0x20] sm:$0xff] %v2904
    %2969 = vst [vmem:[#allocation9 + $0x28] sm:$0xff] %v2905
    %2970 = vst [vmem:[#allocation9 + $0x30] sm:$0xff] %v2906
    %2971 = vst [vmem:[#allocation9 + $0x38] sm:$0xff] %v2907
    %2972 = vst [vmem:[#allocation9 + $0x40] sm:$0xff] %v2908
    %2973 = vst [vmem:[#allocation9 + $0x48] sm:$0xff] %v2909
    %2974 = vst [vmem:[#allocation9 + $0x50] sm:$0xff] %v2910
    %2975 = vst [vmem:[#allocation9 + $0x58] sm:$0xff] %v2911
    %2976 = vst [vmem:[#allocation9 + $0x60] sm:$0xff] %v2912
    %2977 = vst [vmem:[#allocation9 + $0x68] sm:$0xff] %v2913
    %2978 = vst [vmem:[#allocation9 + $0x70] sm:$0xff] %v2914
    %2979 = vst [vmem:[#allocation9 + $0x78] sm:$0xff] %v2915
    %2980 = vst [vmem:[#allocation9 + $0x80] sm:$0xff] %v2916
    %2981 = vst [vmem:[#allocation9 + $0x88] sm:$0xff] %v2917
    %2982 = vst [vmem:[#allocation9 + $0x90] sm:$0xff] %v2918
    %2983 = vst [vmem:[#allocation9 + $0x98] sm:$0xff] %v2919
    %2984 = vst [vmem:[#allocation9 + $0xa0] sm:$0xff] %v2920
    %2985 = vst [vmem:[#allocation9 + $0xa8] sm:$0xff] %v2921
    %2986 = vst [vmem:[#allocation9 + $0xb0] sm:$0xff] %v2922
    %2987 = vst [vmem:[#allocation9 + $0xb8] sm:$0xff] %v2923
    %2988 = vst [vmem:[#allocation9 + $0xc0] sm:$0xff] %v2924
    %2989 = vst [vmem:[#allocation9 + $0xc8] sm:$0xff] %v2925
    %2990 = vst [vmem:[#allocation9 + $0xd0] sm:$0xff] %v2926
    %2991 = vst [vmem:[#allocation9 + $0xd8] sm:$0xff] %v2927
    %2992 = vst [vmem:[#allocation9 + $0xe0] sm:$0xff] %v2928
    %2993 = vst [vmem:[#allocation9 + $0xe8] sm:$0xff] %v2929
    %2994 = vst [vmem:[#allocation9 + $0xf0] sm:$0xff] %v2930
    %2995 = vst [vmem:[#allocation9 + $0xf8] sm:$0xff] %v2931
    %2996 = vst [vmem:[#allocation9 + $0x100] sm:$0xff] %v2932
    %2997 = vst [vmem:[#allocation9 + $0x108] sm:$0xff] %v2933
    %2998 = vst [vmem:[#allocation9 + $0x110] sm:$0xff] %v2934
    %2999 = vst [vmem:[#allocation9 + $0x118] sm:$0xff] %v2935
    %3000 = vst [vmem:[#allocation9 + $0x120] sm:$0xff] %v2936
    %3001 = vst [vmem:[#allocation9 + $0x128] sm:$0xff] %v2937
    %3002 = vst [vmem:[#allocation9 + $0x130] sm:$0xff] %v2938
    %3003 = vst [vmem:[#allocation9 + $0x138] sm:$0xff] %v2939
    %3004 = vst [vmem:[#allocation9 + $0x140] sm:$0xff] %v2940
    %3005 = vst [vmem:[#allocation9 + $0x148] sm:$0xff] %v2941
    %3006 = vst [vmem:[#allocation9 + $0x150] sm:$0xff] %v2942
    %3007 = vst [vmem:[#allocation9 + $0x158] sm:$0xff] %v2943
    %3008 = vst [vmem:[#allocation9 + $0x160] sm:$0xff] %v2944
    %3009 = vst [vmem:[#allocation9 + $0x168] sm:$0xff] %v2945
    %3010 = vst [vmem:[#allocation9 + $0x170] sm:$0xff] %v2946
    %3011 = vst [vmem:[#allocation9 + $0x178] sm:$0xff] %v2947
    %3012 = vst [vmem:[#allocation9 + $0x180] sm:$0xff] %v2948
    %3013 = vst [vmem:[#allocation9 + $0x188] sm:$0xff] %v2949
    %3014 = vst [vmem:[#allocation9 + $0x190] sm:$0xff] %v2950
    %3015 = vst [vmem:[#allocation9 + $0x198] sm:$0xff] %v2951
    %3016 = vst [vmem:[#allocation9 + $0x1a0] sm:$0xff] %v2952
    %3017 = vst [vmem:[#allocation9 + $0x1a8] sm:$0xff] %v2953
    %3018 = vst [vmem:[#allocation9 + $0x1b0] sm:$0xff] %v2954
    %3019 = vst [vmem:[#allocation9 + $0x1b8] sm:$0xff] %v2955
    %3020 = vst [vmem:[#allocation9 + $0x1c0] sm:$0xff] %v2956
    %3021 = vst [vmem:[#allocation9 + $0x1c8] sm:$0xff] %v2957
    %3022 = vst [vmem:[#allocation9 + $0x1d0] sm:$0xff] %v2958
    %3023 = vst [vmem:[#allocation9 + $0x1d8] sm:$0xff] %v2959
    %3024 = vst [vmem:[#allocation9 + $0x1e0] sm:$0xff] %v2960
    %3025 = vst [vmem:[#allocation9 + $0x1e8] sm:$0xff] %v2961
    %3026 = vst [vmem:[#allocation9 + $0x1f0] sm:$0xff] %v2962
    %3027 = vst [vmem:[#allocation9 + $0x1f8] sm:$0xff] %v2963
    // Predicated region
    $region34: #{tpu_custom_call.1} parent=1 // pred_check
      _
    $region35: #{tpu_custom_call.1} parent=1 // pred_check_branch
      %3029 = sbr.rel (0) target = $region37
    $region36: #{tpu_custom_call.1} parent=1 // pred_region
      %3031 = vsyncadd [#allocation4], 0
      %s3032 = sshll.u32 [#allocation8], 4
      %s3033 = int_to_ptr.vmem [resolvable:$true] %s3032
      %s3034 = sshll.u32 %s4, 4
      %s3035 = int_to_ptr.hbm [resolvable:$true] %s3034
      %3040 = dma.vmem_to_hbm [thread:$0]  %s3033, 32768, %s3035, [#allocation4], 512, 512, 32
    $region37: #{tpu_custom_call.1} parent=1 // pred_fallthru
      _
    // Predicated region
    $region38: #{tpu_custom_call.1} parent=1 // pred_check
      _
    $region39: #{tpu_custom_call.1} parent=1 // pred_check_branch
      %3042 = sbr.rel (0) target = $region41
    $region40: #{tpu_custom_call.1} parent=1 // pred_region
      %3044 = vsyncadd [#allocation10], 0
      %s3045 = sshll.u32 [#allocation9], 4
      %s3046 = int_to_ptr.vmem [resolvable:$true] %s3045
      %s3047 = sshll.u32 %s5, 4
      %s3048 = int_to_ptr.hbm [resolvable:$true] %s3047
      %3053 = dma.vmem_to_hbm [thread:$0]  %s3046, 8192, %s3048, [#allocation10], 128, 128, 8
    $region41: #{tpu_custom_call.1} parent=1 // pred_fallthru
      _
    // Predicated region
    $region42: #{tpu_custom_call.1} parent=1 // pred_check
      _
    $region43: #{tpu_custom_call.1} parent=1 // pred_check_branch
      %3055 = sbr.rel (0) target = $region45
    $region44: #{tpu_custom_call.1} parent=1 // pred_region
      %3057 = dma.done [#allocation4], 32768
    $region45: #{tpu_custom_call.1} parent=1 // pred_fallthru
      _
    // Predicated region
    $region46: #{tpu_custom_call.1} parent=1 // pred_check
      _
    $region47: #{tpu_custom_call.1} parent=1 // pred_check_branch
      %3059 = sbr.rel (0) target = $region49
    $region48: #{tpu_custom_call.1} parent=1 // pred_region
      %3061 = dma.done [#allocation10], 8192
    $region49: #{tpu_custom_call.1} parent=1 // pred_fallthru
      _
    %3062 = vsyncpa [#allocation3], 1
    %3063 = vsyncpa [#allocation6], 1
    %3064 = vsyncpa [#allocation4], 1
    %3065 = vsyncpa [#allocation10], 1

</llo_original>
